<compile_context>
chip_gen: v7x
topology: tpu7x:2x2x1
jax: 0.10.0
libtpu: 0.0.40
codegen_flags: <defaults>
</compile_context>

<pallas_src>
import functools
import math

import jax
import jax.numpy as jnp
from jax.experimental import pallas as pl
from jax.experimental.pallas import tpu as pltpu  # noqa: F401  (TPU backend)

HIDDEN_SIZE = 64
N_FEATURES = 18
N_LAYERS = 3


# ----------------------------------------------------------------------------
# Fused Pallas kernel: 3 LSTM layers (wavefront) + Linear(64, 1)
# ----------------------------------------------------------------------------
def _fused_lstm_kernel(x_ref,
                       wih0_ref, whh0_ref, b0_ref,
                       wcat1_ref, b1_ref,
                       wcat2_ref, b2_ref,
                       wlin_ref, blin_ref,
                       out_ref, *, T, B):
    """Single-invocation fused forward pass (no grid, no scratch).

    x_ref     : (B*T, F)   batch-major flattened input rows (row = b*T + t)
    wih0_ref  : (F, 4H)    layer-0 input weights (transposed, gate order ifog')
    whh0_ref  : (H, 4H)    layer-0 recurrent weights
    b0_ref    : (1, 4H)    layer-0 folded bias (b_ih + b_hh)
    wcatL_ref : (2H, 4H)   layers 1/2 fused [x_t ; h_{t-1}] weights
    bL_ref    : (1, 4H)    layers 1/2 folded bias
    wlin_ref  : (1, H)     final projection weights (row vector)
    blin_ref  : (1, 1)     final projection bias
    out_ref   : (B*T, 1)   batch-major output rows (row = b*T + t)

    Gate column order is [i, f, o, g] (permuted at init) so one sigmoid covers
    columns [:3H] and one tanh covers [3H:].
    """
    H = whh0_ref.shape[0]

    # Hoisted layer-0 input projection on batch-major rows: one MXU matmul for
    # the whole sequence, row order does not matter.
    gx0 = jnp.dot(x_ref[...], wih0_ref[...],
                  preferred_element_type=jnp.float32) + b0_ref[...]  # (B*T,4H)

    whh0 = whh0_ref[...]
    wcat = [None, wcat1_ref[...], wcat2_ref[...]]
    bias = [None, b1_ref[...], b2_ref[...]]

    zeros = jnp.zeros((B, H), jnp.float32)
    h = [zeros, zeros, zeros]
    c = [zeros, zeros, zeros]
    hs = [[None] * T for _ in range(N_LAYERS)]   # per-layer, per-step h values

    def gate_math(gates, c_prev):
        # Gate order [i, f, o, g]: 2 full-lane-width EUP passes per step.
        sg = jax.nn.sigmoid(gates[:, :3 * H])            # (B, 3H)
        g_g = jnp.tanh(gates[:, 3 * H:])                 # (B, H)
        i_g = sg[:, 0:H]
        f_g = sg[:, H:2 * H]
        o_g = sg[:, 2 * H:3 * H]
        c_new = f_g * c_prev + i_g * g_g
        h_new = o_g * jnp.tanh(c_new)
        return h_new, c_new

    # Wavefront over (layer, time): wave w runs (l, t=w-l) for every live l.
    # Fully statically unrolled; up to N_LAYERS independent steps per wave.
    for w in range(T + N_LAYERS - 1):
        for l in range(N_LAYERS):
            t = w - l
            if not (0 <= t < T):
                continue
            if l == 0:
                # rows {b*T + t} of the hoisted projection (static slices).
                g0_t = jnp.concatenate(
                    [gx0[b * T + t:b * T + t + 1, :] for b in range(B)],
                    axis=0)                               # (B, 4H)
                gates = g0_t + jnp.dot(h[0], whh0,
                                       preferred_element_type=jnp.float32)
            else:
                # Fused [x_t ; h_{t-1}] step: one K=128 MXU push.
                xh = jnp.concatenate([hs[l - 1][t], h[l]], axis=-1)  # (B, 2H)
                gates = jnp.dot(xh, wcat[l],
                                preferred_element_type=jnp.float32) + bias[l]
            h[l], c[l] = gate_math(gates, c[l])
            hs[l][t] = h[l]

    # Fused Linear(H, 1) epilogue: batch-major rows (b*T + t), one XLU
    # reduction and one store.
    h_bm = jnp.concatenate(
        [hs[N_LAYERS - 1][t][b:b + 1, :] for b in range(B) for t in range(T)],
        axis=0)                                           # (B*T, H)
    y = jnp.sum(h_bm * wlin_ref[...], axis=-1, keepdims=True) + blin_ref[...]
    out_ref[...] = y


# ----------------------------------------------------------------------------
# Wrapper
# ----------------------------------------------------------------------------
def _forward_impl(kparams, x_btf):
    """x_btf: (B, T, n_features) -> (B, T, 1), matching PyTorch batch_first."""
    B, T, F = x_btf.shape
    # Free, contiguous reshape (row = b*T + t); no transpose, no data movement.
    x2d = x_btf.astype(jnp.float32).reshape(B * T, F)
    kernel = functools.partial(_fused_lstm_kernel, T=T, B=B)
    y_bm = pl.pallas_call(
        kernel,
        out_shape=jax.ShapeDtypeStruct((B * T, 1), jnp.float32),
        # No grid / BlockSpecs: whole problem (<1 MiB) lives in VMEM.  At B=2
        # a megacore batch axis would be a regression (per review).
    )(x2d,
      kparams["w_ih0_t"], kparams["w_hh0_t"], kparams["b0"],
      kparams["w_cat1"], kparams["b1"],
      kparams["w_cat2"], kparams["b2"],
      kparams["w_lin_row"], kparams["b_lin"])
    return y_bm.reshape(B, T, 1)                          # free reshape


lstm_model_forward = jax.jit(_forward_impl)


# ----------------------------------------------------------------------------
# Parameters
# ----------------------------------------------------------------------------
def init_params(key, input_size=N_FEATURES, hidden_size=HIDDEN_SIZE,
                num_layers=N_LAYERS):
    """Raw PyTorch-layout params, U(-1/sqrt(H), 1/sqrt(H)) like nn.LSTM."""
    bound = 1.0 / math.sqrt(hidden_size)
    params = {"layers": []}
    for l in range(num_layers):
        d_in = input_size if l == 0 else hidden_size
        key, k1, k2, k3, k4 = jax.random.split(key, 5)
        params["layers"].append({
            "w_ih": jax.random.uniform(k1, (4 * hidden_size, d_in),
                                       jnp.float32, -bound, bound),
            "w_hh": jax.random.uniform(k2, (4 * hidden_size, hidden_size),
                                       jnp.float32, -bound, bound),
            "b_ih": jax.random.uniform(k3, (4 * hidden_size,), jnp.float32,
                                       -bound, bound),
            "b_hh": jax.random.uniform(k4, (4 * hidden_size,), jnp.float32,
                                       -bound, bound),
        })
    key, k5, k6 = jax.random.split(key, 3)
    params["w_lin"] = jax.random.uniform(k5, (1, hidden_size), jnp.float32,
                                         -bound, bound)
    params["b_lin"] = jax.random.uniform(k6, (1,), jnp.float32, -bound, bound)
    return params


def prepare_kernel_params(params):
    """Build kernel-layout weights: gate perm [i,f,g,o]->[i,f,o,g], transposed,
    biases folded, layers 1/2 fused into (2H, 4H) [x;h] weights."""
    H = HIDDEN_SIZE
    perm = jnp.concatenate([jnp.arange(0, H), jnp.arange(H, 2 * H),
                            jnp.arange(3 * H, 4 * H), jnp.arange(2 * H, 3 * H)])

    def pack(layer):
        w_ih = layer["w_ih"][perm]                        # (4H, D)
        w_hh = layer["w_hh"][perm]                        # (4H, H)
        b = (layer["b_ih"] + layer["b_hh"])[perm][None, :]
        return w_ih, w_hh, b

    layers = params["layers"]
    w_ih0, w_hh0, b0 = pack(layers[0])
    kp = {"w_ih0_t": w_ih0.T, "w_hh0_t": w_hh0.T, "b0": b0}
    for l in (1, 2):
        w_ih, w_hh, b = pack(layers[l])
        # First H rows multiply x_t, next H rows multiply h_{t-1}.
        kp[f"w_cat{l}"] = jnp.concatenate([w_ih.T, w_hh.T], axis=0)  # (2H, 4H)
        kp[f"b{l}"] = b
    kp["w_lin_row"] = params["w_lin"]                     # (1, H)
    kp["b_lin"] = params["b_lin"].reshape(1, 1)           # (1, 1)
    return kp


# ----------------------------------------------------------------------------
# Pure-JAX reference (PyTorch gate order, raw weights) for correctness check
# ----------------------------------------------------------------------------
def lstm_model_reference(params, x_btf):
    h_seq = jnp.transpose(x_btf, (1, 0, 2)).astype(jnp.float32)  # (T, B, F)
    B = h_seq.shape[1]
    H = HIDDEN_SIZE
    for layer in params["layers"]:
        w_ih, w_hh = layer["w_ih"], layer["w_hh"]
        b = (layer["b_ih"] + layer["b_hh"])[None, :]

        def step(carry, x_t, w_ih=w_ih, w_hh=w_hh, b=b):
            h, c = carry
            gates = x_t @ w_ih.T + h @ w_hh.T + b
            i = jax.nn.sigmoid(gates[:, 0:H])
            f = jax.nn.sigmoid(gates[:, H:2 * H])
            g = jnp.tanh(gates[:, 2 * H:3 * H])
            o = jax.nn.sigmoid(gates[:, 3 * H:4 * H])
            c = f * c + i * g
            h = o * jnp.tanh(c)
            return (h, c), h

        init = (jnp.zeros((B, H), jnp.float32), jnp.zeros((B, H), jnp.float32))
        _, h_seq = jax.lax.scan(step, init, h_seq)
    y = h_seq @ params["w_lin"].T + params["b_lin"]       # (T, B, 1)
    return jnp.transpose(y, (1, 0, 2))                    # (B, T, 1)


# ----------------------------------------------------------------------------
if __name__ == "__main__":
    key = jax.random.PRNGKey(0)
    key, pkey, xkey = jax.random.split(key, 3)

    batch, seq_len = 2, 8
    params = init_params(pkey)
    kparams = prepare_kernel_params(params)
    x = jax.random.normal(xkey, (batch, seq_len, N_FEATURES), jnp.float32)

    out = lstm_model_forward(kparams, x)
    out = jax.block_until_ready(out)

    ref = lstm_model_reference(params, x)
    assert out.shape == (batch, seq_len, 1), out.shape
    assert jnp.allclose(out, ref, rtol=1e-4, atol=1e-4), (
        f"max err {jnp.max(jnp.abs(out - ref))}"
    )
    print("KERNEL_OK")
</pallas_src>

<mosaic_0001>
module attributes {stable_mosaic.version = 11 : i64} {
  func.func @_fused_lstm_kernel(%arg0: memref<16x18xf32, #tpu.memory_space<vmem>>, %arg1: memref<18x256xf32, #tpu.memory_space<vmem>>, %arg2: memref<64x256xf32, #tpu.memory_space<vmem>>, %arg3: memref<1x256xf32, #tpu.memory_space<vmem>>, %arg4: memref<128x256xf32, #tpu.memory_space<vmem>>, %arg5: memref<1x256xf32, #tpu.memory_space<vmem>>, %arg6: memref<128x256xf32, #tpu.memory_space<vmem>>, %arg7: memref<1x256xf32, #tpu.memory_space<vmem>>, %arg8: memref<1x64xf32, #tpu.memory_space<vmem>>, %arg9: memref<1x1xf32, #tpu.memory_space<vmem>>, %arg10: memref<16x1xf32, #tpu.memory_space<vmem>>) attributes {dimension_semantics = [], scalar_prefetch = 0 : i64, scratch_operands = 0 : i64, tpu.core_type = #tpu.core_type<tc>} {
    %c0 = arith.constant 0 : index
    %c0_0 = arith.constant 0 : index
    %0 = vector.load %arg0[%c0, %c0_0] : memref<16x18xf32, #tpu.memory_space<vmem>>, vector<16x18xf32>
    %c0_1 = arith.constant 0 : index
    %c0_2 = arith.constant 0 : index
    %1 = vector.load %arg1[%c0_1, %c0_2] : memref<18x256xf32, #tpu.memory_space<vmem>>, vector<18x256xf32>
    %cst = arith.constant dense<0.000000e+00> : vector<16x256xf32>
    %2 = tpu.matmul %0, %1, %cst {dimension_numbers = #tpu.dot_dimension_numbers<[1], [0], [0], [1], [0, 0, 1, 1], [], []>} : vector<16x18xf32>, vector<18x256xf32>, vector<16x256xf32> -> vector<16x256xf32>
    %c0_3 = arith.constant 0 : index
    %c0_4 = arith.constant 0 : index
    %3 = vector.load %arg3[%c0_3, %c0_4] : memref<1x256xf32, #tpu.memory_space<vmem>>, vector<1x256xf32>
    %4 = vector.broadcast %3 : vector<1x256xf32> to vector<16x256xf32>
    %5 = arith.addf %2, %4 : vector<16x256xf32>
    %c0_5 = arith.constant 0 : index
    %c0_6 = arith.constant 0 : index
    %6 = vector.load %arg2[%c0_5, %c0_6] : memref<64x256xf32, #tpu.memory_space<vmem>>, vector<64x256xf32>
    %c0_7 = arith.constant 0 : index
    %c0_8 = arith.constant 0 : index
    %7 = vector.load %arg4[%c0_7, %c0_8] : memref<128x256xf32, #tpu.memory_space<vmem>>, vector<128x256xf32>
    %c0_9 = arith.constant 0 : index
    %c0_10 = arith.constant 0 : index
    %8 = vector.load %arg6[%c0_9, %c0_10] : memref<128x256xf32, #tpu.memory_space<vmem>>, vector<128x256xf32>
    %c0_11 = arith.constant 0 : index
    %c0_12 = arith.constant 0 : index
    %9 = vector.load %arg5[%c0_11, %c0_12] : memref<1x256xf32, #tpu.memory_space<vmem>>, vector<1x256xf32>
    %c0_13 = arith.constant 0 : index
    %c0_14 = arith.constant 0 : index
    %10 = vector.load %arg7[%c0_13, %c0_14] : memref<1x256xf32, #tpu.memory_space<vmem>>, vector<1x256xf32>
    %cst_15 = arith.constant 0.000000e+00 : f32
    %11 = vector.broadcast %cst_15 : f32 to vector<2x64xf32>
    %12 = vector.extract_strided_slice %5 {offsets = [0, 0], sizes = [1, 256], strides = [1, 1]} : vector<16x256xf32> to vector<1x256xf32>
    %13 = vector.extract_strided_slice %5 {offsets = [8, 0], sizes = [1, 256], strides = [1, 1]} : vector<16x256xf32> to vector<1x256xf32>
    %14 = tpu.concatenate %12, %13 in 0 : vector<1x256xf32>, vector<1x256xf32> -> vector<2x256xf32>
    %cst_16 = arith.constant dense<0.000000e+00> : vector<2x256xf32>
    %15 = tpu.matmul %11, %6, %cst_16 {dimension_numbers = #tpu.dot_dimension_numbers<[1], [0], [0], [1], [0, 0, 1, 1], [], []>} : vector<2x64xf32>, vector<64x256xf32>, vector<2x256xf32> -> vector<2x256xf32>
    %16 = arith.addf %14, %15 : vector<2x256xf32>
    %17 = vector.extract_strided_slice %16 {offsets = [0, 0], sizes = [2, 192], strides = [1, 1]} : vector<2x256xf32> to vector<2x192xf32>
    %18 = arith.negf %17 : vector<2x192xf32>
    %19 = math.exp %18 : vector<2x192xf32>
    %cst_17 = arith.constant 1.000000e+00 : f32
    %20 = vector.broadcast %cst_17 : f32 to vector<2x192xf32>
    %21 = arith.addf %20, %19 : vector<2x192xf32>
    %22 = arith.divf %20, %21 : vector<2x192xf32>
    %23 = vector.extract_strided_slice %16 {offsets = [0, 192], sizes = [2, 64], strides = [1, 1]} : vector<2x256xf32> to vector<2x64xf32>
    %24 = math.tanh %23 : vector<2x64xf32>
    %25 = vector.extract_strided_slice %22 {offsets = [0, 0], sizes = [2, 64], strides = [1, 1]} : vector<2x192xf32> to vector<2x64xf32>
    %26 = vector.extract_strided_slice %22 {offsets = [0, 64], sizes = [2, 64], strides = [1, 1]} : vector<2x192xf32> to vector<2x64xf32>
    %27 = vector.extract_strided_slice %22 {offsets = [0, 128], sizes = [2, 64], strides = [1, 1]} : vector<2x192xf32> to vector<2x64xf32>
    %28 = arith.mulf %26, %11 : vector<2x64xf32>
    %29 = arith.mulf %25, %24 : vector<2x64xf32>
    %30 = arith.addf %28, %29 : vector<2x64xf32>
    %31 = math.tanh %30 : vector<2x64xf32>
    %32 = arith.mulf %27, %31 : vector<2x64xf32>
    %33 = vector.extract_strided_slice %5 {offsets = [1, 0], sizes = [1, 256], strides = [1, 1]} : vector<16x256xf32> to vector<1x256xf32>
    %34 = vector.extract_strided_slice %5 {offsets = [9, 0], sizes = [1, 256], strides = [1, 1]} : vector<16x256xf32> to vector<1x256xf32>
    %35 = tpu.concatenate %33, %34 in 0 : vector<1x256xf32>, vector<1x256xf32> -> vector<2x256xf32>
    %cst_18 = arith.constant dense<0.000000e+00> : vector<2x256xf32>
    %36 = tpu.matmul %32, %6, %cst_18 {dimension_numbers = #tpu.dot_dimension_numbers<[1], [0], [0], [1], [0, 0, 1, 1], [], []>} : vector<2x64xf32>, vector<64x256xf32>, vector<2x256xf32> -> vector<2x256xf32>
    %37 = arith.addf %35, %36 : vector<2x256xf32>
    %38 = vector.extract_strided_slice %37 {offsets = [0, 0], sizes = [2, 192], strides = [1, 1]} : vector<2x256xf32> to vector<2x192xf32>
    %39 = arith.negf %38 : vector<2x192xf32>
    %40 = math.exp %39 : vector<2x192xf32>
    %cst_19 = arith.constant 1.000000e+00 : f32
    %41 = vector.broadcast %cst_19 : f32 to vector<2x192xf32>
    %42 = arith.addf %41, %40 : vector<2x192xf32>
    %43 = arith.divf %41, %42 : vector<2x192xf32>
    %44 = vector.extract_strided_slice %37 {offsets = [0, 192], sizes = [2, 64], strides = [1, 1]} : vector<2x256xf32> to vector<2x64xf32>
    %45 = math.tanh %44 : vector<2x64xf32>
    %46 = vector.extract_strided_slice %43 {offsets = [0, 0], sizes = [2, 64], strides = [1, 1]} : vector<2x192xf32> to vector<2x64xf32>
    %47 = vector.extract_strided_slice %43 {offsets = [0, 64], sizes = [2, 64], strides = [1, 1]} : vector<2x192xf32> to vector<2x64xf32>
    %48 = vector.extract_strided_slice %43 {offsets = [0, 128], sizes = [2, 64], strides = [1, 1]} : vector<2x192xf32> to vector<2x64xf32>
    %49 = arith.mulf %47, %30 : vector<2x64xf32>
    %50 = arith.mulf %46, %45 : vector<2x64xf32>
    %51 = arith.addf %49, %50 : vector<2x64xf32>
    %52 = math.tanh %51 : vector<2x64xf32>
    %53 = arith.mulf %48, %52 : vector<2x64xf32>
    %54 = tpu.concatenate %32, %11 in 1 : vector<2x64xf32>, vector<2x64xf32> -> vector<2x128xf32>
    %cst_20 = arith.constant dense<0.000000e+00> : vector<2x256xf32>
    %55 = tpu.matmul %54, %7, %cst_20 {dimension_numbers = #tpu.dot_dimension_numbers<[1], [0], [0], [1], [0, 0, 1, 1], [], []>} : vector<2x128xf32>, vector<128x256xf32>, vector<2x256xf32> -> vector<2x256xf32>
    %56 = vector.broadcast %9 : vector<1x256xf32> to vector<2x256xf32>
    %57 = arith.addf %55, %56 : vector<2x256xf32>
    %58 = vector.extract_strided_slice %57 {offsets = [0, 0], sizes = [2, 192], strides = [1, 1]} : vector<2x256xf32> to vector<2x192xf32>
    %59 = arith.negf %58 : vector<2x192xf32>
    %60 = math.exp %59 : vector<2x192xf32>
    %cst_21 = arith.constant 1.000000e+00 : f32
    %61 = vector.broadcast %cst_21 : f32 to vector<2x192xf32>
    %62 = arith.addf %61, %60 : vector<2x192xf32>
    %63 = arith.divf %61, %62 : vector<2x192xf32>
    %64 = vector.extract_strided_slice %57 {offsets = [0, 192], sizes = [2, 64], strides = [1, 1]} : vector<2x256xf32> to vector<2x64xf32>
    %65 = math.tanh %64 : vector<2x64xf32>
    %66 = vector.extract_strided_slice %63 {offsets = [0, 0], sizes = [2, 64], strides = [1, 1]} : vector<2x192xf32> to vector<2x64xf32>
    %67 = vector.extract_strided_slice %63 {offsets = [0, 64], sizes = [2, 64], strides = [1, 1]} : vector<2x192xf32> to vector<2x64xf32>
    %68 = vector.extract_strided_slice %63 {offsets = [0, 128], sizes = [2, 64], strides = [1, 1]} : vector<2x192xf32> to vector<2x64xf32>
    %69 = arith.mulf %67, %11 : vector<2x64xf32>
    %70 = arith.mulf %66, %65 : vector<2x64xf32>
    %71 = arith.addf %69, %70 : vector<2x64xf32>
    %72 = math.tanh %71 : vector<2x64xf32>
    %73 = arith.mulf %68, %72 : vector<2x64xf32>
    %74 = vector.extract_strided_slice %5 {offsets = [2, 0], sizes = [1, 256], strides = [1, 1]} : vector<16x256xf32> to vector<1x256xf32>
    %75 = vector.extract_strided_slice %5 {offsets = [10, 0], sizes = [1, 256], strides = [1, 1]} : vector<16x256xf32> to vector<1x256xf32>
    %76 = tpu.concatenate %74, %75 in 0 : vector<1x256xf32>, vector<1x256xf32> -> vector<2x256xf32>
    %cst_22 = arith.constant dense<0.000000e+00> : vector<2x256xf32>
    %77 = tpu.matmul %53, %6, %cst_22 {dimension_numbers = #tpu.dot_dimension_numbers<[1], [0], [0], [1], [0, 0, 1, 1], [], []>} : vector<2x64xf32>, vector<64x256xf32>, vector<2x256xf32> -> vector<2x256xf32>
    %78 = arith.addf %76, %77 : vector<2x256xf32>
    %79 = vector.extract_strided_slice %78 {offsets = [0, 0], sizes = [2, 192], strides = [1, 1]} : vector<2x256xf32> to vector<2x192xf32>
    %80 = arith.negf %79 : vector<2x192xf32>
    %81 = math.exp %80 : vector<2x192xf32>
    %cst_23 = arith.constant 1.000000e+00 : f32
    %82 = vector.broadcast %cst_23 : f32 to vector<2x192xf32>
    %83 = arith.addf %82, %81 : vector<2x192xf32>
    %84 = arith.divf %82, %83 : vector<2x192xf32>
    %85 = vector.extract_strided_slice %78 {offsets = [0, 192], sizes = [2, 64], strides = [1, 1]} : vector<2x256xf32> to vector<2x64xf32>
    %86 = math.tanh %85 : vector<2x64xf32>
    %87 = vector.extract_strided_slice %84 {offsets = [0, 0], sizes = [2, 64], strides = [1, 1]} : vector<2x192xf32> to vector<2x64xf32>
    %88 = vector.extract_strided_slice %84 {offsets = [0, 64], sizes = [2, 64], strides = [1, 1]} : vector<2x192xf32> to vector<2x64xf32>
    %89 = vector.extract_strided_slice %84 {offsets = [0, 128], sizes = [2, 64], strides = [1, 1]} : vector<2x192xf32> to vector<2x64xf32>
    %90 = arith.mulf %88, %51 : vector<2x64xf32>
    %91 = arith.mulf %87, %86 : vector<2x64xf32>
    %92 = arith.addf %90, %91 : vector<2x64xf32>
    %93 = math.tanh %92 : vector<2x64xf32>
    %94 = arith.mulf %89, %93 : vector<2x64xf32>
    %95 = tpu.concatenate %53, %73 in 1 : vector<2x64xf32>, vector<2x64xf32> -> vector<2x128xf32>
    %cst_24 = arith.constant dense<0.000000e+00> : vector<2x256xf32>
    %96 = tpu.matmul %95, %7, %cst_24 {dimension_numbers = #tpu.dot_dimension_numbers<[1], [0], [0], [1], [0, 0, 1, 1], [], []>} : vector<2x128xf32>, vector<128x256xf32>, vector<2x256xf32> -> vector<2x256xf32>
    %97 = vector.broadcast %9 : vector<1x256xf32> to vector<2x256xf32>
    %98 = arith.addf %96, %97 : vector<2x256xf32>
    %99 = vector.extract_strided_slice %98 {offsets = [0, 0], sizes = [2, 192], strides = [1, 1]} : vector<2x256xf32> to vector<2x192xf32>
    %100 = arith.negf %99 : vector<2x192xf32>
    %101 = math.exp %100 : vector<2x192xf32>
    %cst_25 = arith.constant 1.000000e+00 : f32
    %102 = vector.broadcast %cst_25 : f32 to vector<2x192xf32>
    %103 = arith.addf %102, %101 : vector<2x192xf32>
    %104 = arith.divf %102, %103 : vector<2x192xf32>
    %105 = vector.extract_strided_slice %98 {offsets = [0, 192], sizes = [2, 64], strides = [1, 1]} : vector<2x256xf32> to vector<2x64xf32>
    %106 = math.tanh %105 : vector<2x64xf32>
    %107 = vector.extract_strided_slice %104 {offsets = [0, 0], sizes = [2, 64], strides = [1, 1]} : vector<2x192xf32> to vector<2x64xf32>
    %108 = vector.extract_strided_slice %104 {offsets = [0, 64], sizes = [2, 64], strides = [1, 1]} : vector<2x192xf32> to vector<2x64xf32>
    %109 = vector.extract_strided_slice %104 {offsets = [0, 128], sizes = [2, 64], strides = [1, 1]} : vector<2x192xf32> to vector<2x64xf32>
    %110 = arith.mulf %108, %71 : vector<2x64xf32>
    %111 = arith.mulf %107, %106 : vector<2x64xf32>
    %112 = arith.addf %110, %111 : vector<2x64xf32>
    %113 = math.tanh %112 : vector<2x64xf32>
    %114 = arith.mulf %109, %113 : vector<2x64xf32>
    %115 = tpu.concatenate %73, %11 in 1 : vector<2x64xf32>, vector<2x64xf32> -> vector<2x128xf32>
    %cst_26 = arith.constant dense<0.000000e+00> : vector<2x256xf32>
    %116 = tpu.matmul %115, %8, %cst_26 {dimension_numbers = #tpu.dot_dimension_numbers<[1], [0], [0], [1], [0, 0, 1, 1], [], []>} : vector<2x128xf32>, vector<128x256xf32>, vector<2x256xf32> -> vector<2x256xf32>
    %117 = vector.broadcast %10 : vector<1x256xf32> to vector<2x256xf32>
    %118 = arith.addf %116, %117 : vector<2x256xf32>
    %119 = vector.extract_strided_slice %118 {offsets = [0, 0], sizes = [2, 192], strides = [1, 1]} : vector<2x256xf32> to vector<2x192xf32>
    %120 = arith.negf %119 : vector<2x192xf32>
    %121 = math.exp %120 : vector<2x192xf32>
    %cst_27 = arith.constant 1.000000e+00 : f32
    %122 = vector.broadcast %cst_27 : f32 to vector<2x192xf32>
    %123 = arith.addf %122, %121 : vector<2x192xf32>
    %124 = arith.divf %122, %123 : vector<2x192xf32>
    %125 = vector.extract_strided_slice %118 {offsets = [0, 192], sizes = [2, 64], strides = [1, 1]} : vector<2x256xf32> to vector<2x64xf32>
    %126 = math.tanh %125 : vector<2x64xf32>
    %127 = vector.extract_strided_slice %124 {offsets = [0, 0], sizes = [2, 64], strides = [1, 1]} : vector<2x192xf32> to vector<2x64xf32>
    %128 = vector.extract_strided_slice %124 {offsets = [0, 64], sizes = [2, 64], strides = [1, 1]} : vector<2x192xf32> to vector<2x64xf32>
    %129 = vector.extract_strided_slice %124 {offsets = [0, 128], sizes = [2, 64], strides = [1, 1]} : vector<2x192xf32> to vector<2x64xf32>
    %130 = arith.mulf %128, %11 : vector<2x64xf32>
    %131 = arith.mulf %127, %126 : vector<2x64xf32>
    %132 = arith.addf %130, %131 : vector<2x64xf32>
    %133 = math.tanh %132 : vector<2x64xf32>
    %134 = arith.mulf %129, %133 : vector<2x64xf32>
    %135 = vector.extract_strided_slice %5 {offsets = [3, 0], sizes = [1, 256], strides = [1, 1]} : vector<16x256xf32> to vector<1x256xf32>
    %136 = vector.extract_strided_slice %5 {offsets = [11, 0], sizes = [1, 256], strides = [1, 1]} : vector<16x256xf32> to vector<1x256xf32>
    %137 = tpu.concatenate %135, %136 in 0 : vector<1x256xf32>, vector<1x256xf32> -> vector<2x256xf32>
    %cst_28 = arith.constant dense<0.000000e+00> : vector<2x256xf32>
    %138 = tpu.matmul %94, %6, %cst_28 {dimension_numbers = #tpu.dot_dimension_numbers<[1], [0], [0], [1], [0, 0, 1, 1], [], []>} : vector<2x64xf32>, vector<64x256xf32>, vector<2x256xf32> -> vector<2x256xf32>
    %139 = arith.addf %137, %138 : vector<2x256xf32>
    %140 = vector.extract_strided_slice %139 {offsets = [0, 0], sizes = [2, 192], strides = [1, 1]} : vector<2x256xf32> to vector<2x192xf32>
    %141 = arith.negf %140 : vector<2x192xf32>
    %142 = math.exp %141 : vector<2x192xf32>
    %cst_29 = arith.constant 1.000000e+00 : f32
    %143 = vector.broadcast %cst_29 : f32 to vector<2x192xf32>
    %144 = arith.addf %143, %142 : vector<2x192xf32>
    %145 = arith.divf %143, %144 : vector<2x192xf32>
    %146 = vector.extract_strided_slice %139 {offsets = [0, 192], sizes = [2, 64], strides = [1, 1]} : vector<2x256xf32> to vector<2x64xf32>
    %147 = math.tanh %146 : vector<2x64xf32>
    %148 = vector.extract_strided_slice %145 {offsets = [0, 0], sizes = [2, 64], strides = [1, 1]} : vector<2x192xf32> to vector<2x64xf32>
    %149 = vector.extract_strided_slice %145 {offsets = [0, 64], sizes = [2, 64], strides = [1, 1]} : vector<2x192xf32> to vector<2x64xf32>
    %150 = vector.extract_strided_slice %145 {offsets = [0, 128], sizes = [2, 64], strides = [1, 1]} : vector<2x192xf32> to vector<2x64xf32>
    %151 = arith.mulf %149, %92 : vector<2x64xf32>
    %152 = arith.mulf %148, %147 : vector<2x64xf32>
    %153 = arith.addf %151, %152 : vector<2x64xf32>
    %154 = math.tanh %153 : vector<2x64xf32>
    %155 = arith.mulf %150, %154 : vector<2x64xf32>
    %156 = tpu.concatenate %94, %114 in 1 : vector<2x64xf32>, vector<2x64xf32> -> vector<2x128xf32>
    %cst_30 = arith.constant dense<0.000000e+00> : vector<2x256xf32>
    %157 = tpu.matmul %156, %7, %cst_30 {dimension_numbers = #tpu.dot_dimension_numbers<[1], [0], [0], [1], [0, 0, 1, 1], [], []>} : vector<2x128xf32>, vector<128x256xf32>, vector<2x256xf32> -> vector<2x256xf32>
    %158 = vector.broadcast %9 : vector<1x256xf32> to vector<2x256xf32>
    %159 = arith.addf %157, %158 : vector<2x256xf32>
    %160 = vector.extract_strided_slice %159 {offsets = [0, 0], sizes = [2, 192], strides = [1, 1]} : vector<2x256xf32> to vector<2x192xf32>
    %161 = arith.negf %160 : vector<2x192xf32>
    %162 = math.exp %161 : vector<2x192xf32>
    %cst_31 = arith.constant 1.000000e+00 : f32
    %163 = vector.broadcast %cst_31 : f32 to vector<2x192xf32>
    %164 = arith.addf %163, %162 : vector<2x192xf32>
    %165 = arith.divf %163, %164 : vector<2x192xf32>
    %166 = vector.extract_strided_slice %159 {offsets = [0, 192], sizes = [2, 64], strides = [1, 1]} : vector<2x256xf32> to vector<2x64xf32>
    %167 = math.tanh %166 : vector<2x64xf32>
    %168 = vector.extract_strided_slice %165 {offsets = [0, 0], sizes = [2, 64], strides = [1, 1]} : vector<2x192xf32> to vector<2x64xf32>
    %169 = vector.extract_strided_slice %165 {offsets = [0, 64], sizes = [2, 64], strides = [1, 1]} : vector<2x192xf32> to vector<2x64xf32>
    %170 = vector.extract_strided_slice %165 {offsets = [0, 128], sizes = [2, 64], strides = [1, 1]} : vector<2x192xf32> to vector<2x64xf32>
    %171 = arith.mulf %169, %112 : vector<2x64xf32>
    %172 = arith.mulf %168, %167 : vector<2x64xf32>
    %173 = arith.addf %171, %172 : vector<2x64xf32>
    %174 = math.tanh %173 : vector<2x64xf32>
    %175 = arith.mulf %170, %174 : vector<2x64xf32>
    %176 = tpu.concatenate %114, %134 in 1 : vector<2x64xf32>, vector<2x64xf32> -> vector<2x128xf32>
    %cst_32 = arith.constant dense<0.000000e+00> : vector<2x256xf32>
    %177 = tpu.matmul %176, %8, %cst_32 {dimension_numbers = #tpu.dot_dimension_numbers<[1], [0], [0], [1], [0, 0, 1, 1], [], []>} : vector<2x128xf32>, vector<128x256xf32>, vector<2x256xf32> -> vector<2x256xf32>
    %178 = vector.broadcast %10 : vector<1x256xf32> to vector<2x256xf32>
    %179 = arith.addf %177, %178 : vector<2x256xf32>
    %180 = vector.extract_strided_slice %179 {offsets = [0, 0], sizes = [2, 192], strides = [1, 1]} : vector<2x256xf32> to vector<2x192xf32>
    %181 = arith.negf %180 : vector<2x192xf32>
    %182 = math.exp %181 : vector<2x192xf32>
    %cst_33 = arith.constant 1.000000e+00 : f32
    %183 = vector.broadcast %cst_33 : f32 to vector<2x192xf32>
    %184 = arith.addf %183, %182 : vector<2x192xf32>
    %185 = arith.divf %183, %184 : vector<2x192xf32>
    %186 = vector.extract_strided_slice %179 {offsets = [0, 192], sizes = [2, 64], strides = [1, 1]} : vector<2x256xf32> to vector<2x64xf32>
    %187 = math.tanh %186 : vector<2x64xf32>
    %188 = vector.extract_strided_slice %185 {offsets = [0, 0], sizes = [2, 64], strides = [1, 1]} : vector<2x192xf32> to vector<2x64xf32>
    %189 = vector.extract_strided_slice %185 {offsets = [0, 64], sizes = [2, 64], strides = [1, 1]} : vector<2x192xf32> to vector<2x64xf32>
    %190 = vector.extract_strided_slice %185 {offsets = [0, 128], sizes = [2, 64], strides = [1, 1]} : vector<2x192xf32> to vector<2x64xf32>
    %191 = arith.mulf %189, %132 : vector<2x64xf32>
    %192 = arith.mulf %188, %187 : vector<2x64xf32>
    %193 = arith.addf %191, %192 : vector<2x64xf32>
    %194 = math.tanh %193 : vector<2x64xf32>
    %195 = arith.mulf %190, %194 : vector<2x64xf32>
    %196 = vector.extract_strided_slice %5 {offsets = [4, 0], sizes = [1, 256], strides = [1, 1]} : vector<16x256xf32> to vector<1x256xf32>
    %197 = vector.extract_strided_slice %5 {offsets = [12, 0], sizes = [1, 256], strides = [1, 1]} : vector<16x256xf32> to vector<1x256xf32>
    %198 = tpu.concatenate %196, %197 in 0 : vector<1x256xf32>, vector<1x256xf32> -> vector<2x256xf32>
    %cst_34 = arith.constant dense<0.000000e+00> : vector<2x256xf32>
    %199 = tpu.matmul %155, %6, %cst_34 {dimension_numbers = #tpu.dot_dimension_numbers<[1], [0], [0], [1], [0, 0, 1, 1], [], []>} : vector<2x64xf32>, vector<64x256xf32>, vector<2x256xf32> -> vector<2x256xf32>
    %200 = arith.addf %198, %199 : vector<2x256xf32>
    %201 = vector.extract_strided_slice %200 {offsets = [0, 0], sizes = [2, 192], strides = [1, 1]} : vector<2x256xf32> to vector<2x192xf32>
    %202 = arith.negf %201 : vector<2x192xf32>
    %203 = math.exp %202 : vector<2x192xf32>
    %cst_35 = arith.constant 1.000000e+00 : f32
    %204 = vector.broadcast %cst_35 : f32 to vector<2x192xf32>
    %205 = arith.addf %204, %203 : vector<2x192xf32>
    %206 = arith.divf %204, %205 : vector<2x192xf32>
    %207 = vector.extract_strided_slice %200 {offsets = [0, 192], sizes = [2, 64], strides = [1, 1]} : vector<2x256xf32> to vector<2x64xf32>
    %208 = math.tanh %207 : vector<2x64xf32>
    %209 = vector.extract_strided_slice %206 {offsets = [0, 0], sizes = [2, 64], strides = [1, 1]} : vector<2x192xf32> to vector<2x64xf32>
    %210 = vector.extract_strided_slice %206 {offsets = [0, 64], sizes = [2, 64], strides = [1, 1]} : vector<2x192xf32> to vector<2x64xf32>
    %211 = vector.extract_strided_slice %206 {offsets = [0, 128], sizes = [2, 64], strides = [1, 1]} : vector<2x192xf32> to vector<2x64xf32>
    %212 = arith.mulf %210, %153 : vector<2x64xf32>
    %213 = arith.mulf %209, %208 : vector<2x64xf32>
    %214 = arith.addf %212, %213 : vector<2x64xf32>
    %215 = math.tanh %214 : vector<2x64xf32>
    %216 = arith.mulf %211, %215 : vector<2x64xf32>
    %217 = tpu.concatenate %155, %175 in 1 : vector<2x64xf32>, vector<2x64xf32> -> vector<2x128xf32>
    %cst_36 = arith.constant dense<0.000000e+00> : vector<2x256xf32>
    %218 = tpu.matmul %217, %7, %cst_36 {dimension_numbers = #tpu.dot_dimension_numbers<[1], [0], [0], [1], [0, 0, 1, 1], [], []>} : vector<2x128xf32>, vector<128x256xf32>, vector<2x256xf32> -> vector<2x256xf32>
    %219 = vector.broadcast %9 : vector<1x256xf32> to vector<2x256xf32>
    %220 = arith.addf %218, %219 : vector<2x256xf32>
    %221 = vector.extract_strided_slice %220 {offsets = [0, 0], sizes = [2, 192], strides = [1, 1]} : vector<2x256xf32> to vector<2x192xf32>
    %222 = arith.negf %221 : vector<2x192xf32>
    %223 = math.exp %222 : vector<2x192xf32>
    %cst_37 = arith.constant 1.000000e+00 : f32
    %224 = vector.broadcast %cst_37 : f32 to vector<2x192xf32>
    %225 = arith.addf %224, %223 : vector<2x192xf32>
    %226 = arith.divf %224, %225 : vector<2x192xf32>
    %227 = vector.extract_strided_slice %220 {offsets = [0, 192], sizes = [2, 64], strides = [1, 1]} : vector<2x256xf32> to vector<2x64xf32>
    %228 = math.tanh %227 : vector<2x64xf32>
    %229 = vector.extract_strided_slice %226 {offsets = [0, 0], sizes = [2, 64], strides = [1, 1]} : vector<2x192xf32> to vector<2x64xf32>
    %230 = vector.extract_strided_slice %226 {offsets = [0, 64], sizes = [2, 64], strides = [1, 1]} : vector<2x192xf32> to vector<2x64xf32>
    %231 = vector.extract_strided_slice %226 {offsets = [0, 128], sizes = [2, 64], strides = [1, 1]} : vector<2x192xf32> to vector<2x64xf32>
    %232 = arith.mulf %230, %173 : vector<2x64xf32>
    %233 = arith.mulf %229, %228 : vector<2x64xf32>
    %234 = arith.addf %232, %233 : vector<2x64xf32>
    %235 = math.tanh %234 : vector<2x64xf32>
    %236 = arith.mulf %231, %235 : vector<2x64xf32>
    %237 = tpu.concatenate %175, %195 in 1 : vector<2x64xf32>, vector<2x64xf32> -> vector<2x128xf32>
    %cst_38 = arith.constant dense<0.000000e+00> : vector<2x256xf32>
    %238 = tpu.matmul %237, %8, %cst_38 {dimension_numbers = #tpu.dot_dimension_numbers<[1], [0], [0], [1], [0, 0, 1, 1], [], []>} : vector<2x128xf32>, vector<128x256xf32>, vector<2x256xf32> -> vector<2x256xf32>
    %239 = vector.broadcast %10 : vector<1x256xf32> to vector<2x256xf32>
    %240 = arith.addf %238, %239 : vector<2x256xf32>
    %241 = vector.extract_strided_slice %240 {offsets = [0, 0], sizes = [2, 192], strides = [1, 1]} : vector<2x256xf32> to vector<2x192xf32>
    %242 = arith.negf %241 : vector<2x192xf32>
    %243 = math.exp %242 : vector<2x192xf32>
    %cst_39 = arith.constant 1.000000e+00 : f32
    %244 = vector.broadcast %cst_39 : f32 to vector<2x192xf32>
    %245 = arith.addf %244, %243 : vector<2x192xf32>
    %246 = arith.divf %244, %245 : vector<2x192xf32>
    %247 = vector.extract_strided_slice %240 {offsets = [0, 192], sizes = [2, 64], strides = [1, 1]} : vector<2x256xf32> to vector<2x64xf32>
    %248 = math.tanh %247 : vector<2x64xf32>
    %249 = vector.extract_strided_slice %246 {offsets = [0, 0], sizes = [2, 64], strides = [1, 1]} : vector<2x192xf32> to vector<2x64xf32>
    %250 = vector.extract_strided_slice %246 {offsets = [0, 64], sizes = [2, 64], strides = [1, 1]} : vector<2x192xf32> to vector<2x64xf32>
    %251 = vector.extract_strided_slice %246 {offsets = [0, 128], sizes = [2, 64], strides = [1, 1]} : vector<2x192xf32> to vector<2x64xf32>
    %252 = arith.mulf %250, %193 : vector<2x64xf32>
    %253 = arith.mulf %249, %248 : vector<2x64xf32>
    %254 = arith.addf %252, %253 : vector<2x64xf32>
    %255 = math.tanh %254 : vector<2x64xf32>
    %256 = arith.mulf %251, %255 : vector<2x64xf32>
    %257 = vector.extract_strided_slice %5 {offsets = [5, 0], sizes = [1, 256], strides = [1, 1]} : vector<16x256xf32> to vector<1x256xf32>
    %258 = vector.extract_strided_slice %5 {offsets = [13, 0], sizes = [1, 256], strides = [1, 1]} : vector<16x256xf32> to vector<1x256xf32>
    %259 = tpu.concatenate %257, %258 in 0 : vector<1x256xf32>, vector<1x256xf32> -> vector<2x256xf32>
    %cst_40 = arith.constant dense<0.000000e+00> : vector<2x256xf32>
    %260 = tpu.matmul %216, %6, %cst_40 {dimension_numbers = #tpu.dot_dimension_numbers<[1], [0], [0], [1], [0, 0, 1, 1], [], []>} : vector<2x64xf32>, vector<64x256xf32>, vector<2x256xf32> -> vector<2x256xf32>
    %261 = arith.addf %259, %260 : vector<2x256xf32>
    %262 = vector.extract_strided_slice %261 {offsets = [0, 0], sizes = [2, 192], strides = [1, 1]} : vector<2x256xf32> to vector<2x192xf32>
    %263 = arith.negf %262 : vector<2x192xf32>
    %264 = math.exp %263 : vector<2x192xf32>
    %cst_41 = arith.constant 1.000000e+00 : f32
    %265 = vector.broadcast %cst_41 : f32 to vector<2x192xf32>
    %266 = arith.addf %265, %264 : vector<2x192xf32>
    %267 = arith.divf %265, %266 : vector<2x192xf32>
    %268 = vector.extract_strided_slice %261 {offsets = [0, 192], sizes = [2, 64], strides = [1, 1]} : vector<2x256xf32> to vector<2x64xf32>
    %269 = math.tanh %268 : vector<2x64xf32>
    %270 = vector.extract_strided_slice %267 {offsets = [0, 0], sizes = [2, 64], strides = [1, 1]} : vector<2x192xf32> to vector<2x64xf32>
    %271 = vector.extract_strided_slice %267 {offsets = [0, 64], sizes = [2, 64], strides = [1, 1]} : vector<2x192xf32> to vector<2x64xf32>
    %272 = vector.extract_strided_slice %267 {offsets = [0, 128], sizes = [2, 64], strides = [1, 1]} : vector<2x192xf32> to vector<2x64xf32>
    %273 = arith.mulf %271, %214 : vector<2x64xf32>
    %274 = arith.mulf %270, %269 : vector<2x64xf32>
    %275 = arith.addf %273, %274 : vector<2x64xf32>
    %276 = math.tanh %275 : vector<2x64xf32>
    %277 = arith.mulf %272, %276 : vector<2x64xf32>
    %278 = tpu.concatenate %216, %236 in 1 : vector<2x64xf32>, vector<2x64xf32> -> vector<2x128xf32>
    %cst_42 = arith.constant dense<0.000000e+00> : vector<2x256xf32>
    %279 = tpu.matmul %278, %7, %cst_42 {dimension_numbers = #tpu.dot_dimension_numbers<[1], [0], [0], [1], [0, 0, 1, 1], [], []>} : vector<2x128xf32>, vector<128x256xf32>, vector<2x256xf32> -> vector<2x256xf32>
    %280 = vector.broadcast %9 : vector<1x256xf32> to vector<2x256xf32>
    %281 = arith.addf %279, %280 : vector<2x256xf32>
    %282 = vector.extract_strided_slice %281 {offsets = [0, 0], sizes = [2, 192], strides = [1, 1]} : vector<2x256xf32> to vector<2x192xf32>
    %283 = arith.negf %282 : vector<2x192xf32>
    %284 = math.exp %283 : vector<2x192xf32>
    %cst_43 = arith.constant 1.000000e+00 : f32
    %285 = vector.broadcast %cst_43 : f32 to vector<2x192xf32>
    %286 = arith.addf %285, %284 : vector<2x192xf32>
    %287 = arith.divf %285, %286 : vector<2x192xf32>
    %288 = vector.extract_strided_slice %281 {offsets = [0, 192], sizes = [2, 64], strides = [1, 1]} : vector<2x256xf32> to vector<2x64xf32>
    %289 = math.tanh %288 : vector<2x64xf32>
    %290 = vector.extract_strided_slice %287 {offsets = [0, 0], sizes = [2, 64], strides = [1, 1]} : vector<2x192xf32> to vector<2x64xf32>
    %291 = vector.extract_strided_slice %287 {offsets = [0, 64], sizes = [2, 64], strides = [1, 1]} : vector<2x192xf32> to vector<2x64xf32>
    %292 = vector.extract_strided_slice %287 {offsets = [0, 128], sizes = [2, 64], strides = [1, 1]} : vector<2x192xf32> to vector<2x64xf32>
    %293 = arith.mulf %291, %234 : vector<2x64xf32>
    %294 = arith.mulf %290, %289 : vector<2x64xf32>
    %295 = arith.addf %293, %294 : vector<2x64xf32>
    %296 = math.tanh %295 : vector<2x64xf32>
    %297 = arith.mulf %292, %296 : vector<2x64xf32>
    %298 = tpu.concatenate %236, %256 in 1 : vector<2x64xf32>, vector<2x64xf32> -> vector<2x128xf32>
    %cst_44 = arith.constant dense<0.000000e+00> : vector<2x256xf32>
    %299 = tpu.matmul %298, %8, %cst_44 {dimension_numbers = #tpu.dot_dimension_numbers<[1], [0], [0], [1], [0, 0, 1, 1], [], []>} : vector<2x128xf32>, vector<128x256xf32>, vector<2x256xf32> -> vector<2x256xf32>
    %300 = vector.broadcast %10 : vector<1x256xf32> to vector<2x256xf32>
    %301 = arith.addf %299, %300 : vector<2x256xf32>
    %302 = vector.extract_strided_slice %301 {offsets = [0, 0], sizes = [2, 192], strides = [1, 1]} : vector<2x256xf32> to vector<2x192xf32>
    %303 = arith.negf %302 : vector<2x192xf32>
    %304 = math.exp %303 : vector<2x192xf32>
    %cst_45 = arith.constant 1.000000e+00 : f32
    %305 = vector.broadcast %cst_45 : f32 to vector<2x192xf32>
    %306 = arith.addf %305, %304 : vector<2x192xf32>
    %307 = arith.divf %305, %306 : vector<2x192xf32>
    %308 = vector.extract_strided_slice %301 {offsets = [0, 192], sizes = [2, 64], strides = [1, 1]} : vector<2x256xf32> to vector<2x64xf32>
    %309 = math.tanh %308 : vector<2x64xf32>
    %310 = vector.extract_strided_slice %307 {offsets = [0, 0], sizes = [2, 64], strides = [1, 1]} : vector<2x192xf32> to vector<2x64xf32>
    %311 = vector.extract_strided_slice %307 {offsets = [0, 64], sizes = [2, 64], strides = [1, 1]} : vector<2x192xf32> to vector<2x64xf32>
    %312 = vector.extract_strided_slice %307 {offsets = [0, 128], sizes = [2, 64], strides = [1, 1]} : vector<2x192xf32> to vector<2x64xf32>
    %313 = arith.mulf %311, %254 : vector<2x64xf32>
    %314 = arith.mulf %310, %309 : vector<2x64xf32>
    %315 = arith.addf %313, %314 : vector<2x64xf32>
    %316 = math.tanh %315 : vector<2x64xf32>
    %317 = arith.mulf %312, %316 : vector<2x64xf32>
    %318 = vector.extract_strided_slice %5 {offsets = [6, 0], sizes = [1, 256], strides = [1, 1]} : vector<16x256xf32> to vector<1x256xf32>
    %319 = vector.extract_strided_slice %5 {offsets = [14, 0], sizes = [1, 256], strides = [1, 1]} : vector<16x256xf32> to vector<1x256xf32>
    %320 = tpu.concatenate %318, %319 in 0 : vector<1x256xf32>, vector<1x256xf32> -> vector<2x256xf32>
    %cst_46 = arith.constant dense<0.000000e+00> : vector<2x256xf32>
    %321 = tpu.matmul %277, %6, %cst_46 {dimension_numbers = #tpu.dot_dimension_numbers<[1], [0], [0], [1], [0, 0, 1, 1], [], []>} : vector<2x64xf32>, vector<64x256xf32>, vector<2x256xf32> -> vector<2x256xf32>
    %322 = arith.addf %320, %321 : vector<2x256xf32>
    %323 = vector.extract_strided_slice %322 {offsets = [0, 0], sizes = [2, 192], strides = [1, 1]} : vector<2x256xf32> to vector<2x192xf32>
    %324 = arith.negf %323 : vector<2x192xf32>
    %325 = math.exp %324 : vector<2x192xf32>
    %cst_47 = arith.constant 1.000000e+00 : f32
    %326 = vector.broadcast %cst_47 : f32 to vector<2x192xf32>
    %327 = arith.addf %326, %325 : vector<2x192xf32>
    %328 = arith.divf %326, %327 : vector<2x192xf32>
    %329 = vector.extract_strided_slice %322 {offsets = [0, 192], sizes = [2, 64], strides = [1, 1]} : vector<2x256xf32> to vector<2x64xf32>
    %330 = math.tanh %329 : vector<2x64xf32>
    %331 = vector.extract_strided_slice %328 {offsets = [0, 0], sizes = [2, 64], strides = [1, 1]} : vector<2x192xf32> to vector<2x64xf32>
    %332 = vector.extract_strided_slice %328 {offsets = [0, 64], sizes = [2, 64], strides = [1, 1]} : vector<2x192xf32> to vector<2x64xf32>
    %333 = vector.extract_strided_slice %328 {offsets = [0, 128], sizes = [2, 64], strides = [1, 1]} : vector<2x192xf32> to vector<2x64xf32>
    %334 = arith.mulf %332, %275 : vector<2x64xf32>
    %335 = arith.mulf %331, %330 : vector<2x64xf32>
    %336 = arith.addf %334, %335 : vector<2x64xf32>
    %337 = math.tanh %336 : vector<2x64xf32>
    %338 = arith.mulf %333, %337 : vector<2x64xf32>
    %339 = tpu.concatenate %277, %297 in 1 : vector<2x64xf32>, vector<2x64xf32> -> vector<2x128xf32>
    %cst_48 = arith.constant dense<0.000000e+00> : vector<2x256xf32>
    %340 = tpu.matmul %339, %7, %cst_48 {dimension_numbers = #tpu.dot_dimension_numbers<[1], [0], [0], [1], [0, 0, 1, 1], [], []>} : vector<2x128xf32>, vector<128x256xf32>, vector<2x256xf32> -> vector<2x256xf32>
    %341 = vector.broadcast %9 : vector<1x256xf32> to vector<2x256xf32>
    %342 = arith.addf %340, %341 : vector<2x256xf32>
    %343 = vector.extract_strided_slice %342 {offsets = [0, 0], sizes = [2, 192], strides = [1, 1]} : vector<2x256xf32> to vector<2x192xf32>
    %344 = arith.negf %343 : vector<2x192xf32>
    %345 = math.exp %344 : vector<2x192xf32>
    %cst_49 = arith.constant 1.000000e+00 : f32
    %346 = vector.broadcast %cst_49 : f32 to vector<2x192xf32>
    %347 = arith.addf %346, %345 : vector<2x192xf32>
    %348 = arith.divf %346, %347 : vector<2x192xf32>
    %349 = vector.extract_strided_slice %342 {offsets = [0, 192], sizes = [2, 64], strides = [1, 1]} : vector<2x256xf32> to vector<2x64xf32>
    %350 = math.tanh %349 : vector<2x64xf32>
    %351 = vector.extract_strided_slice %348 {offsets = [0, 0], sizes = [2, 64], strides = [1, 1]} : vector<2x192xf32> to vector<2x64xf32>
    %352 = vector.extract_strided_slice %348 {offsets = [0, 64], sizes = [2, 64], strides = [1, 1]} : vector<2x192xf32> to vector<2x64xf32>
    %353 = vector.extract_strided_slice %348 {offsets = [0, 128], sizes = [2, 64], strides = [1, 1]} : vector<2x192xf32> to vector<2x64xf32>
    %354 = arith.mulf %352, %295 : vector<2x64xf32>
    %355 = arith.mulf %351, %350 : vector<2x64xf32>
    %356 = arith.addf %354, %355 : vector<2x64xf32>
    %357 = math.tanh %356 : vector<2x64xf32>
    %358 = arith.mulf %353, %357 : vector<2x64xf32>
    %359 = tpu.concatenate %297, %317 in 1 : vector<2x64xf32>, vector<2x64xf32> -> vector<2x128xf32>
    %cst_50 = arith.constant dense<0.000000e+00> : vector<2x256xf32>
    %360 = tpu.matmul %359, %8, %cst_50 {dimension_numbers = #tpu.dot_dimension_numbers<[1], [0], [0], [1], [0, 0, 1, 1], [], []>} : vector<2x128xf32>, vector<128x256xf32>, vector<2x256xf32> -> vector<2x256xf32>
    %361 = vector.broadcast %10 : vector<1x256xf32> to vector<2x256xf32>
    %362 = arith.addf %360, %361 : vector<2x256xf32>
    %363 = vector.extract_strided_slice %362 {offsets = [0, 0], sizes = [2, 192], strides = [1, 1]} : vector<2x256xf32> to vector<2x192xf32>
    %364 = arith.negf %363 : vector<2x192xf32>
    %365 = math.exp %364 : vector<2x192xf32>
    %cst_51 = arith.constant 1.000000e+00 : f32
    %366 = vector.broadcast %cst_51 : f32 to vector<2x192xf32>
    %367 = arith.addf %366, %365 : vector<2x192xf32>
    %368 = arith.divf %366, %367 : vector<2x192xf32>
    %369 = vector.extract_strided_slice %362 {offsets = [0, 192], sizes = [2, 64], strides = [1, 1]} : vector<2x256xf32> to vector<2x64xf32>
    %370 = math.tanh %369 : vector<2x64xf32>
    %371 = vector.extract_strided_slice %368 {offsets = [0, 0], sizes = [2, 64], strides = [1, 1]} : vector<2x192xf32> to vector<2x64xf32>
    %372 = vector.extract_strided_slice %368 {offsets = [0, 64], sizes = [2, 64], strides = [1, 1]} : vector<2x192xf32> to vector<2x64xf32>
    %373 = vector.extract_strided_slice %368 {offsets = [0, 128], sizes = [2, 64], strides = [1, 1]} : vector<2x192xf32> to vector<2x64xf32>
    %374 = arith.mulf %372, %315 : vector<2x64xf32>
    %375 = arith.mulf %371, %370 : vector<2x64xf32>
    %376 = arith.addf %374, %375 : vector<2x64xf32>
    %377 = math.tanh %376 : vector<2x64xf32>
    %378 = arith.mulf %373, %377 : vector<2x64xf32>
    %379 = vector.extract_strided_slice %5 {offsets = [7, 0], sizes = [1, 256], strides = [1, 1]} : vector<16x256xf32> to vector<1x256xf32>
    %380 = vector.extract_strided_slice %5 {offsets = [15, 0], sizes = [1, 256], strides = [1, 1]} : vector<16x256xf32> to vector<1x256xf32>
    %381 = tpu.concatenate %379, %380 in 0 : vector<1x256xf32>, vector<1x256xf32> -> vector<2x256xf32>
    %cst_52 = arith.constant dense<0.000000e+00> : vector<2x256xf32>
    %382 = tpu.matmul %338, %6, %cst_52 {dimension_numbers = #tpu.dot_dimension_numbers<[1], [0], [0], [1], [0, 0, 1, 1], [], []>} : vector<2x64xf32>, vector<64x256xf32>, vector<2x256xf32> -> vector<2x256xf32>
    %383 = arith.addf %381, %382 : vector<2x256xf32>
    %384 = vector.extract_strided_slice %383 {offsets = [0, 0], sizes = [2, 192], strides = [1, 1]} : vector<2x256xf32> to vector<2x192xf32>
    %385 = arith.negf %384 : vector<2x192xf32>
    %386 = math.exp %385 : vector<2x192xf32>
    %cst_53 = arith.constant 1.000000e+00 : f32
    %387 = vector.broadcast %cst_53 : f32 to vector<2x192xf32>
    %388 = arith.addf %387, %386 : vector<2x192xf32>
    %389 = arith.divf %387, %388 : vector<2x192xf32>
    %390 = vector.extract_strided_slice %383 {offsets = [0, 192], sizes = [2, 64], strides = [1, 1]} : vector<2x256xf32> to vector<2x64xf32>
    %391 = math.tanh %390 : vector<2x64xf32>
    %392 = vector.extract_strided_slice %389 {offsets = [0, 0], sizes = [2, 64], strides = [1, 1]} : vector<2x192xf32> to vector<2x64xf32>
    %393 = vector.extract_strided_slice %389 {offsets = [0, 64], sizes = [2, 64], strides = [1, 1]} : vector<2x192xf32> to vector<2x64xf32>
    %394 = vector.extract_strided_slice %389 {offsets = [0, 128], sizes = [2, 64], strides = [1, 1]} : vector<2x192xf32> to vector<2x64xf32>
    %395 = arith.mulf %393, %336 : vector<2x64xf32>
    %396 = arith.mulf %392, %391 : vector<2x64xf32>
    %397 = arith.addf %395, %396 : vector<2x64xf32>
    %398 = math.tanh %397 : vector<2x64xf32>
    %399 = arith.mulf %394, %398 : vector<2x64xf32>
    %400 = tpu.concatenate %338, %358 in 1 : vector<2x64xf32>, vector<2x64xf32> -> vector<2x128xf32>
    %cst_54 = arith.constant dense<0.000000e+00> : vector<2x256xf32>
    %401 = tpu.matmul %400, %7, %cst_54 {dimension_numbers = #tpu.dot_dimension_numbers<[1], [0], [0], [1], [0, 0, 1, 1], [], []>} : vector<2x128xf32>, vector<128x256xf32>, vector<2x256xf32> -> vector<2x256xf32>
    %402 = vector.broadcast %9 : vector<1x256xf32> to vector<2x256xf32>
    %403 = arith.addf %401, %402 : vector<2x256xf32>
    %404 = vector.extract_strided_slice %403 {offsets = [0, 0], sizes = [2, 192], strides = [1, 1]} : vector<2x256xf32> to vector<2x192xf32>
    %405 = arith.negf %404 : vector<2x192xf32>
    %406 = math.exp %405 : vector<2x192xf32>
    %cst_55 = arith.constant 1.000000e+00 : f32
    %407 = vector.broadcast %cst_55 : f32 to vector<2x192xf32>
    %408 = arith.addf %407, %406 : vector<2x192xf32>
    %409 = arith.divf %407, %408 : vector<2x192xf32>
    %410 = vector.extract_strided_slice %403 {offsets = [0, 192], sizes = [2, 64], strides = [1, 1]} : vector<2x256xf32> to vector<2x64xf32>
    %411 = math.tanh %410 : vector<2x64xf32>
    %412 = vector.extract_strided_slice %409 {offsets = [0, 0], sizes = [2, 64], strides = [1, 1]} : vector<2x192xf32> to vector<2x64xf32>
    %413 = vector.extract_strided_slice %409 {offsets = [0, 64], sizes = [2, 64], strides = [1, 1]} : vector<2x192xf32> to vector<2x64xf32>
    %414 = vector.extract_strided_slice %409 {offsets = [0, 128], sizes = [2, 64], strides = [1, 1]} : vector<2x192xf32> to vector<2x64xf32>
    %415 = arith.mulf %413, %356 : vector<2x64xf32>
    %416 = arith.mulf %412, %411 : vector<2x64xf32>
    %417 = arith.addf %415, %416 : vector<2x64xf32>
    %418 = math.tanh %417 : vector<2x64xf32>
    %419 = arith.mulf %414, %418 : vector<2x64xf32>
    %420 = tpu.concatenate %358, %378 in 1 : vector<2x64xf32>, vector<2x64xf32> -> vector<2x128xf32>
    %cst_56 = arith.constant dense<0.000000e+00> : vector<2x256xf32>
    %421 = tpu.matmul %420, %8, %cst_56 {dimension_numbers = #tpu.dot_dimension_numbers<[1], [0], [0], [1], [0, 0, 1, 1], [], []>} : vector<2x128xf32>, vector<128x256xf32>, vector<2x256xf32> -> vector<2x256xf32>
    %422 = vector.broadcast %10 : vector<1x256xf32> to vector<2x256xf32>
    %423 = arith.addf %421, %422 : vector<2x256xf32>
    %424 = vector.extract_strided_slice %423 {offsets = [0, 0], sizes = [2, 192], strides = [1, 1]} : vector<2x256xf32> to vector<2x192xf32>
    %425 = arith.negf %424 : vector<2x192xf32>
    %426 = math.exp %425 : vector<2x192xf32>
    %cst_57 = arith.constant 1.000000e+00 : f32
    %427 = vector.broadcast %cst_57 : f32 to vector<2x192xf32>
    %428 = arith.addf %427, %426 : vector<2x192xf32>
    %429 = arith.divf %427, %428 : vector<2x192xf32>
    %430 = vector.extract_strided_slice %423 {offsets = [0, 192], sizes = [2, 64], strides = [1, 1]} : vector<2x256xf32> to vector<2x64xf32>
    %431 = math.tanh %430 : vector<2x64xf32>
    %432 = vector.extract_strided_slice %429 {offsets = [0, 0], sizes = [2, 64], strides = [1, 1]} : vector<2x192xf32> to vector<2x64xf32>
    %433 = vector.extract_strided_slice %429 {offsets = [0, 64], sizes = [2, 64], strides = [1, 1]} : vector<2x192xf32> to vector<2x64xf32>
    %434 = vector.extract_strided_slice %429 {offsets = [0, 128], sizes = [2, 64], strides = [1, 1]} : vector<2x192xf32> to vector<2x64xf32>
    %435 = arith.mulf %433, %376 : vector<2x64xf32>
    %436 = arith.mulf %432, %431 : vector<2x64xf32>
    %437 = arith.addf %435, %436 : vector<2x64xf32>
    %438 = math.tanh %437 : vector<2x64xf32>
    %439 = arith.mulf %434, %438 : vector<2x64xf32>
    %440 = tpu.concatenate %399, %419 in 1 : vector<2x64xf32>, vector<2x64xf32> -> vector<2x128xf32>
    %cst_58 = arith.constant dense<0.000000e+00> : vector<2x256xf32>
    %441 = tpu.matmul %440, %7, %cst_58 {dimension_numbers = #tpu.dot_dimension_numbers<[1], [0], [0], [1], [0, 0, 1, 1], [], []>} : vector<2x128xf32>, vector<128x256xf32>, vector<2x256xf32> -> vector<2x256xf32>
    %442 = vector.broadcast %9 : vector<1x256xf32> to vector<2x256xf32>
    %443 = arith.addf %441, %442 : vector<2x256xf32>
    %444 = vector.extract_strided_slice %443 {offsets = [0, 0], sizes = [2, 192], strides = [1, 1]} : vector<2x256xf32> to vector<2x192xf32>
    %445 = arith.negf %444 : vector<2x192xf32>
    %446 = math.exp %445 : vector<2x192xf32>
    %cst_59 = arith.constant 1.000000e+00 : f32
    %447 = vector.broadcast %cst_59 : f32 to vector<2x192xf32>
    %448 = arith.addf %447, %446 : vector<2x192xf32>
    %449 = arith.divf %447, %448 : vector<2x192xf32>
    %450 = vector.extract_strided_slice %443 {offsets = [0, 192], sizes = [2, 64], strides = [1, 1]} : vector<2x256xf32> to vector<2x64xf32>
    %451 = math.tanh %450 : vector<2x64xf32>
    %452 = vector.extract_strided_slice %449 {offsets = [0, 0], sizes = [2, 64], strides = [1, 1]} : vector<2x192xf32> to vector<2x64xf32>
    %453 = vector.extract_strided_slice %449 {offsets = [0, 64], sizes = [2, 64], strides = [1, 1]} : vector<2x192xf32> to vector<2x64xf32>
    %454 = vector.extract_strided_slice %449 {offsets = [0, 128], sizes = [2, 64], strides = [1, 1]} : vector<2x192xf32> to vector<2x64xf32>
    %455 = arith.mulf %453, %417 : vector<2x64xf32>
    %456 = arith.mulf %452, %451 : vector<2x64xf32>
    %457 = arith.addf %455, %456 : vector<2x64xf32>
    %458 = math.tanh %457 : vector<2x64xf32>
    %459 = arith.mulf %454, %458 : vector<2x64xf32>
    %460 = tpu.concatenate %419, %439 in 1 : vector<2x64xf32>, vector<2x64xf32> -> vector<2x128xf32>
    %cst_60 = arith.constant dense<0.000000e+00> : vector<2x256xf32>
    %461 = tpu.matmul %460, %8, %cst_60 {dimension_numbers = #tpu.dot_dimension_numbers<[1], [0], [0], [1], [0, 0, 1, 1], [], []>} : vector<2x128xf32>, vector<128x256xf32>, vector<2x256xf32> -> vector<2x256xf32>
    %462 = vector.broadcast %10 : vector<1x256xf32> to vector<2x256xf32>
    %463 = arith.addf %461, %462 : vector<2x256xf32>
    %464 = vector.extract_strided_slice %463 {offsets = [0, 0], sizes = [2, 192], strides = [1, 1]} : vector<2x256xf32> to vector<2x192xf32>
    %465 = arith.negf %464 : vector<2x192xf32>
    %466 = math.exp %465 : vector<2x192xf32>
    %cst_61 = arith.constant 1.000000e+00 : f32
    %467 = vector.broadcast %cst_61 : f32 to vector<2x192xf32>
    %468 = arith.addf %467, %466 : vector<2x192xf32>
    %469 = arith.divf %467, %468 : vector<2x192xf32>
    %470 = vector.extract_strided_slice %463 {offsets = [0, 192], sizes = [2, 64], strides = [1, 1]} : vector<2x256xf32> to vector<2x64xf32>
    %471 = math.tanh %470 : vector<2x64xf32>
    %472 = vector.extract_strided_slice %469 {offsets = [0, 0], sizes = [2, 64], strides = [1, 1]} : vector<2x192xf32> to vector<2x64xf32>
    %473 = vector.extract_strided_slice %469 {offsets = [0, 64], sizes = [2, 64], strides = [1, 1]} : vector<2x192xf32> to vector<2x64xf32>
    %474 = vector.extract_strided_slice %469 {offsets = [0, 128], sizes = [2, 64], strides = [1, 1]} : vector<2x192xf32> to vector<2x64xf32>
    %475 = arith.mulf %473, %437 : vector<2x64xf32>
    %476 = arith.mulf %472, %471 : vector<2x64xf32>
    %477 = arith.addf %475, %476 : vector<2x64xf32>
    %478 = math.tanh %477 : vector<2x64xf32>
    %479 = arith.mulf %474, %478 : vector<2x64xf32>
    %480 = tpu.concatenate %459, %479 in 1 : vector<2x64xf32>, vector<2x64xf32> -> vector<2x128xf32>
    %cst_62 = arith.constant dense<0.000000e+00> : vector<2x256xf32>
    %481 = tpu.matmul %480, %8, %cst_62 {dimension_numbers = #tpu.dot_dimension_numbers<[1], [0], [0], [1], [0, 0, 1, 1], [], []>} : vector<2x128xf32>, vector<128x256xf32>, vector<2x256xf32> -> vector<2x256xf32>
    %482 = vector.broadcast %10 : vector<1x256xf32> to vector<2x256xf32>
    %483 = arith.addf %481, %482 : vector<2x256xf32>
    %484 = vector.extract_strided_slice %483 {offsets = [0, 0], sizes = [2, 192], strides = [1, 1]} : vector<2x256xf32> to vector<2x192xf32>
    %485 = arith.negf %484 : vector<2x192xf32>
    %486 = math.exp %485 : vector<2x192xf32>
    %cst_63 = arith.constant 1.000000e+00 : f32
    %487 = vector.broadcast %cst_63 : f32 to vector<2x192xf32>
    %488 = arith.addf %487, %486 : vector<2x192xf32>
    %489 = arith.divf %487, %488 : vector<2x192xf32>
    %490 = vector.extract_strided_slice %483 {offsets = [0, 192], sizes = [2, 64], strides = [1, 1]} : vector<2x256xf32> to vector<2x64xf32>
    %491 = math.tanh %490 : vector<2x64xf32>
    %492 = vector.extract_strided_slice %489 {offsets = [0, 0], sizes = [2, 64], strides = [1, 1]} : vector<2x192xf32> to vector<2x64xf32>
    %493 = vector.extract_strided_slice %489 {offsets = [0, 64], sizes = [2, 64], strides = [1, 1]} : vector<2x192xf32> to vector<2x64xf32>
    %494 = vector.extract_strided_slice %489 {offsets = [0, 128], sizes = [2, 64], strides = [1, 1]} : vector<2x192xf32> to vector<2x64xf32>
    %495 = arith.mulf %493, %477 : vector<2x64xf32>
    %496 = arith.mulf %492, %491 : vector<2x64xf32>
    %497 = arith.addf %495, %496 : vector<2x64xf32>
    %498 = math.tanh %497 : vector<2x64xf32>
    %499 = arith.mulf %494, %498 : vector<2x64xf32>
    %500 = vector.extract_strided_slice %134 {offsets = [0, 0], sizes = [1, 64], strides = [1, 1]} : vector<2x64xf32> to vector<1x64xf32>
    %501 = vector.extract_strided_slice %195 {offsets = [0, 0], sizes = [1, 64], strides = [1, 1]} : vector<2x64xf32> to vector<1x64xf32>
    %502 = vector.extract_strided_slice %256 {offsets = [0, 0], sizes = [1, 64], strides = [1, 1]} : vector<2x64xf32> to vector<1x64xf32>
    %503 = vector.extract_strided_slice %317 {offsets = [0, 0], sizes = [1, 64], strides = [1, 1]} : vector<2x64xf32> to vector<1x64xf32>
    %504 = vector.extract_strided_slice %378 {offsets = [0, 0], sizes = [1, 64], strides = [1, 1]} : vector<2x64xf32> to vector<1x64xf32>
    %505 = vector.extract_strided_slice %439 {offsets = [0, 0], sizes = [1, 64], strides = [1, 1]} : vector<2x64xf32> to vector<1x64xf32>
    %506 = vector.extract_strided_slice %479 {offsets = [0, 0], sizes = [1, 64], strides = [1, 1]} : vector<2x64xf32> to vector<1x64xf32>
    %507 = vector.extract_strided_slice %499 {offsets = [0, 0], sizes = [1, 64], strides = [1, 1]} : vector<2x64xf32> to vector<1x64xf32>
    %508 = vector.extract_strided_slice %134 {offsets = [1, 0], sizes = [1, 64], strides = [1, 1]} : vector<2x64xf32> to vector<1x64xf32>
    %509 = vector.extract_strided_slice %195 {offsets = [1, 0], sizes = [1, 64], strides = [1, 1]} : vector<2x64xf32> to vector<1x64xf32>
    %510 = vector.extract_strided_slice %256 {offsets = [1, 0], sizes = [1, 64], strides = [1, 1]} : vector<2x64xf32> to vector<1x64xf32>
    %511 = vector.extract_strided_slice %317 {offsets = [1, 0], sizes = [1, 64], strides = [1, 1]} : vector<2x64xf32> to vector<1x64xf32>
    %512 = vector.extract_strided_slice %378 {offsets = [1, 0], sizes = [1, 64], strides = [1, 1]} : vector<2x64xf32> to vector<1x64xf32>
    %513 = vector.extract_strided_slice %439 {offsets = [1, 0], sizes = [1, 64], strides = [1, 1]} : vector<2x64xf32> to vector<1x64xf32>
    %514 = vector.extract_strided_slice %479 {offsets = [1, 0], sizes = [1, 64], strides = [1, 1]} : vector<2x64xf32> to vector<1x64xf32>
    %515 = vector.extract_strided_slice %499 {offsets = [1, 0], sizes = [1, 64], strides = [1, 1]} : vector<2x64xf32> to vector<1x64xf32>
    %516 = tpu.concatenate %500, %501, %502, %503, %504, %505, %506, %507, %508, %509, %510, %511, %512, %513, %514, %515 in 0 : vector<1x64xf32>, vector<1x64xf32>, vector<1x64xf32>, vector<1x64xf32>, vector<1x64xf32>, vector<1x64xf32>, vector<1x64xf32>, vector<1x64xf32>, vector<1x64xf32>, vector<1x64xf32>, vector<1x64xf32>, vector<1x64xf32>, vector<1x64xf32>, vector<1x64xf32>, vector<1x64xf32>, vector<1x64xf32> -> vector<16x64xf32>
    %c0_64 = arith.constant 0 : index
    %c0_65 = arith.constant 0 : index
    %517 = vector.load %arg8[%c0_64, %c0_65] : memref<1x64xf32, #tpu.memory_space<vmem>>, vector<1x64xf32>
    %518 = vector.broadcast %517 : vector<1x64xf32> to vector<16x64xf32>
    %519 = arith.mulf %516, %518 : vector<16x64xf32>
    %cst_66 = arith.constant dense<0.000000e+00> : vector<16xf32>
    %520 = vector.multi_reduction <add>, %519, %cst_66 [1] : vector<16x64xf32> to vector<16xf32>
    %521 = vector.shape_cast %520 : vector<16xf32> to vector<16x1xf32>
    %c0_67 = arith.constant 0 : index
    %c0_68 = arith.constant 0 : index
    %522 = vector.load %arg9[%c0_67, %c0_68] : memref<1x1xf32, #tpu.memory_space<vmem>>, vector<1x1xf32>
    %523 = vector.broadcast %522 : vector<1x1xf32> to vector<16x1xf32>
    %524 = arith.addf %521, %523 : vector<16x1xf32>
    %c0_69 = arith.constant 0 : index
    %c0_70 = arith.constant 0 : index
    %525 = vector.load %arg10[%c0_69, %c0_70] : memref<16x1xf32, #tpu.memory_space<vmem>>, vector<16x1xf32>
    tpu.vector_store %arg10[%c0_69, %c0_70], %524 {strides = array<i32>} : memref<16x1xf32, #tpu.memory_space<vmem>>, vector<16x1xf32>,
    return
  }
}

</mosaic_0001>

<llo_original>
// kernel: _forward_impl.1
$region0: #{_forward_impl.1}
  #allocation0 [shape = 'u32[]', space=smem, size = 0x4, offset = 0x4, fixed_abs, tag = 'smem constant byte address 0x4 - core index']
  #allocation1 [shape = 'u32[144,128]{1,0:T(1,128)}', space=vmem, size = 0x12000, scoped, tag = 'internal scratch']
  #allocation2 [shape = 'f32[1,1]{1,0:T(1,128)S(1)}', space=vmem, size = 0x200, scoped, tag = 'scoped memory for _forward_impl.1']
  %s0 = inlined_call_operand.vmem [shape: f32[16,18], index: 0, kind: input, shape index: {}]
  %s1 = inlined_call_operand.hbm [shape: f32[18,256], index: 1, kind: input, shape index: {}]
  %s2 = inlined_call_operand.hbm [shape: f32[64,256], index: 2, kind: input, shape index: {}]
  %s3 = inlined_call_operand.vmem [shape: f32[1,256], index: 3, kind: input, shape index: {}]
  %s4 = inlined_call_operand.hbm [shape: f32[128,256], index: 4, kind: input, shape index: {}]
  %s5 = inlined_call_operand.vmem [shape: f32[1,256], index: 5, kind: input, shape index: {}]
  %s6 = inlined_call_operand.hbm [shape: f32[128,256], index: 6, kind: input, shape index: {}]
  %s7 = inlined_call_operand.vmem [shape: f32[1,256], index: 7, kind: input, shape index: {}]
  %s8 = inlined_call_operand.vmem [shape: f32[1,64], index: 8, kind: input, shape index: {}]
  %s9 = inlined_call_operand.<no memory space> [shape: f32[1,1], index: 9, kind: input, shape index: {}]
  %s10 = inlined_call_operand.vmem [shape: f32[16,1], index: 10, kind: output, shape index: {}]
  %s11 = sld [smem:[#allocation0]]
  $region66: #{_forward_impl.1} parent=0
    _
  %s13 = ssub.s32 1, %s11
  %s14 = scalar_select 0, %s13, %s11
  %v15 = vstv %s9
  %16 = vst [vmem:[#allocation2] sm:$0x1] %v15
  $region1: #{_forward_impl.1} parent=0
    #allocation3 [shape = 'u8[24576]{0}', space=vmem, size = 0x6000, scoped, tag = 'input window, operand 1, single buffered']
    #allocation4 [shape = 's32[1]{0}', space=sflag, size = 0x4, scoped, tag = 'scoped memory for _forward_impl.1']
    #allocation5 [shape = 'u8[65536]{0}', space=vmem, size = 0x10000, scoped, tag = 'input window, operand 2, single buffered']
    #allocation6 [shape = 's32[1]{0}', space=sflag, size = 0x4, scoped, tag = 'scoped memory for _forward_impl.1']
    #allocation7 [shape = 'u8[131072]{0}', space=vmem, size = 0x20000, scoped, tag = 'input window, operand 4, single buffered']
    #allocation8 [shape = 'u8[131072]{0}', space=vmem, size = 0x20000, scoped, tag = 'input window, operand 6, single buffered']
    #allocation9 [shape = 's32[1]{0}', space=sflag, size = 0x4, scoped, tag = 'scoped memory for _forward_impl.1']
    %17 = vsyncpa [#allocation4], 0
    %18 = vsyncpa [#allocation6], 0
    %19 = vsyncpa [#allocation9], 0
    // Predicated region
    $region2: #{_forward_impl.1} parent=1 // pred_check
      _
    $region3: #{_forward_impl.1} parent=1 // pred_check_branch
      %21 = sbr.rel (0) target = $region5
    $region4: #{_forward_impl.1} parent=1 // pred_region
      _
    $region5: #{_forward_impl.1} parent=1 // pred_fallthru
      _
    // Predicated region
    $region6: #{_forward_impl.1} parent=1 // pred_check
      _
    $region7: #{_forward_impl.1} parent=1 // pred_check_branch
      %23 = sbr.rel (0) target = $region9
    $region8: #{_forward_impl.1} parent=1 // pred_region
      %s25 = ssub.s32 768, 768
      %26 = vsyncadd [#allocation4], %s25
      %s27 = sshll.u32 [#allocation3], 4
      %s28 = int_to_ptr.vmem [resolvable:$true] %s27
      %33 = dma.hbm_to_vmem [thread:$0]  %s1, 768, %s28, [#allocation4], 256, 256, 16
    $region9: #{_forward_impl.1} parent=1 // pred_fallthru
      _
    // Predicated region
    $region10: #{_forward_impl.1} parent=1 // pred_check
      _
    $region11: #{_forward_impl.1} parent=1 // pred_check_branch
      %35 = sbr.rel (0) target = $region13
    $region12: #{_forward_impl.1} parent=1 // pred_region
      %s37 = ssub.s32 2048, 2048
      %38 = vsyncadd [#allocation6], %s37
      %s39 = sshll.u32 [#allocation5], 4
      %s40 = int_to_ptr.vmem [resolvable:$true] %s39
      %45 = dma.hbm_to_vmem [thread:$0]  %s2, 2048, %s40, [#allocation6], 256, 256, 16
    $region13: #{_forward_impl.1} parent=1 // pred_fallthru
      _
    // Predicated region
    $region14: #{_forward_impl.1} parent=1 // pred_check
      _
    $region15: #{_forward_impl.1} parent=1 // pred_check_branch
      %47 = sbr.rel (0) target = $region17
    $region16: #{_forward_impl.1} parent=1 // pred_region
      _
    $region17: #{_forward_impl.1} parent=1 // pred_fallthru
      _
    // Predicated region
    $region18: #{_forward_impl.1} parent=1 // pred_check
      _
    $region19: #{_forward_impl.1} parent=1 // pred_check_branch
      %49 = sbr.rel (0) target = $region21
    $region20: #{_forward_impl.1} parent=1 // pred_region
      %s51 = ssub.s32 4096, 4096
      %52 = vsyncadd [#allocation6], %s51
      %s53 = sshll.u32 [#allocation7], 4
      %s54 = int_to_ptr.vmem [resolvable:$true] %s53
      %59 = dma.hbm_to_vmem [thread:$0]  %s4, 4096, %s54, [#allocation6], 256, 256, 16
    $region21: #{_forward_impl.1} parent=1 // pred_fallthru
      _
    // Predicated region
    $region22: #{_forward_impl.1} parent=1 // pred_check
      _
    $region23: #{_forward_impl.1} parent=1 // pred_check_branch
      %61 = sbr.rel (0) target = $region25
    $region24: #{_forward_impl.1} parent=1 // pred_region
      _
    $region25: #{_forward_impl.1} parent=1 // pred_fallthru
      _
    // Predicated region
    $region26: #{_forward_impl.1} parent=1 // pred_check
      _
    $region27: #{_forward_impl.1} parent=1 // pred_check_branch
      %63 = sbr.rel (0) target = $region29
    $region28: #{_forward_impl.1} parent=1 // pred_region
      %s65 = ssub.s32 4096, 4096
      %66 = vsyncadd [#allocation9], %s65
      %s67 = sshll.u32 [#allocation8], 4
      %s68 = int_to_ptr.vmem [resolvable:$true] %s67
      %73 = dma.hbm_to_vmem [thread:$0]  %s6, 4096, %s68, [#allocation9], 256, 256, 16
    $region29: #{_forward_impl.1} parent=1 // pred_fallthru
      _
    // Predicated region
    $region30: #{_forward_impl.1} parent=1 // pred_check
      _
    $region31: #{_forward_impl.1} parent=1 // pred_check_branch
      %75 = sbr.rel (0) target = $region33
    $region32: #{_forward_impl.1} parent=1 // pred_region
      _
    $region33: #{_forward_impl.1} parent=1 // pred_fallthru
      _
    // Predicated region
    $region34: #{_forward_impl.1} parent=1 // pred_check
      _
    $region35: #{_forward_impl.1} parent=1 // pred_check_branch
      %77 = sbr.rel (0) target = $region37
    $region36: #{_forward_impl.1} parent=1 // pred_region
      _
    $region37: #{_forward_impl.1} parent=1 // pred_fallthru
      _
    // Predicated region
    $region38: #{_forward_impl.1} parent=1 // pred_check
      _
    $region39: #{_forward_impl.1} parent=1 // pred_check_branch
      %79 = sbr.rel (0) target = $region41
    $region40: #{_forward_impl.1} parent=1 // pred_region
      _
    $region41: #{_forward_impl.1} parent=1 // pred_fallthru
      _
    // Predicated region
    $region42: #{_forward_impl.1} parent=1 // pred_check
      _
    $region43: #{_forward_impl.1} parent=1 // pred_check_branch
      %81 = sbr.rel (0) target = $region45
    $region44: #{_forward_impl.1} parent=1 // pred_region
      %82 = dma.done [#allocation4], 768
    $region45: #{_forward_impl.1} parent=1 // pred_fallthru
      _
    // Predicated region
    $region46: #{_forward_impl.1} parent=1 // pred_check
      _
    $region47: #{_forward_impl.1} parent=1 // pred_check_branch
      %84 = sbr.rel (0) target = $region49
    $region48: #{_forward_impl.1} parent=1 // pred_region
      %85 = dma.done [#allocation6], 2048
    $region49: #{_forward_impl.1} parent=1 // pred_fallthru
      _
    // Predicated region
    $region50: #{_forward_impl.1} parent=1 // pred_check
      _
    $region51: #{_forward_impl.1} parent=1 // pred_check_branch
      %87 = sbr.rel (0) target = $region53
    $region52: #{_forward_impl.1} parent=1 // pred_region
      %88 = dma.done [#allocation6], 4096
    $region53: #{_forward_impl.1} parent=1 // pred_fallthru
      _
    // Predicated region
    $region54: #{_forward_impl.1} parent=1 // pred_check
      _
    $region55: #{_forward_impl.1} parent=1 // pred_check_branch
      %90 = sbr.rel (0) target = $region57
    $region56: #{_forward_impl.1} parent=1 // pred_region
      %91 = dma.done [#allocation9], 4096
    $region57: #{_forward_impl.1} parent=1 // pred_fallthru
      _
    %v92 = vld [vmem:[%s0] sm:$0xff]
    %v93 = vld [vmem:[%s0 + $0x8] sm:$0xff]
    %v94 = vld [vmem:[#allocation3] sm:$0xff]
    %v95 = vld [vmem:[#allocation3 + $0x8] sm:$0xff]
    %v96 = vld [vmem:[#allocation3 + $0x10] sm:$0xff]
    %v97 = vld [vmem:[#allocation3 + $0x18] sm:$0xff]
    %v98 = vld [vmem:[#allocation3 + $0x20] sm:$0x3]
    %v99 = vld [vmem:[#allocation3 + $0x28] sm:$0x3]
    %v100 = vld [vmem:[%s3] sm:$0x3]
    %v102 = vlaneseq
    %v103 = vshrl.u32 %v102, 7
    %v104 = vsub.s32 0, %v103
    %v105 = vrot.slane %v100, %v104
    %v106 = vlaneseq
    %v107 = vshrl.u32 %v106, 7
    %v108 = vsub.s32 1, %v107
    %v109 = vrot.slane %v100, %v108
    %vm112 = vcmask 146432
    %v114 = vsel %vm112, %v92, 0
    %v117 = vsel %vm112, %v93, 0
    %vm119 = vcmask 1041408
    %v121 = vsel %vm119, %v98, 0
    %v124 = vsel %vm119, %v99, 0
    %126 = vmatprep.subr.mxu0 %v95
    %127 = vmatpush1.msra.mxu0 %v94
    %128 = vmatprep.subr.mxu0 %v97
    %129 = vmatpush1.msra.mxu0 %v96
    %130 = vmatprep.subr.mxu0 %v124
    %131 = vmatpush1.msra.mxu0 %v121
    %132 = vmatprep.subr.mxu0 0.0
    %133 = vmatpush1.msra.mxu0 0.0
    %134 = vmatprep.subr.mxu0 0.0
    %135 = vmatpush1.msra.mxu0 0.0
    %136 = vmatprep.subr.mxu0 0.0
    %137 = vmatpush1.msra.mxu0 0.0
    %138 = vmatprep.subr.mxu0 0.0
    %139 = vmatpush1.msra.mxu0 0.0
    %140 = vmatprep.subr.mxu0 0.0
    %141 = vmatpush1.msra.mxu0 0.0
    %142 = vmatprep.subr.mxu0 0.0
    %143 = vmatpush1.msra.mxu0 0.0
    %144 = vmatprep.subr.mxu0 0.0
    %145 = vmatpush1.msra.mxu0 0.0
    %146 = vmatprep.subr.mxu0 0.0
    %147 = vmatpush1.msra.mxu0 0.0
    %148 = vmatprep.subr.mxu0 0.0
    %149 = vmatpush1.msra.mxu0 0.0
    %150 = vmatprep.subr.mxu0 0.0
    %151 = vmatpush1.msra.mxu0 0.0
    %152 = vmatprep.subr.mxu0 0.0
    %153 = vmatpush1.msra.mxu0 0.0
    %154 = vmatprep.subr.mxu0 0.0
    %155 = vmatpush1.msra.mxu0 0.0
    %156 = vmatprep.subr.mxu0 0.0
    %157 = vmatpush1.msra.mxu0 0.0
    %158 = vmatprep.subr.mxu0 0.0
    %159 = vmatpush1.msra.mxu0 0.0
    %160 = vmatprep.subr.mxu0 0.0
    %161 = vmatpush1.msra.mxu0 0.0
    %162 = vmatprep.subr.mxu0 0.0
    %163 = vmatpush1.msra.mxu0 0.0
    %164 = vmatprep.subr.mxu0 0.0
    %165 = vmatpush1.msra.mxu0 0.0
    %166 = vmatprep.subr.mxu0 0.0
    %167 = vmatpush1.msra.mxu0 0.0
    %168 = vmatprep.subr.mxu0 0.0
    %169 = vmatpush1.msra.mxu0 0.0
    %170 = vmatprep.subr.mxu0 0.0
    %171 = vmatpush1.msra.mxu0 0.0
    %172 = vmatprep.subr.mxu0 0.0
    %173 = vmatpush1.msra.mxu0 0.0
    %174 = vmatprep.subr.mxu0 0.0
    %175 = vmatpush1.msra.mxu0 0.0
    %176 = vmatprep.subr.mxu0 0.0
    %177 = vmatpush1.msra.mxu0 0.0
    %178 = vmatprep.subr.mxu0 0.0
    %179 = vmatpush1.msra.mxu0 0.0
    %180 = vmatprep.subr.mxu0 0.0
    %181 = vmatpush1.msra.mxu0 0.0
    %182 = vmatprep.subr.mxu0 0.0
    %183 = vmatpush1.msra.mxu0 0.0
    %184 = vmatprep.subr.mxu0 0.0
    %185 = vmatpush1.msra.mxu0 0.0
    %186 = vmatprep.subr.mxu0 0.0
    %187 = vmatpush1.msra.mxu0 0.0
    %188 = vmatprep.subr.mxu0 0.0
    %189 = vmatpush1.msra.mxu0 0.0
    %190 = vmatprep.mubr.f32.mxu0 0.0
    %191 = vmatmul.mubr.f32.gmra.mrb[0].mxu0 %v114
    %v192 = vpop.f32.mrb[0].mxu0
    %v193 = vadd.f32 %v105, %v192
    %v194 = vpop.f32.mrb[0].mxu0
    %v195 = vadd.f32 %v109, %v194
    %196 = vmatprep.mubr.f32.mxu0 0.0
    %197 = vmatmul.mubr.f32.gmra.mrb[0].mxu0 %v117
    %v198 = vpop.f32.mrb[0].mxu0
    %v199 = vadd.f32 %v105, %v198
    %v200 = vpop.f32.mrb[0].mxu0
    %v201 = vadd.f32 %v109, %v200
    %202 = vdwg.mxu0
    %v203 = vld [vmem:[#allocation5] sm:$0xff]
    %v204 = vld [vmem:[#allocation5 + $0x8] sm:$0xff]
    %v205 = vld [vmem:[#allocation5 + $0x10] sm:$0xff]
    %v206 = vld [vmem:[#allocation5 + $0x18] sm:$0xff]
    %v207 = vld [vmem:[#allocation5 + $0x20] sm:$0xff]
    %v208 = vld [vmem:[#allocation5 + $0x28] sm:$0xff]
    %v209 = vld [vmem:[#allocation5 + $0x30] sm:$0xff]
    %v210 = vld [vmem:[#allocation5 + $0x38] sm:$0xff]
    %v211 = vld [vmem:[#allocation5 + $0x40] sm:$0xff]
    %v212 = vld [vmem:[#allocation5 + $0x48] sm:$0xff]
    %v213 = vld [vmem:[#allocation5 + $0x50] sm:$0xff]
    %v214 = vld [vmem:[#allocation5 + $0x58] sm:$0xff]
    %v215 = vld [vmem:[#allocation5 + $0x60] sm:$0xff]
    %v216 = vld [vmem:[#allocation5 + $0x68] sm:$0xff]
    %v217 = vld [vmem:[#allocation5 + $0x70] sm:$0xff]
    %v218 = vld [vmem:[#allocation5 + $0x78] sm:$0xff]
    %v219 = vld [vmem:[#allocation7] sm:$0xff]
    %v220 = vld [vmem:[#allocation7 + $0x8] sm:$0xff]
    %v221 = vld [vmem:[#allocation7 + $0x10] sm:$0xff]
    %v222 = vld [vmem:[#allocation7 + $0x18] sm:$0xff]
    %v223 = vld [vmem:[#allocation7 + $0x20] sm:$0xff]
    %v224 = vld [vmem:[#allocation7 + $0x28] sm:$0xff]
    %v225 = vld [vmem:[#allocation7 + $0x30] sm:$0xff]
    %v226 = vld [vmem:[#allocation7 + $0x38] sm:$0xff]
    %v227 = vld [vmem:[#allocation7 + $0x40] sm:$0xff]
    %v228 = vld [vmem:[#allocation7 + $0x48] sm:$0xff]
    %v229 = vld [vmem:[#allocation7 + $0x50] sm:$0xff]
    %v230 = vld [vmem:[#allocation7 + $0x58] sm:$0xff]
    %v231 = vld [vmem:[#allocation7 + $0x60] sm:$0xff]
    %v232 = vld [vmem:[#allocation7 + $0x68] sm:$0xff]
    %v233 = vld [vmem:[#allocation7 + $0x70] sm:$0xff]
    %v234 = vld [vmem:[#allocation7 + $0x78] sm:$0xff]
    %v235 = vld [vmem:[#allocation7 + $0x80] sm:$0xff]
    %v236 = vld [vmem:[#allocation7 + $0x88] sm:$0xff]
    %v237 = vld [vmem:[#allocation7 + $0x90] sm:$0xff]
    %v238 = vld [vmem:[#allocation7 + $0x98] sm:$0xff]
    %v239 = vld [vmem:[#allocation7 + $0xa0] sm:$0xff]
    %v240 = vld [vmem:[#allocation7 + $0xa8] sm:$0xff]
    %v241 = vld [vmem:[#allocation7 + $0xb0] sm:$0xff]
    %v242 = vld [vmem:[#allocation7 + $0xb8] sm:$0xff]
    %v243 = vld [vmem:[#allocation7 + $0xc0] sm:$0xff]
    %v244 = vld [vmem:[#allocation7 + $0xc8] sm:$0xff]
    %v245 = vld [vmem:[#allocation7 + $0xd0] sm:$0xff]
    %v246 = vld [vmem:[#allocation7 + $0xd8] sm:$0xff]
    %v247 = vld [vmem:[#allocation7 + $0xe0] sm:$0xff]
    %v248 = vld [vmem:[#allocation7 + $0xe8] sm:$0xff]
    %v249 = vld [vmem:[#allocation7 + $0xf0] sm:$0xff]
    %v250 = vld [vmem:[#allocation7 + $0xf8] sm:$0xff]
    %v251 = vld [vmem:[#allocation8] sm:$0xff]
    %v252 = vld [vmem:[#allocation8 + $0x8] sm:$0xff]
    %v253 = vld [vmem:[#allocation8 + $0x10] sm:$0xff]
    %v254 = vld [vmem:[#allocation8 + $0x18] sm:$0xff]
    %v255 = vld [vmem:[#allocation8 + $0x20] sm:$0xff]
    %v256 = vld [vmem:[#allocation8 + $0x28] sm:$0xff]
    %v257 = vld [vmem:[#allocation8 + $0x30] sm:$0xff]
    %v258 = vld [vmem:[#allocation8 + $0x38] sm:$0xff]
    %v259 = vld [vmem:[#allocation8 + $0x40] sm:$0xff]
    %v260 = vld [vmem:[#allocation8 + $0x48] sm:$0xff]
    %v261 = vld [vmem:[#allocation8 + $0x50] sm:$0xff]
    %v262 = vld [vmem:[#allocation8 + $0x58] sm:$0xff]
    %v263 = vld [vmem:[#allocation8 + $0x60] sm:$0xff]
    %v264 = vld [vmem:[#allocation8 + $0x68] sm:$0xff]
    %v265 = vld [vmem:[#allocation8 + $0x70] sm:$0xff]
    %v266 = vld [vmem:[#allocation8 + $0x78] sm:$0xff]
    %v267 = vld [vmem:[#allocation8 + $0x80] sm:$0xff]
    %v268 = vld [vmem:[#allocation8 + $0x88] sm:$0xff]
    %v269 = vld [vmem:[#allocation8 + $0x90] sm:$0xff]
    %v270 = vld [vmem:[#allocation8 + $0x98] sm:$0xff]
    %v271 = vld [vmem:[#allocation8 + $0xa0] sm:$0xff]
    %v272 = vld [vmem:[#allocation8 + $0xa8] sm:$0xff]
    %v273 = vld [vmem:[#allocation8 + $0xb0] sm:$0xff]
    %v274 = vld [vmem:[#allocation8 + $0xb8] sm:$0xff]
    %v275 = vld [vmem:[#allocation8 + $0xc0] sm:$0xff]
    %v276 = vld [vmem:[#allocation8 + $0xc8] sm:$0xff]
    %v277 = vld [vmem:[#allocation8 + $0xd0] sm:$0xff]
    %v278 = vld [vmem:[#allocation8 + $0xd8] sm:$0xff]
    %v279 = vld [vmem:[#allocation8 + $0xe0] sm:$0xff]
    %v280 = vld [vmem:[#allocation8 + $0xe8] sm:$0xff]
    %v281 = vld [vmem:[#allocation8 + $0xf0] sm:$0xff]
    %v282 = vld [vmem:[#allocation8 + $0xf8] sm:$0xff]
    %v283 = vld [vmem:[%s5] sm:$0x3]
    %v284 = vld [vmem:[%s7] sm:$0x3]
    %v287 = vrot.slane %v199, 7
    %v288 = vrot.slane %v201, 7
    %vm291 = vcmask 1040384
    %v292 = vsel %vm291, %v193, %v287
    %v293 = vsel %vm291, %v195, %v288
    %vm294 = vcmask 523264
    %v296 = vsel %vm294, 0.0, 0
    %298 = vmatprep.subr.mxu0 %v204
    %299 = vmatpush1.msra.mxu0 %v203
    %300 = vmatprep.subr.mxu0 %v206
    %301 = vmatpush1.msra.mxu0 %v205
    %302 = vmatprep.subr.mxu0 %v208
    %303 = vmatpush1.msra.mxu0 %v207
    %304 = vmatprep.subr.mxu0 %v210
    %305 = vmatpush1.msra.mxu0 %v209
    %306 = vmatprep.subr.mxu0 %v212
    %307 = vmatpush1.msra.mxu0 %v211
    %308 = vmatprep.subr.mxu0 %v214
    %309 = vmatpush1.msra.mxu0 %v213
    %310 = vmatprep.subr.mxu0 %v216
    %311 = vmatpush1.msra.mxu0 %v215
    %312 = vmatprep.subr.mxu0 %v218
    %313 = vmatpush1.msra.mxu0 %v217
    %314 = vmatprep.subr.mxu0 0.0
    %315 = vmatpush1.msra.mxu0 0.0
    %316 = vmatprep.subr.mxu0 0.0
    %317 = vmatpush1.msra.mxu0 0.0
    %318 = vmatprep.subr.mxu0 0.0
    %319 = vmatpush1.msra.mxu0 0.0
    %320 = vmatprep.subr.mxu0 0.0
    %321 = vmatpush1.msra.mxu0 0.0
    %322 = vmatprep.subr.mxu0 0.0
    %323 = vmatpush1.msra.mxu0 0.0
    %324 = vmatprep.subr.mxu0 0.0
    %325 = vmatpush1.msra.mxu0 0.0
    %326 = vmatprep.subr.mxu0 0.0
    %327 = vmatpush1.msra.mxu0 0.0
    %328 = vmatprep.subr.mxu0 0.0
    %329 = vmatpush1.msra.mxu0 0.0
    %330 = vmatprep.subr.mxu0 0.0
    %331 = vmatpush1.msra.mxu0 0.0
    %332 = vmatprep.subr.mxu0 0.0
    %333 = vmatpush1.msra.mxu0 0.0
    %334 = vmatprep.subr.mxu0 0.0
    %335 = vmatpush1.msra.mxu0 0.0
    %336 = vmatprep.subr.mxu0 0.0
    %337 = vmatpush1.msra.mxu0 0.0
    %338 = vmatprep.subr.mxu0 0.0
    %339 = vmatpush1.msra.mxu0 0.0
    %340 = vmatprep.subr.mxu0 0.0
    %341 = vmatpush1.msra.mxu0 0.0
    %342 = vmatprep.subr.mxu0 0.0
    %343 = vmatpush1.msra.mxu0 0.0
    %344 = vmatprep.subr.mxu0 0.0
    %345 = vmatpush1.msra.mxu0 0.0
    %346 = vmatprep.subr.mxu0 0.0
    %347 = vmatpush1.msra.mxu0 0.0
    %348 = vmatprep.subr.mxu0 0.0
    %349 = vmatpush1.msra.mxu0 0.0
    %350 = vmatprep.subr.mxu0 0.0
    %351 = vmatpush1.msra.mxu0 0.0
    %352 = vmatprep.subr.mxu0 0.0
    %353 = vmatpush1.msra.mxu0 0.0
    %354 = vmatprep.subr.mxu0 0.0
    %355 = vmatpush1.msra.mxu0 0.0
    %356 = vmatprep.subr.mxu0 0.0
    %357 = vmatpush1.msra.mxu0 0.0
    %358 = vmatprep.subr.mxu0 0.0
    %359 = vmatpush1.msra.mxu0 0.0
    %360 = vmatprep.subr.mxu0 0.0
    %361 = vmatpush1.msra.mxu0 0.0
    %362 = vmatprep.mubr.f32.mxu0 0.0
    %363 = vmatmul.mubr.f32.gmra.mrb[0].mxu0 %v296
    %v364 = vpop.f32.mrb[0].mxu0
    %v365 = vadd.f32 0.0, %v364
    %v366 = vpop.f32.mrb[0].mxu0
    %v367 = vadd.f32 0.0, %v366
    %368 = vdwg.mxu0
    %v369 = vadd.f32 %v292, %v365
    %v370 = vadd.f32 %v293, %v367
    %v371 = vxor.u32 %v369, 2147483648
    %v372 = vxor.u32 %v370, 2147483648
    %v373 = vmul.f32 %v371, 1.442695
    %v374 = vpow.pop %v373
    %v375 = vmul.f32 %v372, 1.442695
    %v376 = vpow.pop %v375
    %v377 = vadd.f32 %v374, 1.0
    %v378 = vadd.f32 %v376, 1.0
    %v379 = vrcp.pop %v377
    %v380 = vmul.f32 1.0, %v379
    %v381 = vrcp.pop %v378
    %v382 = vmul.f32 1.0, %v381
    %v383 = vtanh.pop %v370
    %v384 = vmul.f32 %v380, 0.0
    %386 = vrot.lane.b32.xlu0 %v383, 64
    %v387 = vpop.permute.xlu0 %386
    %v389 = vmul.f32 %v380, %v387
    %391 = vrot.lane.b32.xlu0 %v389, 64
    %v392 = vpop.permute.xlu0 %391
    %v394 = vadd.f32 %v384, %v392
    %v395 = vtanh.pop %v394
    %397 = vrot.lane.b32.xlu0 %v395, 64
    %v398 = vpop.permute.xlu0 %397
    %v400 = vmul.f32 %v382, %v398
    %v403 = vrot.slane %v193, 1
    %v404 = vrot.slane %v195, 1
    %v407 = vsel %vm291, %v403, %v199
    %v408 = vsel %vm291, %v404, %v201
    %v410 = vsel %vm294, %v400, 0
    %412 = vmatprep.subr.mxu0 %v204
    %413 = vmatpush1.msra.mxu0 %v203
    %414 = vmatprep.subr.mxu0 %v206
    %415 = vmatpush1.msra.mxu0 %v205
    %416 = vmatprep.subr.mxu0 %v208
    %417 = vmatpush1.msra.mxu0 %v207
    %418 = vmatprep.subr.mxu0 %v210
    %419 = vmatpush1.msra.mxu0 %v209
    %420 = vmatprep.subr.mxu0 %v212
    %421 = vmatpush1.msra.mxu0 %v211
    %422 = vmatprep.subr.mxu0 %v214
    %423 = vmatpush1.msra.mxu0 %v213
    %424 = vmatprep.subr.mxu0 %v216
    %425 = vmatpush1.msra.mxu0 %v215
    %426 = vmatprep.subr.mxu0 %v218
    %427 = vmatpush1.msra.mxu0 %v217
    %428 = vmatprep.subr.mxu0 0.0
    %429 = vmatpush1.msra.mxu0 0.0
    %430 = vmatprep.subr.mxu0 0.0
    %431 = vmatpush1.msra.mxu0 0.0
    %432 = vmatprep.subr.mxu0 0.0
    %433 = vmatpush1.msra.mxu0 0.0
    %434 = vmatprep.subr.mxu0 0.0
    %435 = vmatpush1.msra.mxu0 0.0
    %436 = vmatprep.subr.mxu0 0.0
    %437 = vmatpush1.msra.mxu0 0.0
    %438 = vmatprep.subr.mxu0 0.0
    %439 = vmatpush1.msra.mxu0 0.0
    %440 = vmatprep.subr.mxu0 0.0
    %441 = vmatpush1.msra.mxu0 0.0
    %442 = vmatprep.subr.mxu0 0.0
    %443 = vmatpush1.msra.mxu0 0.0
    %444 = vmatprep.subr.mxu0 0.0
    %445 = vmatpush1.msra.mxu0 0.0
    %446 = vmatprep.subr.mxu0 0.0
    %447 = vmatpush1.msra.mxu0 0.0
    %448 = vmatprep.subr.mxu0 0.0
    %449 = vmatpush1.msra.mxu0 0.0
    %450 = vmatprep.subr.mxu0 0.0
    %451 = vmatpush1.msra.mxu0 0.0
    %452 = vmatprep.subr.mxu0 0.0
    %453 = vmatpush1.msra.mxu0 0.0
    %454 = vmatprep.subr.mxu0 0.0
    %455 = vmatpush1.msra.mxu0 0.0
    %456 = vmatprep.subr.mxu0 0.0
    %457 = vmatpush1.msra.mxu0 0.0
    %458 = vmatprep.subr.mxu0 0.0
    %459 = vmatpush1.msra.mxu0 0.0
    %460 = vmatprep.subr.mxu0 0.0
    %461 = vmatpush1.msra.mxu0 0.0
    %462 = vmatprep.subr.mxu0 0.0
    %463 = vmatpush1.msra.mxu0 0.0
    %464 = vmatprep.subr.mxu0 0.0
    %465 = vmatpush1.msra.mxu0 0.0
    %466 = vmatprep.subr.mxu0 0.0
    %467 = vmatpush1.msra.mxu0 0.0
    %468 = vmatprep.subr.mxu0 0.0
    %469 = vmatpush1.msra.mxu0 0.0
    %470 = vmatprep.subr.mxu0 0.0
    %471 = vmatpush1.msra.mxu0 0.0
    %472 = vmatprep.subr.mxu0 0.0
    %473 = vmatpush1.msra.mxu0 0.0
    %474 = vmatprep.subr.mxu0 0.0
    %475 = vmatpush1.msra.mxu0 0.0
    %476 = vmatprep.mubr.f32.mxu0 0.0
    %477 = vmatmul.mubr.f32.gmra.mrb[0].mxu0 %v410
    %v478 = vpop.f32.mrb[0].mxu0
    %v479 = vadd.f32 0.0, %v478
    %v480 = vpop.f32.mrb[0].mxu0
    %v481 = vadd.f32 0.0, %v480
    %482 = vdwg.mxu0
    %v483 = vadd.f32 %v407, %v479
    %v484 = vadd.f32 %v408, %v481
    %v485 = vxor.u32 %v483, 2147483648
    %v486 = vxor.u32 %v484, 2147483648
    %v487 = vmul.f32 %v485, 1.442695
    %v488 = vpow.pop %v487
    %v489 = vmul.f32 %v486, 1.442695
    %v490 = vpow.pop %v489
    %v491 = vadd.f32 %v488, 1.0
    %v492 = vadd.f32 %v490, 1.0
    %v493 = vrcp.pop %v491
    %v494 = vmul.f32 1.0, %v493
    %v495 = vrcp.pop %v492
    %v496 = vmul.f32 1.0, %v495
    %v497 = vtanh.pop %v484
    %v498 = vmul.f32 %v494, %v394
    %500 = vrot.lane.b32.xlu0 %v497, 64
    %v501 = vpop.permute.xlu0 %500
    %v503 = vmul.f32 %v494, %v501
    %505 = vrot.lane.b32.xlu0 %v503, 64
    %v506 = vpop.permute.xlu0 %505
    %v508 = vadd.f32 %v498, %v506
    %v509 = vtanh.pop %v508
    %511 = vrot.lane.b32.xlu0 %v509, 64
    %v512 = vpop.permute.xlu0 %511
    %v514 = vmul.f32 %v496, %v512
    %v515 = vsel %vm294, %v400, 0.0
    %v517 = vlaneseq
    %v518 = vshrl.u32 %v517, 7
    %v519 = vsub.s32 0, %v518
    %v520 = vrot.slane %v283, %v519
    %v521 = vlaneseq
    %v522 = vshrl.u32 %v521, 7
    %v523 = vsub.s32 1, %v522
    %v524 = vrot.slane %v283, %v523
    %527 = vmatprep.subr.mxu0 %v220
    %528 = vmatpush1.msra.mxu0 %v219
    %529 = vmatprep.subr.mxu0 %v222
    %530 = vmatpush1.msra.mxu0 %v221
    %531 = vmatprep.subr.mxu0 %v224
    %532 = vmatpush1.msra.mxu0 %v223
    %533 = vmatprep.subr.mxu0 %v226
    %534 = vmatpush1.msra.mxu0 %v225
    %535 = vmatprep.subr.mxu0 %v228
    %536 = vmatpush1.msra.mxu0 %v227
    %537 = vmatprep.subr.mxu0 %v230
    %538 = vmatpush1.msra.mxu0 %v229
    %539 = vmatprep.subr.mxu0 %v232
    %540 = vmatpush1.msra.mxu0 %v231
    %541 = vmatprep.subr.mxu0 %v234
    %542 = vmatpush1.msra.mxu0 %v233
    %543 = vmatprep.subr.mxu0 %v236
    %544 = vmatpush1.msra.mxu0 %v235
    %545 = vmatprep.subr.mxu0 %v238
    %546 = vmatpush1.msra.mxu0 %v237
    %547 = vmatprep.subr.mxu0 %v240
    %548 = vmatpush1.msra.mxu0 %v239
    %549 = vmatprep.subr.mxu0 %v242
    %550 = vmatpush1.msra.mxu0 %v241
    %551 = vmatprep.subr.mxu0 %v244
    %552 = vmatpush1.msra.mxu0 %v243
    %553 = vmatprep.subr.mxu0 %v246
    %554 = vmatpush1.msra.mxu0 %v245
    %555 = vmatprep.subr.mxu0 %v248
    %556 = vmatpush1.msra.mxu0 %v247
    %557 = vmatprep.subr.mxu0 %v250
    %558 = vmatpush1.msra.mxu0 %v249
    %559 = vmatprep.subr.mxu0 0.0
    %560 = vmatpush1.msra.mxu0 0.0
    %561 = vmatprep.subr.mxu0 0.0
    %562 = vmatpush1.msra.mxu0 0.0
    %563 = vmatprep.subr.mxu0 0.0
    %564 = vmatpush1.msra.mxu0 0.0
    %565 = vmatprep.subr.mxu0 0.0
    %566 = vmatpush1.msra.mxu0 0.0
    %567 = vmatprep.subr.mxu0 0.0
    %568 = vmatpush1.msra.mxu0 0.0
    %569 = vmatprep.subr.mxu0 0.0
    %570 = vmatpush1.msra.mxu0 0.0
    %571 = vmatprep.subr.mxu0 0.0
    %572 = vmatpush1.msra.mxu0 0.0
    %573 = vmatprep.subr.mxu0 0.0
    %574 = vmatpush1.msra.mxu0 0.0
    %575 = vmatprep.subr.mxu0 0.0
    %576 = vmatpush1.msra.mxu0 0.0
    %577 = vmatprep.subr.mxu0 0.0
    %578 = vmatpush1.msra.mxu0 0.0
    %579 = vmatprep.subr.mxu0 0.0
    %580 = vmatpush1.msra.mxu0 0.0
    %581 = vmatprep.subr.mxu0 0.0
    %582 = vmatpush1.msra.mxu0 0.0
    %583 = vmatprep.subr.mxu0 0.0
    %584 = vmatpush1.msra.mxu0 0.0
    %585 = vmatprep.subr.mxu0 0.0
    %586 = vmatpush1.msra.mxu0 0.0
    %587 = vmatprep.subr.mxu0 0.0
    %588 = vmatpush1.msra.mxu0 0.0
    %589 = vmatprep.subr.mxu0 0.0
    %590 = vmatpush1.msra.mxu0 0.0
    %591 = vmatprep.mubr.f32.mxu0 0.0
    %592 = vmatmul.mubr.f32.gmra.mrb[0].mxu0 %v515
    %v593 = vpop.f32.mrb[0].mxu0
    %v594 = vadd.f32 %v520, %v593
    %v595 = vpop.f32.mrb[0].mxu0
    %v596 = vadd.f32 %v524, %v595
    %597 = vdwg.mxu0
    %v598 = vxor.u32 %v594, 2147483648
    %v599 = vxor.u32 %v596, 2147483648
    %v600 = vmul.f32 %v598, 1.442695
    %v601 = vpow.pop %v600
    %v602 = vmul.f32 %v599, 1.442695
    %v603 = vpow.pop %v602
    %v604 = vadd.f32 %v601, 1.0
    %v605 = vadd.f32 %v603, 1.0
    %v606 = vrcp.pop %v604
    %v607 = vmul.f32 1.0, %v606
    %v608 = vrcp.pop %v605
    %v609 = vmul.f32 1.0, %v608
    %v610 = vtanh.pop %v596
    %v611 = vmul.f32 %v607, 0.0
    %613 = vrot.lane.b32.xlu0 %v610, 64
    %v614 = vpop.permute.xlu0 %613
    %v616 = vmul.f32 %v607, %v614
    %618 = vrot.lane.b32.xlu0 %v616, 64
    %v619 = vpop.permute.xlu0 %618
    %v621 = vadd.f32 %v611, %v619
    %v622 = vtanh.pop %v621
    %624 = vrot.lane.b32.xlu0 %v622, 64
    %v625 = vpop.permute.xlu0 %624
    %v627 = vmul.f32 %v609, %v625
    %v628 = vrot.slane %v193, 2
    %v629 = vrot.slane %v195, 2
    %v632 = vrot.slane %v199, 1
    %v633 = vrot.slane %v201, 1
    %v636 = vsel %vm291, %v628, %v632
    %v637 = vsel %vm291, %v629, %v633
    %v639 = vsel %vm294, %v514, 0
    %641 = vmatprep.subr.mxu0 %v204
    %642 = vmatpush1.msra.mxu0 %v203
    %643 = vmatprep.subr.mxu0 %v206
    %644 = vmatpush1.msra.mxu0 %v205
    %645 = vmatprep.subr.mxu0 %v208
    %646 = vmatpush1.msra.mxu0 %v207
    %647 = vmatprep.subr.mxu0 %v210
    %648 = vmatpush1.msra.mxu0 %v209
    %649 = vmatprep.subr.mxu0 %v212
    %650 = vmatpush1.msra.mxu0 %v211
    %651 = vmatprep.subr.mxu0 %v214
    %652 = vmatpush1.msra.mxu0 %v213
    %653 = vmatprep.subr.mxu0 %v216
    %654 = vmatpush1.msra.mxu0 %v215
    %655 = vmatprep.subr.mxu0 %v218
    %656 = vmatpush1.msra.mxu0 %v217
    %657 = vmatprep.subr.mxu0 0.0
    %658 = vmatpush1.msra.mxu0 0.0
    %659 = vmatprep.subr.mxu0 0.0
    %660 = vmatpush1.msra.mxu0 0.0
    %661 = vmatprep.subr.mxu0 0.0
    %662 = vmatpush1.msra.mxu0 0.0
    %663 = vmatprep.subr.mxu0 0.0
    %664 = vmatpush1.msra.mxu0 0.0
    %665 = vmatprep.subr.mxu0 0.0
    %666 = vmatpush1.msra.mxu0 0.0
    %667 = vmatprep.subr.mxu0 0.0
    %668 = vmatpush1.msra.mxu0 0.0
    %669 = vmatprep.subr.mxu0 0.0
    %670 = vmatpush1.msra.mxu0 0.0
    %671 = vmatprep.subr.mxu0 0.0
    %672 = vmatpush1.msra.mxu0 0.0
    %673 = vmatprep.subr.mxu0 0.0
    %674 = vmatpush1.msra.mxu0 0.0
    %675 = vmatprep.subr.mxu0 0.0
    %676 = vmatpush1.msra.mxu0 0.0
    %677 = vmatprep.subr.mxu0 0.0
    %678 = vmatpush1.msra.mxu0 0.0
    %679 = vmatprep.subr.mxu0 0.0
    %680 = vmatpush1.msra.mxu0 0.0
    %681 = vmatprep.subr.mxu0 0.0
    %682 = vmatpush1.msra.mxu0 0.0
    %683 = vmatprep.subr.mxu0 0.0
    %684 = vmatpush1.msra.mxu0 0.0
    %685 = vmatprep.subr.mxu0 0.0
    %686 = vmatpush1.msra.mxu0 0.0
    %687 = vmatprep.subr.mxu0 0.0
    %688 = vmatpush1.msra.mxu0 0.0
    %689 = vmatprep.subr.mxu0 0.0
    %690 = vmatpush1.msra.mxu0 0.0
    %691 = vmatprep.subr.mxu0 0.0
    %692 = vmatpush1.msra.mxu0 0.0
    %693 = vmatprep.subr.mxu0 0.0
    %694 = vmatpush1.msra.mxu0 0.0
    %695 = vmatprep.subr.mxu0 0.0
    %696 = vmatpush1.msra.mxu0 0.0
    %697 = vmatprep.subr.mxu0 0.0
    %698 = vmatpush1.msra.mxu0 0.0
    %699 = vmatprep.subr.mxu0 0.0
    %700 = vmatpush1.msra.mxu0 0.0
    %701 = vmatprep.subr.mxu0 0.0
    %702 = vmatpush1.msra.mxu0 0.0
    %703 = vmatprep.subr.mxu0 0.0
    %704 = vmatpush1.msra.mxu0 0.0
    %705 = vmatprep.mubr.f32.mxu0 0.0
    %706 = vmatmul.mubr.f32.gmra.mrb[0].mxu0 %v639
    %v707 = vpop.f32.mrb[0].mxu0
    %v708 = vadd.f32 0.0, %v707
    %v709 = vpop.f32.mrb[0].mxu0
    %v710 = vadd.f32 0.0, %v709
    %711 = vdwg.mxu0
    %v712 = vadd.f32 %v636, %v708
    %v713 = vadd.f32 %v637, %v710
    %v714 = vxor.u32 %v712, 2147483648
    %v715 = vxor.u32 %v713, 2147483648
    %v716 = vmul.f32 %v714, 1.442695
    %v717 = vpow.pop %v716
    %v718 = vmul.f32 %v715, 1.442695
    %v719 = vpow.pop %v718
    %v720 = vadd.f32 %v717, 1.0
    %v721 = vadd.f32 %v719, 1.0
    %v722 = vrcp.pop %v720
    %v723 = vmul.f32 1.0, %v722
    %v724 = vrcp.pop %v721
    %v725 = vmul.f32 1.0, %v724
    %v726 = vtanh.pop %v713
    %v727 = vmul.f32 %v723, %v508
    %729 = vrot.lane.b32.xlu0 %v726, 64
    %v730 = vpop.permute.xlu0 %729
    %v732 = vmul.f32 %v723, %v730
    %734 = vrot.lane.b32.xlu0 %v732, 64
    %v735 = vpop.permute.xlu0 %734
    %v737 = vadd.f32 %v727, %v735
    %v738 = vtanh.pop %v737
    %740 = vrot.lane.b32.xlu0 %v738, 64
    %v741 = vpop.permute.xlu0 %740
    %v743 = vmul.f32 %v725, %v741
    %745 = vrot.lane.b32.xlu0 %v627, 64
    %v746 = vpop.permute.xlu0 %745
    %v748 = vsel %vm294, %v514, %v746
    %749 = vmatprep.subr.mxu0 %v220
    %750 = vmatpush1.msra.mxu0 %v219
    %751 = vmatprep.subr.mxu0 %v222
    %752 = vmatpush1.msra.mxu0 %v221
    %753 = vmatprep.subr.mxu0 %v224
    %754 = vmatpush1.msra.mxu0 %v223
    %755 = vmatprep.subr.mxu0 %v226
    %756 = vmatpush1.msra.mxu0 %v225
    %757 = vmatprep.subr.mxu0 %v228
    %758 = vmatpush1.msra.mxu0 %v227
    %759 = vmatprep.subr.mxu0 %v230
    %760 = vmatpush1.msra.mxu0 %v229
    %761 = vmatprep.subr.mxu0 %v232
    %762 = vmatpush1.msra.mxu0 %v231
    %763 = vmatprep.subr.mxu0 %v234
    %764 = vmatpush1.msra.mxu0 %v233
    %765 = vmatprep.subr.mxu0 %v236
    %766 = vmatpush1.msra.mxu0 %v235
    %767 = vmatprep.subr.mxu0 %v238
    %768 = vmatpush1.msra.mxu0 %v237
    %769 = vmatprep.subr.mxu0 %v240
    %770 = vmatpush1.msra.mxu0 %v239
    %771 = vmatprep.subr.mxu0 %v242
    %772 = vmatpush1.msra.mxu0 %v241
    %773 = vmatprep.subr.mxu0 %v244
    %774 = vmatpush1.msra.mxu0 %v243
    %775 = vmatprep.subr.mxu0 %v246
    %776 = vmatpush1.msra.mxu0 %v245
    %777 = vmatprep.subr.mxu0 %v248
    %778 = vmatpush1.msra.mxu0 %v247
    %779 = vmatprep.subr.mxu0 %v250
    %780 = vmatpush1.msra.mxu0 %v249
    %781 = vmatprep.subr.mxu0 0.0
    %782 = vmatpush1.msra.mxu0 0.0
    %783 = vmatprep.subr.mxu0 0.0
    %784 = vmatpush1.msra.mxu0 0.0
    %785 = vmatprep.subr.mxu0 0.0
    %786 = vmatpush1.msra.mxu0 0.0
    %787 = vmatprep.subr.mxu0 0.0
    %788 = vmatpush1.msra.mxu0 0.0
    %789 = vmatprep.subr.mxu0 0.0
    %790 = vmatpush1.msra.mxu0 0.0
    %791 = vmatprep.subr.mxu0 0.0
    %792 = vmatpush1.msra.mxu0 0.0
    %793 = vmatprep.subr.mxu0 0.0
    %794 = vmatpush1.msra.mxu0 0.0
    %795 = vmatprep.subr.mxu0 0.0
    %796 = vmatpush1.msra.mxu0 0.0
    %797 = vmatprep.subr.mxu0 0.0
    %798 = vmatpush1.msra.mxu0 0.0
    %799 = vmatprep.subr.mxu0 0.0
    %800 = vmatpush1.msra.mxu0 0.0
    %801 = vmatprep.subr.mxu0 0.0
    %802 = vmatpush1.msra.mxu0 0.0
    %803 = vmatprep.subr.mxu0 0.0
    %804 = vmatpush1.msra.mxu0 0.0
    %805 = vmatprep.subr.mxu0 0.0
    %806 = vmatpush1.msra.mxu0 0.0
    %807 = vmatprep.subr.mxu0 0.0
    %808 = vmatpush1.msra.mxu0 0.0
    %809 = vmatprep.subr.mxu0 0.0
    %810 = vmatpush1.msra.mxu0 0.0
    %811 = vmatprep.subr.mxu0 0.0
    %812 = vmatpush1.msra.mxu0 0.0
    %813 = vmatprep.mubr.f32.mxu0 0.0
    %814 = vmatmul.mubr.f32.gmra.mrb[0].mxu0 %v748
    %v815 = vpop.f32.mrb[0].mxu0
    %v816 = vadd.f32 %v520, %v815
    %v817 = vpop.f32.mrb[0].mxu0
    %v818 = vadd.f32 %v524, %v817
    %819 = vdwg.mxu0
    %v820 = vxor.u32 %v816, 2147483648
    %v821 = vxor.u32 %v818, 2147483648
    %v822 = vmul.f32 %v820, 1.442695
    %v823 = vpow.pop %v822
    %v824 = vmul.f32 %v821, 1.442695
    %v825 = vpow.pop %v824
    %v826 = vadd.f32 %v823, 1.0
    %v827 = vadd.f32 %v825, 1.0
    %v828 = vrcp.pop %v826
    %v829 = vmul.f32 1.0, %v828
    %v830 = vrcp.pop %v827
    %v831 = vmul.f32 1.0, %v830
    %v832 = vtanh.pop %v818
    %v833 = vmul.f32 %v829, %v621
    %835 = vrot.lane.b32.xlu0 %v832, 64
    %v836 = vpop.permute.xlu0 %835
    %v838 = vmul.f32 %v829, %v836
    %840 = vrot.lane.b32.xlu0 %v838, 64
    %v841 = vpop.permute.xlu0 %840
    %v843 = vadd.f32 %v833, %v841
    %v844 = vtanh.pop %v843
    %846 = vrot.lane.b32.xlu0 %v844, 64
    %v847 = vpop.permute.xlu0 %846
    %v849 = vmul.f32 %v831, %v847
    %v850 = vsel %vm294, %v627, 0.0
    %v852 = vlaneseq
    %v853 = vshrl.u32 %v852, 7
    %v854 = vsub.s32 0, %v853
    %v855 = vrot.slane %v284, %v854
    %v856 = vlaneseq
    %v857 = vshrl.u32 %v856, 7
    %v858 = vsub.s32 1, %v857
    %v859 = vrot.slane %v284, %v858
    %862 = vmatprep.subr.mxu0 %v252
    %863 = vmatpush1.msra.mxu0 %v251
    %864 = vmatprep.subr.mxu0 %v254
    %865 = vmatpush1.msra.mxu0 %v253
    %866 = vmatprep.subr.mxu0 %v256
    %867 = vmatpush1.msra.mxu0 %v255
    %868 = vmatprep.subr.mxu0 %v258
    %869 = vmatpush1.msra.mxu0 %v257
    %870 = vmatprep.subr.mxu0 %v260
    %871 = vmatpush1.msra.mxu0 %v259
    %872 = vmatprep.subr.mxu0 %v262
    %873 = vmatpush1.msra.mxu0 %v261
    %874 = vmatprep.subr.mxu0 %v264
    %875 = vmatpush1.msra.mxu0 %v263
    %876 = vmatprep.subr.mxu0 %v266
    %877 = vmatpush1.msra.mxu0 %v265
    %878 = vmatprep.subr.mxu0 %v268
    %879 = vmatpush1.msra.mxu0 %v267
    %880 = vmatprep.subr.mxu0 %v270
    %881 = vmatpush1.msra.mxu0 %v269
    %882 = vmatprep.subr.mxu0 %v272
    %883 = vmatpush1.msra.mxu0 %v271
    %884 = vmatprep.subr.mxu0 %v274
    %885 = vmatpush1.msra.mxu0 %v273
    %886 = vmatprep.subr.mxu0 %v276
    %887 = vmatpush1.msra.mxu0 %v275
    %888 = vmatprep.subr.mxu0 %v278
    %889 = vmatpush1.msra.mxu0 %v277
    %890 = vmatprep.subr.mxu0 %v280
    %891 = vmatpush1.msra.mxu0 %v279
    %892 = vmatprep.subr.mxu0 %v282
    %893 = vmatpush1.msra.mxu0 %v281
    %894 = vmatprep.subr.mxu0 0.0
    %895 = vmatpush1.msra.mxu0 0.0
    %896 = vmatprep.subr.mxu0 0.0
    %897 = vmatpush1.msra.mxu0 0.0
    %898 = vmatprep.subr.mxu0 0.0
    %899 = vmatpush1.msra.mxu0 0.0
    %900 = vmatprep.subr.mxu0 0.0
    %901 = vmatpush1.msra.mxu0 0.0
    %902 = vmatprep.subr.mxu0 0.0
    %903 = vmatpush1.msra.mxu0 0.0
    %904 = vmatprep.subr.mxu0 0.0
    %905 = vmatpush1.msra.mxu0 0.0
    %906 = vmatprep.subr.mxu0 0.0
    %907 = vmatpush1.msra.mxu0 0.0
    %908 = vmatprep.subr.mxu0 0.0
    %909 = vmatpush1.msra.mxu0 0.0
    %910 = vmatprep.subr.mxu0 0.0
    %911 = vmatpush1.msra.mxu0 0.0
    %912 = vmatprep.subr.mxu0 0.0
    %913 = vmatpush1.msra.mxu0 0.0
    %914 = vmatprep.subr.mxu0 0.0
    %915 = vmatpush1.msra.mxu0 0.0
    %916 = vmatprep.subr.mxu0 0.0
    %917 = vmatpush1.msra.mxu0 0.0
    %918 = vmatprep.subr.mxu0 0.0
    %919 = vmatpush1.msra.mxu0 0.0
    %920 = vmatprep.subr.mxu0 0.0
    %921 = vmatpush1.msra.mxu0 0.0
    %922 = vmatprep.subr.mxu0 0.0
    %923 = vmatpush1.msra.mxu0 0.0
    %924 = vmatprep.subr.mxu0 0.0
    %925 = vmatpush1.msra.mxu0 0.0
    %926 = vmatprep.mubr.f32.mxu0 0.0
    %927 = vmatmul.mubr.f32.gmra.mrb[0].mxu0 %v850
    %v928 = vpop.f32.mrb[0].mxu0
    %v929 = vadd.f32 %v855, %v928
    %v930 = vpop.f32.mrb[0].mxu0
    %v931 = vadd.f32 %v859, %v930
    %932 = vdwg.mxu0
    %v933 = vxor.u32 %v929, 2147483648
    %v934 = vxor.u32 %v931, 2147483648
    %v935 = vmul.f32 %v933, 1.442695
    %v936 = vpow.pop %v935
    %v937 = vmul.f32 %v934, 1.442695
    %v938 = vpow.pop %v937
    %v939 = vadd.f32 %v936, 1.0
    %v940 = vadd.f32 %v938, 1.0
    %v941 = vrcp.pop %v939
    %v942 = vmul.f32 1.0, %v941
    %v943 = vrcp.pop %v940
    %v944 = vmul.f32 1.0, %v943
    %v945 = vtanh.pop %v931
    %v946 = vmul.f32 %v942, 0.0
    %948 = vrot.lane.b32.xlu0 %v945, 64
    %v949 = vpop.permute.xlu0 %948
    %v951 = vmul.f32 %v942, %v949
    %953 = vrot.lane.b32.xlu0 %v951, 64
    %v954 = vpop.permute.xlu0 %953
    %v956 = vadd.f32 %v946, %v954
    %v957 = vtanh.pop %v956
    %959 = vrot.lane.b32.xlu0 %v957, 64
    %v960 = vpop.permute.xlu0 %959
    %v962 = vmul.f32 %v944, %v960
    %v963 = vrot.slane %v193, 3
    %v964 = vrot.slane %v195, 3
    %v967 = vrot.slane %v199, 2
    %v968 = vrot.slane %v201, 2
    %v971 = vsel %vm291, %v963, %v967
    %v972 = vsel %vm291, %v964, %v968
    %v974 = vsel %vm294, %v743, 0
    %976 = vmatprep.subr.mxu0 %v204
    %977 = vmatpush1.msra.mxu0 %v203
    %978 = vmatprep.subr.mxu0 %v206
    %979 = vmatpush1.msra.mxu0 %v205
    %980 = vmatprep.subr.mxu0 %v208
    %981 = vmatpush1.msra.mxu0 %v207
    %982 = vmatprep.subr.mxu0 %v210
    %983 = vmatpush1.msra.mxu0 %v209
    %984 = vmatprep.subr.mxu0 %v212
    %985 = vmatpush1.msra.mxu0 %v211
    %986 = vmatprep.subr.mxu0 %v214
    %987 = vmatpush1.msra.mxu0 %v213
    %988 = vmatprep.subr.mxu0 %v216
    %989 = vmatpush1.msra.mxu0 %v215
    %990 = vmatprep.subr.mxu0 %v218
    %991 = vmatpush1.msra.mxu0 %v217
    %992 = vmatprep.subr.mxu0 0.0
    %993 = vmatpush1.msra.mxu0 0.0
    %994 = vmatprep.subr.mxu0 0.0
    %995 = vmatpush1.msra.mxu0 0.0
    %996 = vmatprep.subr.mxu0 0.0
    %997 = vmatpush1.msra.mxu0 0.0
    %998 = vmatprep.subr.mxu0 0.0
    %999 = vmatpush1.msra.mxu0 0.0
    %1000 = vmatprep.subr.mxu0 0.0
    %1001 = vmatpush1.msra.mxu0 0.0
    %1002 = vmatprep.subr.mxu0 0.0
    %1003 = vmatpush1.msra.mxu0 0.0
    %1004 = vmatprep.subr.mxu0 0.0
    %1005 = vmatpush1.msra.mxu0 0.0
    %1006 = vmatprep.subr.mxu0 0.0
    %1007 = vmatpush1.msra.mxu0 0.0
    %1008 = vmatprep.subr.mxu0 0.0
    %1009 = vmatpush1.msra.mxu0 0.0
    %1010 = vmatprep.subr.mxu0 0.0
    %1011 = vmatpush1.msra.mxu0 0.0
    %1012 = vmatprep.subr.mxu0 0.0
    %1013 = vmatpush1.msra.mxu0 0.0
    %1014 = vmatprep.subr.mxu0 0.0
    %1015 = vmatpush1.msra.mxu0 0.0
    %1016 = vmatprep.subr.mxu0 0.0
    %1017 = vmatpush1.msra.mxu0 0.0
    %1018 = vmatprep.subr.mxu0 0.0
    %1019 = vmatpush1.msra.mxu0 0.0
    %1020 = vmatprep.subr.mxu0 0.0
    %1021 = vmatpush1.msra.mxu0 0.0
    %1022 = vmatprep.subr.mxu0 0.0
    %1023 = vmatpush1.msra.mxu0 0.0
    %1024 = vmatprep.subr.mxu0 0.0
    %1025 = vmatpush1.msra.mxu0 0.0
    %1026 = vmatprep.subr.mxu0 0.0
    %1027 = vmatpush1.msra.mxu0 0.0
    %1028 = vmatprep.subr.mxu0 0.0
    %1029 = vmatpush1.msra.mxu0 0.0
    %1030 = vmatprep.subr.mxu0 0.0
    %1031 = vmatpush1.msra.mxu0 0.0
    %1032 = vmatprep.subr.mxu0 0.0
    %1033 = vmatpush1.msra.mxu0 0.0
    %1034 = vmatprep.subr.mxu0 0.0
    %1035 = vmatpush1.msra.mxu0 0.0
    %1036 = vmatprep.subr.mxu0 0.0
    %1037 = vmatpush1.msra.mxu0 0.0
    %1038 = vmatprep.subr.mxu0 0.0
    %1039 = vmatpush1.msra.mxu0 0.0
    %1040 = vmatprep.mubr.f32.mxu0 0.0
    %1041 = vmatmul.mubr.f32.gmra.mrb[0].mxu0 %v974
    %v1042 = vpop.f32.mrb[0].mxu0
    %v1043 = vadd.f32 0.0, %v1042
    %v1044 = vpop.f32.mrb[0].mxu0
    %v1045 = vadd.f32 0.0, %v1044
    %1046 = vdwg.mxu0
    %v1047 = vadd.f32 %v971, %v1043
    %v1048 = vadd.f32 %v972, %v1045
    %v1049 = vxor.u32 %v1047, 2147483648
    %v1050 = vxor.u32 %v1048, 2147483648
    %v1051 = vmul.f32 %v1049, 1.442695
    %v1052 = vpow.pop %v1051
    %v1053 = vmul.f32 %v1050, 1.442695
    %v1054 = vpow.pop %v1053
    %v1055 = vadd.f32 %v1052, 1.0
    %v1056 = vadd.f32 %v1054, 1.0
    %v1057 = vrcp.pop %v1055
    %v1058 = vmul.f32 1.0, %v1057
    %v1059 = vrcp.pop %v1056
    %v1060 = vmul.f32 1.0, %v1059
    %v1061 = vtanh.pop %v1048
    %v1062 = vmul.f32 %v1058, %v737
    %1064 = vrot.lane.b32.xlu0 %v1061, 64
    %v1065 = vpop.permute.xlu0 %1064
    %v1067 = vmul.f32 %v1058, %v1065
    %1069 = vrot.lane.b32.xlu0 %v1067, 64
    %v1070 = vpop.permute.xlu0 %1069
    %v1072 = vadd.f32 %v1062, %v1070
    %v1073 = vtanh.pop %v1072
    %1075 = vrot.lane.b32.xlu0 %v1073, 64
    %v1076 = vpop.permute.xlu0 %1075
    %v1078 = vmul.f32 %v1060, %v1076
    %1080 = vrot.lane.b32.xlu0 %v849, 64
    %v1081 = vpop.permute.xlu0 %1080
    %v1083 = vsel %vm294, %v743, %v1081
    %1084 = vmatprep.subr.mxu0 %v220
    %1085 = vmatpush1.msra.mxu0 %v219
    %1086 = vmatprep.subr.mxu0 %v222
    %1087 = vmatpush1.msra.mxu0 %v221
    %1088 = vmatprep.subr.mxu0 %v224
    %1089 = vmatpush1.msra.mxu0 %v223
    %1090 = vmatprep.subr.mxu0 %v226
    %1091 = vmatpush1.msra.mxu0 %v225
    %1092 = vmatprep.subr.mxu0 %v228
    %1093 = vmatpush1.msra.mxu0 %v227
    %1094 = vmatprep.subr.mxu0 %v230
    %1095 = vmatpush1.msra.mxu0 %v229
    %1096 = vmatprep.subr.mxu0 %v232
    %1097 = vmatpush1.msra.mxu0 %v231
    %1098 = vmatprep.subr.mxu0 %v234
    %1099 = vmatpush1.msra.mxu0 %v233
    %1100 = vmatprep.subr.mxu0 %v236
    %1101 = vmatpush1.msra.mxu0 %v235
    %1102 = vmatprep.subr.mxu0 %v238
    %1103 = vmatpush1.msra.mxu0 %v237
    %1104 = vmatprep.subr.mxu0 %v240
    %1105 = vmatpush1.msra.mxu0 %v239
    %1106 = vmatprep.subr.mxu0 %v242
    %1107 = vmatpush1.msra.mxu0 %v241
    %1108 = vmatprep.subr.mxu0 %v244
    %1109 = vmatpush1.msra.mxu0 %v243
    %1110 = vmatprep.subr.mxu0 %v246
    %1111 = vmatpush1.msra.mxu0 %v245
    %1112 = vmatprep.subr.mxu0 %v248
    %1113 = vmatpush1.msra.mxu0 %v247
    %1114 = vmatprep.subr.mxu0 %v250
    %1115 = vmatpush1.msra.mxu0 %v249
    %1116 = vmatprep.subr.mxu0 0.0
    %1117 = vmatpush1.msra.mxu0 0.0
    %1118 = vmatprep.subr.mxu0 0.0
    %1119 = vmatpush1.msra.mxu0 0.0
    %1120 = vmatprep.subr.mxu0 0.0
    %1121 = vmatpush1.msra.mxu0 0.0
    %1122 = vmatprep.subr.mxu0 0.0
    %1123 = vmatpush1.msra.mxu0 0.0
    %1124 = vmatprep.subr.mxu0 0.0
    %1125 = vmatpush1.msra.mxu0 0.0
    %1126 = vmatprep.subr.mxu0 0.0
    %1127 = vmatpush1.msra.mxu0 0.0
    %1128 = vmatprep.subr.mxu0 0.0
    %1129 = vmatpush1.msra.mxu0 0.0
    %1130 = vmatprep.subr.mxu0 0.0
    %1131 = vmatpush1.msra.mxu0 0.0
    %1132 = vmatprep.subr.mxu0 0.0
    %1133 = vmatpush1.msra.mxu0 0.0
    %1134 = vmatprep.subr.mxu0 0.0
    %1135 = vmatpush1.msra.mxu0 0.0
    %1136 = vmatprep.subr.mxu0 0.0
    %1137 = vmatpush1.msra.mxu0 0.0
    %1138 = vmatprep.subr.mxu0 0.0
    %1139 = vmatpush1.msra.mxu0 0.0
    %1140 = vmatprep.subr.mxu0 0.0
    %1141 = vmatpush1.msra.mxu0 0.0
    %1142 = vmatprep.subr.mxu0 0.0
    %1143 = vmatpush1.msra.mxu0 0.0
    %1144 = vmatprep.subr.mxu0 0.0
    %1145 = vmatpush1.msra.mxu0 0.0
    %1146 = vmatprep.subr.mxu0 0.0
    %1147 = vmatpush1.msra.mxu0 0.0
    %1148 = vmatprep.mubr.f32.mxu0 0.0
    %1149 = vmatmul.mubr.f32.gmra.mrb[0].mxu0 %v1083
    %v1150 = vpop.f32.mrb[0].mxu0
    %v1151 = vadd.f32 %v520, %v1150
    %v1152 = vpop.f32.mrb[0].mxu0
    %v1153 = vadd.f32 %v524, %v1152
    %1154 = vdwg.mxu0
    %v1155 = vxor.u32 %v1151, 2147483648
    %v1156 = vxor.u32 %v1153, 2147483648
    %v1157 = vmul.f32 %v1155, 1.442695
    %v1158 = vpow.pop %v1157
    %v1159 = vmul.f32 %v1156, 1.442695
    %v1160 = vpow.pop %v1159
    %v1161 = vadd.f32 %v1158, 1.0
    %v1162 = vadd.f32 %v1160, 1.0
    %v1163 = vrcp.pop %v1161
    %v1164 = vmul.f32 1.0, %v1163
    %v1165 = vrcp.pop %v1162
    %v1166 = vmul.f32 1.0, %v1165
    %v1167 = vtanh.pop %v1153
    %v1168 = vmul.f32 %v1164, %v843
    %1170 = vrot.lane.b32.xlu0 %v1167, 64
    %v1171 = vpop.permute.xlu0 %1170
    %v1173 = vmul.f32 %v1164, %v1171
    %1175 = vrot.lane.b32.xlu0 %v1173, 64
    %v1176 = vpop.permute.xlu0 %1175
    %v1178 = vadd.f32 %v1168, %v1176
    %v1179 = vtanh.pop %v1178
    %1181 = vrot.lane.b32.xlu0 %v1179, 64
    %v1182 = vpop.permute.xlu0 %1181
    %v1184 = vmul.f32 %v1166, %v1182
    %1186 = vrot.lane.b32.xlu0 %v962, 64
    %v1187 = vpop.permute.xlu0 %1186
    %v1189 = vsel %vm294, %v849, %v1187
    %1190 = vmatprep.subr.mxu0 %v252
    %1191 = vmatpush1.msra.mxu0 %v251
    %1192 = vmatprep.subr.mxu0 %v254
    %1193 = vmatpush1.msra.mxu0 %v253
    %1194 = vmatprep.subr.mxu0 %v256
    %1195 = vmatpush1.msra.mxu0 %v255
    %1196 = vmatprep.subr.mxu0 %v258
    %1197 = vmatpush1.msra.mxu0 %v257
    %1198 = vmatprep.subr.mxu0 %v260
    %1199 = vmatpush1.msra.mxu0 %v259
    %1200 = vmatprep.subr.mxu0 %v262
    %1201 = vmatpush1.msra.mxu0 %v261
    %1202 = vmatprep.subr.mxu0 %v264
    %1203 = vmatpush1.msra.mxu0 %v263
    %1204 = vmatprep.subr.mxu0 %v266
    %1205 = vmatpush1.msra.mxu0 %v265
    %1206 = vmatprep.subr.mxu0 %v268
    %1207 = vmatpush1.msra.mxu0 %v267
    %1208 = vmatprep.subr.mxu0 %v270
    %1209 = vmatpush1.msra.mxu0 %v269
    %1210 = vmatprep.subr.mxu0 %v272
    %1211 = vmatpush1.msra.mxu0 %v271
    %1212 = vmatprep.subr.mxu0 %v274
    %1213 = vmatpush1.msra.mxu0 %v273
    %1214 = vmatprep.subr.mxu0 %v276
    %1215 = vmatpush1.msra.mxu0 %v275
    %1216 = vmatprep.subr.mxu0 %v278
    %1217 = vmatpush1.msra.mxu0 %v277
    %1218 = vmatprep.subr.mxu0 %v280
    %1219 = vmatpush1.msra.mxu0 %v279
    %1220 = vmatprep.subr.mxu0 %v282
    %1221 = vmatpush1.msra.mxu0 %v281
    %1222 = vmatprep.subr.mxu0 0.0
    %1223 = vmatpush1.msra.mxu0 0.0
    %1224 = vmatprep.subr.mxu0 0.0
    %1225 = vmatpush1.msra.mxu0 0.0
    %1226 = vmatprep.subr.mxu0 0.0
    %1227 = vmatpush1.msra.mxu0 0.0
    %1228 = vmatprep.subr.mxu0 0.0
    %1229 = vmatpush1.msra.mxu0 0.0
    %1230 = vmatprep.subr.mxu0 0.0
    %1231 = vmatpush1.msra.mxu0 0.0
    %1232 = vmatprep.subr.mxu0 0.0
    %1233 = vmatpush1.msra.mxu0 0.0
    %1234 = vmatprep.subr.mxu0 0.0
    %1235 = vmatpush1.msra.mxu0 0.0
    %1236 = vmatprep.subr.mxu0 0.0
    %1237 = vmatpush1.msra.mxu0 0.0
    %1238 = vmatprep.subr.mxu0 0.0
    %1239 = vmatpush1.msra.mxu0 0.0
    %1240 = vmatprep.subr.mxu0 0.0
    %1241 = vmatpush1.msra.mxu0 0.0
    %1242 = vmatprep.subr.mxu0 0.0
    %1243 = vmatpush1.msra.mxu0 0.0
    %1244 = vmatprep.subr.mxu0 0.0
    %1245 = vmatpush1.msra.mxu0 0.0
    %1246 = vmatprep.subr.mxu0 0.0
    %1247 = vmatpush1.msra.mxu0 0.0
    %1248 = vmatprep.subr.mxu0 0.0
    %1249 = vmatpush1.msra.mxu0 0.0
    %1250 = vmatprep.subr.mxu0 0.0
    %1251 = vmatpush1.msra.mxu0 0.0
    %1252 = vmatprep.subr.mxu0 0.0
    %1253 = vmatpush1.msra.mxu0 0.0
    %1254 = vmatprep.mubr.f32.mxu0 0.0
    %1255 = vmatmul.mubr.f32.gmra.mrb[0].mxu0 %v1189
    %v1256 = vpop.f32.mrb[0].mxu0
    %v1257 = vadd.f32 %v855, %v1256
    %v1258 = vpop.f32.mrb[0].mxu0
    %v1259 = vadd.f32 %v859, %v1258
    %1260 = vdwg.mxu0
    %v1261 = vxor.u32 %v1257, 2147483648
    %v1262 = vxor.u32 %v1259, 2147483648
    %v1263 = vmul.f32 %v1261, 1.442695
    %v1264 = vpow.pop %v1263
    %v1265 = vmul.f32 %v1262, 1.442695
    %v1266 = vpow.pop %v1265
    %v1267 = vadd.f32 %v1264, 1.0
    %v1268 = vadd.f32 %v1266, 1.0
    %v1269 = vrcp.pop %v1267
    %v1270 = vmul.f32 1.0, %v1269
    %v1271 = vrcp.pop %v1268
    %v1272 = vmul.f32 1.0, %v1271
    %v1273 = vtanh.pop %v1259
    %v1274 = vmul.f32 %v1270, %v956
    %1276 = vrot.lane.b32.xlu0 %v1273, 64
    %v1277 = vpop.permute.xlu0 %1276
    %v1279 = vmul.f32 %v1270, %v1277
    %1281 = vrot.lane.b32.xlu0 %v1279, 64
    %v1282 = vpop.permute.xlu0 %1281
    %v1284 = vadd.f32 %v1274, %v1282
    %v1285 = vtanh.pop %v1284
    %1287 = vrot.lane.b32.xlu0 %v1285, 64
    %v1288 = vpop.permute.xlu0 %1287
    %v1290 = vmul.f32 %v1272, %v1288
    %v1291 = vrot.slane %v193, 4
    %v1292 = vrot.slane %v195, 4
    %v1295 = vrot.slane %v199, 3
    %v1296 = vrot.slane %v201, 3
    %v1299 = vsel %vm291, %v1291, %v1295
    %v1300 = vsel %vm291, %v1292, %v1296
    %v1302 = vsel %vm294, %v1078, 0
    %1304 = vmatprep.subr.mxu0 %v204
    %1305 = vmatpush1.msra.mxu0 %v203
    %1306 = vmatprep.subr.mxu0 %v206
    %1307 = vmatpush1.msra.mxu0 %v205
    %1308 = vmatprep.subr.mxu0 %v208
    %1309 = vmatpush1.msra.mxu0 %v207
    %1310 = vmatprep.subr.mxu0 %v210
    %1311 = vmatpush1.msra.mxu0 %v209
    %1312 = vmatprep.subr.mxu0 %v212
    %1313 = vmatpush1.msra.mxu0 %v211
    %1314 = vmatprep.subr.mxu0 %v214
    %1315 = vmatpush1.msra.mxu0 %v213
    %1316 = vmatprep.subr.mxu0 %v216
    %1317 = vmatpush1.msra.mxu0 %v215
    %1318 = vmatprep.subr.mxu0 %v218
    %1319 = vmatpush1.msra.mxu0 %v217
    %1320 = vmatprep.subr.mxu0 0.0
    %1321 = vmatpush1.msra.mxu0 0.0
    %1322 = vmatprep.subr.mxu0 0.0
    %1323 = vmatpush1.msra.mxu0 0.0
    %1324 = vmatprep.subr.mxu0 0.0
    %1325 = vmatpush1.msra.mxu0 0.0
    %1326 = vmatprep.subr.mxu0 0.0
    %1327 = vmatpush1.msra.mxu0 0.0
    %1328 = vmatprep.subr.mxu0 0.0
    %1329 = vmatpush1.msra.mxu0 0.0
    %1330 = vmatprep.subr.mxu0 0.0
    %1331 = vmatpush1.msra.mxu0 0.0
    %1332 = vmatprep.subr.mxu0 0.0
    %1333 = vmatpush1.msra.mxu0 0.0
    %1334 = vmatprep.subr.mxu0 0.0
    %1335 = vmatpush1.msra.mxu0 0.0
    %1336 = vmatprep.subr.mxu0 0.0
    %1337 = vmatpush1.msra.mxu0 0.0
    %1338 = vmatprep.subr.mxu0 0.0
    %1339 = vmatpush1.msra.mxu0 0.0
    %1340 = vmatprep.subr.mxu0 0.0
    %1341 = vmatpush1.msra.mxu0 0.0
    %1342 = vmatprep.subr.mxu0 0.0
    %1343 = vmatpush1.msra.mxu0 0.0
    %1344 = vmatprep.subr.mxu0 0.0
    %1345 = vmatpush1.msra.mxu0 0.0
    %1346 = vmatprep.subr.mxu0 0.0
    %1347 = vmatpush1.msra.mxu0 0.0
    %1348 = vmatprep.subr.mxu0 0.0
    %1349 = vmatpush1.msra.mxu0 0.0
    %1350 = vmatprep.subr.mxu0 0.0
    %1351 = vmatpush1.msra.mxu0 0.0
    %1352 = vmatprep.subr.mxu0 0.0
    %1353 = vmatpush1.msra.mxu0 0.0
    %1354 = vmatprep.subr.mxu0 0.0
    %1355 = vmatpush1.msra.mxu0 0.0
    %1356 = vmatprep.subr.mxu0 0.0
    %1357 = vmatpush1.msra.mxu0 0.0
    %1358 = vmatprep.subr.mxu0 0.0
    %1359 = vmatpush1.msra.mxu0 0.0
    %1360 = vmatprep.subr.mxu0 0.0
    %1361 = vmatpush1.msra.mxu0 0.0
    %1362 = vmatprep.subr.mxu0 0.0
    %1363 = vmatpush1.msra.mxu0 0.0
    %1364 = vmatprep.subr.mxu0 0.0
    %1365 = vmatpush1.msra.mxu0 0.0
    %1366 = vmatprep.subr.mxu0 0.0
    %1367 = vmatpush1.msra.mxu0 0.0
    %1368 = vmatprep.mubr.f32.mxu0 0.0
    %1369 = vmatmul.mubr.f32.gmra.mrb[0].mxu0 %v1302
    %v1370 = vpop.f32.mrb[0].mxu0
    %v1371 = vadd.f32 0.0, %v1370
    %v1372 = vpop.f32.mrb[0].mxu0
    %v1373 = vadd.f32 0.0, %v1372
    %1374 = vdwg.mxu0
    %v1375 = vadd.f32 %v1299, %v1371
    %v1376 = vadd.f32 %v1300, %v1373
    %v1377 = vxor.u32 %v1375, 2147483648
    %v1378 = vxor.u32 %v1376, 2147483648
    %v1379 = vmul.f32 %v1377, 1.442695
    %v1380 = vpow.pop %v1379
    %v1381 = vmul.f32 %v1378, 1.442695
    %v1382 = vpow.pop %v1381
    %v1383 = vadd.f32 %v1380, 1.0
    %v1384 = vadd.f32 %v1382, 1.0
    %v1385 = vrcp.pop %v1383
    %v1386 = vmul.f32 1.0, %v1385
    %v1387 = vrcp.pop %v1384
    %v1388 = vmul.f32 1.0, %v1387
    %v1389 = vtanh.pop %v1376
    %v1390 = vmul.f32 %v1386, %v1072
    %1392 = vrot.lane.b32.xlu0 %v1389, 64
    %v1393 = vpop.permute.xlu0 %1392
    %v1395 = vmul.f32 %v1386, %v1393
    %1397 = vrot.lane.b32.xlu0 %v1395, 64
    %v1398 = vpop.permute.xlu0 %1397
    %v1400 = vadd.f32 %v1390, %v1398
    %v1401 = vtanh.pop %v1400
    %1403 = vrot.lane.b32.xlu0 %v1401, 64
    %v1404 = vpop.permute.xlu0 %1403
    %v1406 = vmul.f32 %v1388, %v1404
    %1408 = vrot.lane.b32.xlu0 %v1184, 64
    %v1409 = vpop.permute.xlu0 %1408
    %v1411 = vsel %vm294, %v1078, %v1409
    %1412 = vmatprep.subr.mxu0 %v220
    %1413 = vmatpush1.msra.mxu0 %v219
    %1414 = vmatprep.subr.mxu0 %v222
    %1415 = vmatpush1.msra.mxu0 %v221
    %1416 = vmatprep.subr.mxu0 %v224
    %1417 = vmatpush1.msra.mxu0 %v223
    %1418 = vmatprep.subr.mxu0 %v226
    %1419 = vmatpush1.msra.mxu0 %v225
    %1420 = vmatprep.subr.mxu0 %v228
    %1421 = vmatpush1.msra.mxu0 %v227
    %1422 = vmatprep.subr.mxu0 %v230
    %1423 = vmatpush1.msra.mxu0 %v229
    %1424 = vmatprep.subr.mxu0 %v232
    %1425 = vmatpush1.msra.mxu0 %v231
    %1426 = vmatprep.subr.mxu0 %v234
    %1427 = vmatpush1.msra.mxu0 %v233
    %1428 = vmatprep.subr.mxu0 %v236
    %1429 = vmatpush1.msra.mxu0 %v235
    %1430 = vmatprep.subr.mxu0 %v238
    %1431 = vmatpush1.msra.mxu0 %v237
    %1432 = vmatprep.subr.mxu0 %v240
    %1433 = vmatpush1.msra.mxu0 %v239
    %1434 = vmatprep.subr.mxu0 %v242
    %1435 = vmatpush1.msra.mxu0 %v241
    %1436 = vmatprep.subr.mxu0 %v244
    %1437 = vmatpush1.msra.mxu0 %v243
    %1438 = vmatprep.subr.mxu0 %v246
    %1439 = vmatpush1.msra.mxu0 %v245
    %1440 = vmatprep.subr.mxu0 %v248
    %1441 = vmatpush1.msra.mxu0 %v247
    %1442 = vmatprep.subr.mxu0 %v250
    %1443 = vmatpush1.msra.mxu0 %v249
    %1444 = vmatprep.subr.mxu0 0.0
    %1445 = vmatpush1.msra.mxu0 0.0
    %1446 = vmatprep.subr.mxu0 0.0
    %1447 = vmatpush1.msra.mxu0 0.0
    %1448 = vmatprep.subr.mxu0 0.0
    %1449 = vmatpush1.msra.mxu0 0.0
    %1450 = vmatprep.subr.mxu0 0.0
    %1451 = vmatpush1.msra.mxu0 0.0
    %1452 = vmatprep.subr.mxu0 0.0
    %1453 = vmatpush1.msra.mxu0 0.0
    %1454 = vmatprep.subr.mxu0 0.0
    %1455 = vmatpush1.msra.mxu0 0.0
    %1456 = vmatprep.subr.mxu0 0.0
    %1457 = vmatpush1.msra.mxu0 0.0
    %1458 = vmatprep.subr.mxu0 0.0
    %1459 = vmatpush1.msra.mxu0 0.0
    %1460 = vmatprep.subr.mxu0 0.0
    %1461 = vmatpush1.msra.mxu0 0.0
    %1462 = vmatprep.subr.mxu0 0.0
    %1463 = vmatpush1.msra.mxu0 0.0
    %1464 = vmatprep.subr.mxu0 0.0
    %1465 = vmatpush1.msra.mxu0 0.0
    %1466 = vmatprep.subr.mxu0 0.0
    %1467 = vmatpush1.msra.mxu0 0.0
    %1468 = vmatprep.subr.mxu0 0.0
    %1469 = vmatpush1.msra.mxu0 0.0
    %1470 = vmatprep.subr.mxu0 0.0
    %1471 = vmatpush1.msra.mxu0 0.0
    %1472 = vmatprep.subr.mxu0 0.0
    %1473 = vmatpush1.msra.mxu0 0.0
    %1474 = vmatprep.subr.mxu0 0.0
    %1475 = vmatpush1.msra.mxu0 0.0
    %1476 = vmatprep.mubr.f32.mxu0 0.0
    %1477 = vmatmul.mubr.f32.gmra.mrb[0].mxu0 %v1411
    %v1478 = vpop.f32.mrb[0].mxu0
    %v1479 = vadd.f32 %v520, %v1478
    %v1480 = vpop.f32.mrb[0].mxu0
    %v1481 = vadd.f32 %v524, %v1480
    %1482 = vdwg.mxu0
    %v1483 = vxor.u32 %v1479, 2147483648
    %v1484 = vxor.u32 %v1481, 2147483648
    %v1485 = vmul.f32 %v1483, 1.442695
    %v1486 = vpow.pop %v1485
    %v1487 = vmul.f32 %v1484, 1.442695
    %v1488 = vpow.pop %v1487
    %v1489 = vadd.f32 %v1486, 1.0
    %v1490 = vadd.f32 %v1488, 1.0
    %v1491 = vrcp.pop %v1489
    %v1492 = vmul.f32 1.0, %v1491
    %v1493 = vrcp.pop %v1490
    %v1494 = vmul.f32 1.0, %v1493
    %v1495 = vtanh.pop %v1481
    %v1496 = vmul.f32 %v1492, %v1178
    %1498 = vrot.lane.b32.xlu0 %v1495, 64
    %v1499 = vpop.permute.xlu0 %1498
    %v1501 = vmul.f32 %v1492, %v1499
    %1503 = vrot.lane.b32.xlu0 %v1501, 64
    %v1504 = vpop.permute.xlu0 %1503
    %v1506 = vadd.f32 %v1496, %v1504
    %v1507 = vtanh.pop %v1506
    %1509 = vrot.lane.b32.xlu0 %v1507, 64
    %v1510 = vpop.permute.xlu0 %1509
    %v1512 = vmul.f32 %v1494, %v1510
    %1514 = vrot.lane.b32.xlu0 %v1290, 64
    %v1515 = vpop.permute.xlu0 %1514
    %v1517 = vsel %vm294, %v1184, %v1515
    %1518 = vmatprep.subr.mxu0 %v252
    %1519 = vmatpush1.msra.mxu0 %v251
    %1520 = vmatprep.subr.mxu0 %v254
    %1521 = vmatpush1.msra.mxu0 %v253
    %1522 = vmatprep.subr.mxu0 %v256
    %1523 = vmatpush1.msra.mxu0 %v255
    %1524 = vmatprep.subr.mxu0 %v258
    %1525 = vmatpush1.msra.mxu0 %v257
    %1526 = vmatprep.subr.mxu0 %v260
    %1527 = vmatpush1.msra.mxu0 %v259
    %1528 = vmatprep.subr.mxu0 %v262
    %1529 = vmatpush1.msra.mxu0 %v261
    %1530 = vmatprep.subr.mxu0 %v264
    %1531 = vmatpush1.msra.mxu0 %v263
    %1532 = vmatprep.subr.mxu0 %v266
    %1533 = vmatpush1.msra.mxu0 %v265
    %1534 = vmatprep.subr.mxu0 %v268
    %1535 = vmatpush1.msra.mxu0 %v267
    %1536 = vmatprep.subr.mxu0 %v270
    %1537 = vmatpush1.msra.mxu0 %v269
    %1538 = vmatprep.subr.mxu0 %v272
    %1539 = vmatpush1.msra.mxu0 %v271
    %1540 = vmatprep.subr.mxu0 %v274
    %1541 = vmatpush1.msra.mxu0 %v273
    %1542 = vmatprep.subr.mxu0 %v276
    %1543 = vmatpush1.msra.mxu0 %v275
    %1544 = vmatprep.subr.mxu0 %v278
    %1545 = vmatpush1.msra.mxu0 %v277
    %1546 = vmatprep.subr.mxu0 %v280
    %1547 = vmatpush1.msra.mxu0 %v279
    %1548 = vmatprep.subr.mxu0 %v282
    %1549 = vmatpush1.msra.mxu0 %v281
    %1550 = vmatprep.subr.mxu0 0.0
    %1551 = vmatpush1.msra.mxu0 0.0
    %1552 = vmatprep.subr.mxu0 0.0
    %1553 = vmatpush1.msra.mxu0 0.0
    %1554 = vmatprep.subr.mxu0 0.0
    %1555 = vmatpush1.msra.mxu0 0.0
    %1556 = vmatprep.subr.mxu0 0.0
    %1557 = vmatpush1.msra.mxu0 0.0
    %1558 = vmatprep.subr.mxu0 0.0
    %1559 = vmatpush1.msra.mxu0 0.0
    %1560 = vmatprep.subr.mxu0 0.0
    %1561 = vmatpush1.msra.mxu0 0.0
    %1562 = vmatprep.subr.mxu0 0.0
    %1563 = vmatpush1.msra.mxu0 0.0
    %1564 = vmatprep.subr.mxu0 0.0
    %1565 = vmatpush1.msra.mxu0 0.0
    %1566 = vmatprep.subr.mxu0 0.0
    %1567 = vmatpush1.msra.mxu0 0.0
    %1568 = vmatprep.subr.mxu0 0.0
    %1569 = vmatpush1.msra.mxu0 0.0
    %1570 = vmatprep.subr.mxu0 0.0
    %1571 = vmatpush1.msra.mxu0 0.0
    %1572 = vmatprep.subr.mxu0 0.0
    %1573 = vmatpush1.msra.mxu0 0.0
    %1574 = vmatprep.subr.mxu0 0.0
    %1575 = vmatpush1.msra.mxu0 0.0
    %1576 = vmatprep.subr.mxu0 0.0
    %1577 = vmatpush1.msra.mxu0 0.0
    %1578 = vmatprep.subr.mxu0 0.0
    %1579 = vmatpush1.msra.mxu0 0.0
    %1580 = vmatprep.subr.mxu0 0.0
    %1581 = vmatpush1.msra.mxu0 0.0
    %1582 = vmatprep.mubr.f32.mxu0 0.0
    %1583 = vmatmul.mubr.f32.gmra.mrb[0].mxu0 %v1517
    %v1584 = vpop.f32.mrb[0].mxu0
    %v1585 = vadd.f32 %v855, %v1584
    %v1586 = vpop.f32.mrb[0].mxu0
    %v1587 = vadd.f32 %v859, %v1586
    %1588 = vdwg.mxu0
    %v1589 = vxor.u32 %v1585, 2147483648
    %v1590 = vxor.u32 %v1587, 2147483648
    %v1591 = vmul.f32 %v1589, 1.442695
    %v1592 = vpow.pop %v1591
    %v1593 = vmul.f32 %v1590, 1.442695
    %v1594 = vpow.pop %v1593
    %v1595 = vadd.f32 %v1592, 1.0
    %v1596 = vadd.f32 %v1594, 1.0
    %v1597 = vrcp.pop %v1595
    %v1598 = vmul.f32 1.0, %v1597
    %v1599 = vrcp.pop %v1596
    %v1600 = vmul.f32 1.0, %v1599
    %v1601 = vtanh.pop %v1587
    %v1602 = vmul.f32 %v1598, %v1284
    %1604 = vrot.lane.b32.xlu0 %v1601, 64
    %v1605 = vpop.permute.xlu0 %1604
    %v1607 = vmul.f32 %v1598, %v1605
    %1609 = vrot.lane.b32.xlu0 %v1607, 64
    %v1610 = vpop.permute.xlu0 %1609
    %v1612 = vadd.f32 %v1602, %v1610
    %v1613 = vtanh.pop %v1612
    %1615 = vrot.lane.b32.xlu0 %v1613, 64
    %v1616 = vpop.permute.xlu0 %1615
    %v1618 = vmul.f32 %v1600, %v1616
    %v1619 = vrot.slane %v193, 5
    %v1620 = vrot.slane %v195, 5
    %v1623 = vrot.slane %v199, 4
    %v1624 = vrot.slane %v201, 4
    %v1627 = vsel %vm291, %v1619, %v1623
    %v1628 = vsel %vm291, %v1620, %v1624
    %v1630 = vsel %vm294, %v1406, 0
    %1632 = vmatprep.subr.mxu0 %v204
    %1633 = vmatpush1.msra.mxu0 %v203
    %1634 = vmatprep.subr.mxu0 %v206
    %1635 = vmatpush1.msra.mxu0 %v205
    %1636 = vmatprep.subr.mxu0 %v208
    %1637 = vmatpush1.msra.mxu0 %v207
    %1638 = vmatprep.subr.mxu0 %v210
    %1639 = vmatpush1.msra.mxu0 %v209
    %1640 = vmatprep.subr.mxu0 %v212
    %1641 = vmatpush1.msra.mxu0 %v211
    %1642 = vmatprep.subr.mxu0 %v214
    %1643 = vmatpush1.msra.mxu0 %v213
    %1644 = vmatprep.subr.mxu0 %v216
    %1645 = vmatpush1.msra.mxu0 %v215
    %1646 = vmatprep.subr.mxu0 %v218
    %1647 = vmatpush1.msra.mxu0 %v217
    %1648 = vmatprep.subr.mxu0 0.0
    %1649 = vmatpush1.msra.mxu0 0.0
    %1650 = vmatprep.subr.mxu0 0.0
    %1651 = vmatpush1.msra.mxu0 0.0
    %1652 = vmatprep.subr.mxu0 0.0
    %1653 = vmatpush1.msra.mxu0 0.0
    %1654 = vmatprep.subr.mxu0 0.0
    %1655 = vmatpush1.msra.mxu0 0.0
    %1656 = vmatprep.subr.mxu0 0.0
    %1657 = vmatpush1.msra.mxu0 0.0
    %1658 = vmatprep.subr.mxu0 0.0
    %1659 = vmatpush1.msra.mxu0 0.0
    %1660 = vmatprep.subr.mxu0 0.0
    %1661 = vmatpush1.msra.mxu0 0.0
    %1662 = vmatprep.subr.mxu0 0.0
    %1663 = vmatpush1.msra.mxu0 0.0
    %1664 = vmatprep.subr.mxu0 0.0
    %1665 = vmatpush1.msra.mxu0 0.0
    %1666 = vmatprep.subr.mxu0 0.0
    %1667 = vmatpush1.msra.mxu0 0.0
    %1668 = vmatprep.subr.mxu0 0.0
    %1669 = vmatpush1.msra.mxu0 0.0
    %1670 = vmatprep.subr.mxu0 0.0
    %1671 = vmatpush1.msra.mxu0 0.0
    %1672 = vmatprep.subr.mxu0 0.0
    %1673 = vmatpush1.msra.mxu0 0.0
    %1674 = vmatprep.subr.mxu0 0.0
    %1675 = vmatpush1.msra.mxu0 0.0
    %1676 = vmatprep.subr.mxu0 0.0
    %1677 = vmatpush1.msra.mxu0 0.0
    %1678 = vmatprep.subr.mxu0 0.0
    %1679 = vmatpush1.msra.mxu0 0.0
    %1680 = vmatprep.subr.mxu0 0.0
    %1681 = vmatpush1.msra.mxu0 0.0
    %1682 = vmatprep.subr.mxu0 0.0
    %1683 = vmatpush1.msra.mxu0 0.0
    %1684 = vmatprep.subr.mxu0 0.0
    %1685 = vmatpush1.msra.mxu0 0.0
    %1686 = vmatprep.subr.mxu0 0.0
    %1687 = vmatpush1.msra.mxu0 0.0
    %1688 = vmatprep.subr.mxu0 0.0
    %1689 = vmatpush1.msra.mxu0 0.0
    %1690 = vmatprep.subr.mxu0 0.0
    %1691 = vmatpush1.msra.mxu0 0.0
    %1692 = vmatprep.subr.mxu0 0.0
    %1693 = vmatpush1.msra.mxu0 0.0
    %1694 = vmatprep.subr.mxu0 0.0
    %1695 = vmatpush1.msra.mxu0 0.0
    %1696 = vmatprep.mubr.f32.mxu0 0.0
    %1697 = vmatmul.mubr.f32.gmra.mrb[0].mxu0 %v1630
    %v1698 = vpop.f32.mrb[0].mxu0
    %v1699 = vadd.f32 0.0, %v1698
    %v1700 = vpop.f32.mrb[0].mxu0
    %v1701 = vadd.f32 0.0, %v1700
    %1702 = vdwg.mxu0
    %v1703 = vadd.f32 %v1627, %v1699
    %v1704 = vadd.f32 %v1628, %v1701
    %v1705 = vxor.u32 %v1703, 2147483648
    %v1706 = vxor.u32 %v1704, 2147483648
    %v1707 = vmul.f32 %v1705, 1.442695
    %v1708 = vpow.pop %v1707
    %v1709 = vmul.f32 %v1706, 1.442695
    %v1710 = vpow.pop %v1709
    %v1711 = vadd.f32 %v1708, 1.0
    %v1712 = vadd.f32 %v1710, 1.0
    %v1713 = vrcp.pop %v1711
    %v1714 = vmul.f32 1.0, %v1713
    %v1715 = vrcp.pop %v1712
    %v1716 = vmul.f32 1.0, %v1715
    %v1717 = vtanh.pop %v1704
    %v1718 = vmul.f32 %v1714, %v1400
    %1720 = vrot.lane.b32.xlu0 %v1717, 64
    %v1721 = vpop.permute.xlu0 %1720
    %v1723 = vmul.f32 %v1714, %v1721
    %1725 = vrot.lane.b32.xlu0 %v1723, 64
    %v1726 = vpop.permute.xlu0 %1725
    %v1728 = vadd.f32 %v1718, %v1726
    %v1729 = vtanh.pop %v1728
    %1731 = vrot.lane.b32.xlu0 %v1729, 64
    %v1732 = vpop.permute.xlu0 %1731
    %v1734 = vmul.f32 %v1716, %v1732
    %1736 = vrot.lane.b32.xlu0 %v1512, 64
    %v1737 = vpop.permute.xlu0 %1736
    %v1739 = vsel %vm294, %v1406, %v1737
    %1740 = vmatprep.subr.mxu0 %v220
    %1741 = vmatpush1.msra.mxu0 %v219
    %1742 = vmatprep.subr.mxu0 %v222
    %1743 = vmatpush1.msra.mxu0 %v221
    %1744 = vmatprep.subr.mxu0 %v224
    %1745 = vmatpush1.msra.mxu0 %v223
    %1746 = vmatprep.subr.mxu0 %v226
    %1747 = vmatpush1.msra.mxu0 %v225
    %1748 = vmatprep.subr.mxu0 %v228
    %1749 = vmatpush1.msra.mxu0 %v227
    %1750 = vmatprep.subr.mxu0 %v230
    %1751 = vmatpush1.msra.mxu0 %v229
    %1752 = vmatprep.subr.mxu0 %v232
    %1753 = vmatpush1.msra.mxu0 %v231
    %1754 = vmatprep.subr.mxu0 %v234
    %1755 = vmatpush1.msra.mxu0 %v233
    %1756 = vmatprep.subr.mxu0 %v236
    %1757 = vmatpush1.msra.mxu0 %v235
    %1758 = vmatprep.subr.mxu0 %v238
    %1759 = vmatpush1.msra.mxu0 %v237
    %1760 = vmatprep.subr.mxu0 %v240
    %1761 = vmatpush1.msra.mxu0 %v239
    %1762 = vmatprep.subr.mxu0 %v242
    %1763 = vmatpush1.msra.mxu0 %v241
    %1764 = vmatprep.subr.mxu0 %v244
    %1765 = vmatpush1.msra.mxu0 %v243
    %1766 = vmatprep.subr.mxu0 %v246
    %1767 = vmatpush1.msra.mxu0 %v245
    %1768 = vmatprep.subr.mxu0 %v248
    %1769 = vmatpush1.msra.mxu0 %v247
    %1770 = vmatprep.subr.mxu0 %v250
    %1771 = vmatpush1.msra.mxu0 %v249
    %1772 = vmatprep.subr.mxu0 0.0
    %1773 = vmatpush1.msra.mxu0 0.0
    %1774 = vmatprep.subr.mxu0 0.0
    %1775 = vmatpush1.msra.mxu0 0.0
    %1776 = vmatprep.subr.mxu0 0.0
    %1777 = vmatpush1.msra.mxu0 0.0
    %1778 = vmatprep.subr.mxu0 0.0
    %1779 = vmatpush1.msra.mxu0 0.0
    %1780 = vmatprep.subr.mxu0 0.0
    %1781 = vmatpush1.msra.mxu0 0.0
    %1782 = vmatprep.subr.mxu0 0.0
    %1783 = vmatpush1.msra.mxu0 0.0
    %1784 = vmatprep.subr.mxu0 0.0
    %1785 = vmatpush1.msra.mxu0 0.0
    %1786 = vmatprep.subr.mxu0 0.0
    %1787 = vmatpush1.msra.mxu0 0.0
    %1788 = vmatprep.subr.mxu0 0.0
    %1789 = vmatpush1.msra.mxu0 0.0
    %1790 = vmatprep.subr.mxu0 0.0
    %1791 = vmatpush1.msra.mxu0 0.0
    %1792 = vmatprep.subr.mxu0 0.0
    %1793 = vmatpush1.msra.mxu0 0.0
    %1794 = vmatprep.subr.mxu0 0.0
    %1795 = vmatpush1.msra.mxu0 0.0
    %1796 = vmatprep.subr.mxu0 0.0
    %1797 = vmatpush1.msra.mxu0 0.0
    %1798 = vmatprep.subr.mxu0 0.0
    %1799 = vmatpush1.msra.mxu0 0.0
    %1800 = vmatprep.subr.mxu0 0.0
    %1801 = vmatpush1.msra.mxu0 0.0
    %1802 = vmatprep.subr.mxu0 0.0
    %1803 = vmatpush1.msra.mxu0 0.0
    %1804 = vmatprep.mubr.f32.mxu0 0.0
    %1805 = vmatmul.mubr.f32.gmra.mrb[0].mxu0 %v1739
    %v1806 = vpop.f32.mrb[0].mxu0
    %v1807 = vadd.f32 %v520, %v1806
    %v1808 = vpop.f32.mrb[0].mxu0
    %v1809 = vadd.f32 %v524, %v1808
    %1810 = vdwg.mxu0
    %v1811 = vxor.u32 %v1807, 2147483648
    %v1812 = vxor.u32 %v1809, 2147483648
    %v1813 = vmul.f32 %v1811, 1.442695
    %v1814 = vpow.pop %v1813
    %v1815 = vmul.f32 %v1812, 1.442695
    %v1816 = vpow.pop %v1815
    %v1817 = vadd.f32 %v1814, 1.0
    %v1818 = vadd.f32 %v1816, 1.0
    %v1819 = vrcp.pop %v1817
    %v1820 = vmul.f32 1.0, %v1819
    %v1821 = vrcp.pop %v1818
    %v1822 = vmul.f32 1.0, %v1821
    %v1823 = vtanh.pop %v1809
    %v1824 = vmul.f32 %v1820, %v1506
    %1826 = vrot.lane.b32.xlu0 %v1823, 64
    %v1827 = vpop.permute.xlu0 %1826
    %v1829 = vmul.f32 %v1820, %v1827
    %1831 = vrot.lane.b32.xlu0 %v1829, 64
    %v1832 = vpop.permute.xlu0 %1831
    %v1834 = vadd.f32 %v1824, %v1832
    %v1835 = vtanh.pop %v1834
    %1837 = vrot.lane.b32.xlu0 %v1835, 64
    %v1838 = vpop.permute.xlu0 %1837
    %v1840 = vmul.f32 %v1822, %v1838
    %1842 = vrot.lane.b32.xlu0 %v1618, 64
    %v1843 = vpop.permute.xlu0 %1842
    %v1845 = vsel %vm294, %v1512, %v1843
    %1846 = vmatprep.subr.mxu0 %v252
    %1847 = vmatpush1.msra.mxu0 %v251
    %1848 = vmatprep.subr.mxu0 %v254
    %1849 = vmatpush1.msra.mxu0 %v253
    %1850 = vmatprep.subr.mxu0 %v256
    %1851 = vmatpush1.msra.mxu0 %v255
    %1852 = vmatprep.subr.mxu0 %v258
    %1853 = vmatpush1.msra.mxu0 %v257
    %1854 = vmatprep.subr.mxu0 %v260
    %1855 = vmatpush1.msra.mxu0 %v259
    %1856 = vmatprep.subr.mxu0 %v262
    %1857 = vmatpush1.msra.mxu0 %v261
    %1858 = vmatprep.subr.mxu0 %v264
    %1859 = vmatpush1.msra.mxu0 %v263
    %1860 = vmatprep.subr.mxu0 %v266
    %1861 = vmatpush1.msra.mxu0 %v265
    %1862 = vmatprep.subr.mxu0 %v268
    %1863 = vmatpush1.msra.mxu0 %v267
    %1864 = vmatprep.subr.mxu0 %v270
    %1865 = vmatpush1.msra.mxu0 %v269
    %1866 = vmatprep.subr.mxu0 %v272
    %1867 = vmatpush1.msra.mxu0 %v271
    %1868 = vmatprep.subr.mxu0 %v274
    %1869 = vmatpush1.msra.mxu0 %v273
    %1870 = vmatprep.subr.mxu0 %v276
    %1871 = vmatpush1.msra.mxu0 %v275
    %1872 = vmatprep.subr.mxu0 %v278
    %1873 = vmatpush1.msra.mxu0 %v277
    %1874 = vmatprep.subr.mxu0 %v280
    %1875 = vmatpush1.msra.mxu0 %v279
    %1876 = vmatprep.subr.mxu0 %v282
    %1877 = vmatpush1.msra.mxu0 %v281
    %1878 = vmatprep.subr.mxu0 0.0
    %1879 = vmatpush1.msra.mxu0 0.0
    %1880 = vmatprep.subr.mxu0 0.0
    %1881 = vmatpush1.msra.mxu0 0.0
    %1882 = vmatprep.subr.mxu0 0.0
    %1883 = vmatpush1.msra.mxu0 0.0
    %1884 = vmatprep.subr.mxu0 0.0
    %1885 = vmatpush1.msra.mxu0 0.0
    %1886 = vmatprep.subr.mxu0 0.0
    %1887 = vmatpush1.msra.mxu0 0.0
    %1888 = vmatprep.subr.mxu0 0.0
    %1889 = vmatpush1.msra.mxu0 0.0
    %1890 = vmatprep.subr.mxu0 0.0
    %1891 = vmatpush1.msra.mxu0 0.0
    %1892 = vmatprep.subr.mxu0 0.0
    %1893 = vmatpush1.msra.mxu0 0.0
    %1894 = vmatprep.subr.mxu0 0.0
    %1895 = vmatpush1.msra.mxu0 0.0
    %1896 = vmatprep.subr.mxu0 0.0
    %1897 = vmatpush1.msra.mxu0 0.0
    %1898 = vmatprep.subr.mxu0 0.0
    %1899 = vmatpush1.msra.mxu0 0.0
    %1900 = vmatprep.subr.mxu0 0.0
    %1901 = vmatpush1.msra.mxu0 0.0
    %1902 = vmatprep.subr.mxu0 0.0
    %1903 = vmatpush1.msra.mxu0 0.0
    %1904 = vmatprep.subr.mxu0 0.0
    %1905 = vmatpush1.msra.mxu0 0.0
    %1906 = vmatprep.subr.mxu0 0.0
    %1907 = vmatpush1.msra.mxu0 0.0
    %1908 = vmatprep.subr.mxu0 0.0
    %1909 = vmatpush1.msra.mxu0 0.0
    %1910 = vmatprep.mubr.f32.mxu0 0.0
    %1911 = vmatmul.mubr.f32.gmra.mrb[0].mxu0 %v1845
    %v1912 = vpop.f32.mrb[0].mxu0
    %v1913 = vadd.f32 %v855, %v1912
    %v1914 = vpop.f32.mrb[0].mxu0
    %v1915 = vadd.f32 %v859, %v1914
    %1916 = vdwg.mxu0
    %v1917 = vxor.u32 %v1913, 2147483648
    %v1918 = vxor.u32 %v1915, 2147483648
    %v1919 = vmul.f32 %v1917, 1.442695
    %v1920 = vpow.pop %v1919
    %v1921 = vmul.f32 %v1918, 1.442695
    %v1922 = vpow.pop %v1921
    %v1923 = vadd.f32 %v1920, 1.0
    %v1924 = vadd.f32 %v1922, 1.0
    %v1925 = vrcp.pop %v1923
    %v1926 = vmul.f32 1.0, %v1925
    %v1927 = vrcp.pop %v1924
    %v1928 = vmul.f32 1.0, %v1927
    %v1929 = vtanh.pop %v1915
    %v1930 = vmul.f32 %v1926, %v1612
    %1932 = vrot.lane.b32.xlu0 %v1929, 64
    %v1933 = vpop.permute.xlu0 %1932
    %v1935 = vmul.f32 %v1926, %v1933
    %1937 = vrot.lane.b32.xlu0 %v1935, 64
    %v1938 = vpop.permute.xlu0 %1937
    %v1940 = vadd.f32 %v1930, %v1938
    %v1941 = vtanh.pop %v1940
    %1943 = vrot.lane.b32.xlu0 %v1941, 64
    %v1944 = vpop.permute.xlu0 %1943
    %v1946 = vmul.f32 %v1928, %v1944
    %v1947 = vrot.slane %v193, 6
    %v1948 = vrot.slane %v195, 6
    %v1951 = vrot.slane %v199, 5
    %v1952 = vrot.slane %v201, 5
    %v1955 = vsel %vm291, %v1947, %v1951
    %v1956 = vsel %vm291, %v1948, %v1952
    %v1958 = vsel %vm294, %v1734, 0
    %1960 = vmatprep.subr.mxu0 %v204
    %1961 = vmatpush1.msra.mxu0 %v203
    %1962 = vmatprep.subr.mxu0 %v206
    %1963 = vmatpush1.msra.mxu0 %v205
    %1964 = vmatprep.subr.mxu0 %v208
    %1965 = vmatpush1.msra.mxu0 %v207
    %1966 = vmatprep.subr.mxu0 %v210
    %1967 = vmatpush1.msra.mxu0 %v209
    %1968 = vmatprep.subr.mxu0 %v212
    %1969 = vmatpush1.msra.mxu0 %v211
    %1970 = vmatprep.subr.mxu0 %v214
    %1971 = vmatpush1.msra.mxu0 %v213
    %1972 = vmatprep.subr.mxu0 %v216
    %1973 = vmatpush1.msra.mxu0 %v215
    %1974 = vmatprep.subr.mxu0 %v218
    %1975 = vmatpush1.msra.mxu0 %v217
    %1976 = vmatprep.subr.mxu0 0.0
    %1977 = vmatpush1.msra.mxu0 0.0
    %1978 = vmatprep.subr.mxu0 0.0
    %1979 = vmatpush1.msra.mxu0 0.0
    %1980 = vmatprep.subr.mxu0 0.0
    %1981 = vmatpush1.msra.mxu0 0.0
    %1982 = vmatprep.subr.mxu0 0.0
    %1983 = vmatpush1.msra.mxu0 0.0
    %1984 = vmatprep.subr.mxu0 0.0
    %1985 = vmatpush1.msra.mxu0 0.0
    %1986 = vmatprep.subr.mxu0 0.0
    %1987 = vmatpush1.msra.mxu0 0.0
    %1988 = vmatprep.subr.mxu0 0.0
    %1989 = vmatpush1.msra.mxu0 0.0
    %1990 = vmatprep.subr.mxu0 0.0
    %1991 = vmatpush1.msra.mxu0 0.0
    %1992 = vmatprep.subr.mxu0 0.0
    %1993 = vmatpush1.msra.mxu0 0.0
    %1994 = vmatprep.subr.mxu0 0.0
    %1995 = vmatpush1.msra.mxu0 0.0
    %1996 = vmatprep.subr.mxu0 0.0
    %1997 = vmatpush1.msra.mxu0 0.0
    %1998 = vmatprep.subr.mxu0 0.0
    %1999 = vmatpush1.msra.mxu0 0.0
    %2000 = vmatprep.subr.mxu0 0.0
    %2001 = vmatpush1.msra.mxu0 0.0
    %2002 = vmatprep.subr.mxu0 0.0
    %2003 = vmatpush1.msra.mxu0 0.0
    %2004 = vmatprep.subr.mxu0 0.0
    %2005 = vmatpush1.msra.mxu0 0.0
    %2006 = vmatprep.subr.mxu0 0.0
    %2007 = vmatpush1.msra.mxu0 0.0
    %2008 = vmatprep.subr.mxu0 0.0
    %2009 = vmatpush1.msra.mxu0 0.0
    %2010 = vmatprep.subr.mxu0 0.0
    %2011 = vmatpush1.msra.mxu0 0.0
    %2012 = vmatprep.subr.mxu0 0.0
    %2013 = vmatpush1.msra.mxu0 0.0
    %2014 = vmatprep.subr.mxu0 0.0
    %2015 = vmatpush1.msra.mxu0 0.0
    %2016 = vmatprep.subr.mxu0 0.0
    %2017 = vmatpush1.msra.mxu0 0.0
    %2018 = vmatprep.subr.mxu0 0.0
    %2019 = vmatpush1.msra.mxu0 0.0
    %2020 = vmatprep.subr.mxu0 0.0
    %2021 = vmatpush1.msra.mxu0 0.0
    %2022 = vmatprep.subr.mxu0 0.0
    %2023 = vmatpush1.msra.mxu0 0.0
    %2024 = vmatprep.mubr.f32.mxu0 0.0
    %2025 = vmatmul.mubr.f32.gmra.mrb[0].mxu0 %v1958
    %v2026 = vpop.f32.mrb[0].mxu0
    %v2027 = vadd.f32 0.0, %v2026
    %v2028 = vpop.f32.mrb[0].mxu0
    %v2029 = vadd.f32 0.0, %v2028
    %2030 = vdwg.mxu0
    %v2031 = vadd.f32 %v1955, %v2027
    %v2032 = vadd.f32 %v1956, %v2029
    %v2033 = vxor.u32 %v2031, 2147483648
    %v2034 = vxor.u32 %v2032, 2147483648
    %v2035 = vmul.f32 %v2033, 1.442695
    %v2036 = vpow.pop %v2035
    %v2037 = vmul.f32 %v2034, 1.442695
    %v2038 = vpow.pop %v2037
    %v2039 = vadd.f32 %v2036, 1.0
    %v2040 = vadd.f32 %v2038, 1.0
    %v2041 = vrcp.pop %v2039
    %v2042 = vmul.f32 1.0, %v2041
    %v2043 = vrcp.pop %v2040
    %v2044 = vmul.f32 1.0, %v2043
    %v2045 = vtanh.pop %v2032
    %v2046 = vmul.f32 %v2042, %v1728
    %2048 = vrot.lane.b32.xlu0 %v2045, 64
    %v2049 = vpop.permute.xlu0 %2048
    %v2051 = vmul.f32 %v2042, %v2049
    %2053 = vrot.lane.b32.xlu0 %v2051, 64
    %v2054 = vpop.permute.xlu0 %2053
    %v2056 = vadd.f32 %v2046, %v2054
    %v2057 = vtanh.pop %v2056
    %2059 = vrot.lane.b32.xlu0 %v2057, 64
    %v2060 = vpop.permute.xlu0 %2059
    %v2062 = vmul.f32 %v2044, %v2060
    %2064 = vrot.lane.b32.xlu0 %v1840, 64
    %v2065 = vpop.permute.xlu0 %2064
    %v2067 = vsel %vm294, %v1734, %v2065
    %2068 = vmatprep.subr.mxu0 %v220
    %2069 = vmatpush1.msra.mxu0 %v219
    %2070 = vmatprep.subr.mxu0 %v222
    %2071 = vmatpush1.msra.mxu0 %v221
    %2072 = vmatprep.subr.mxu0 %v224
    %2073 = vmatpush1.msra.mxu0 %v223
    %2074 = vmatprep.subr.mxu0 %v226
    %2075 = vmatpush1.msra.mxu0 %v225
    %2076 = vmatprep.subr.mxu0 %v228
    %2077 = vmatpush1.msra.mxu0 %v227
    %2078 = vmatprep.subr.mxu0 %v230
    %2079 = vmatpush1.msra.mxu0 %v229
    %2080 = vmatprep.subr.mxu0 %v232
    %2081 = vmatpush1.msra.mxu0 %v231
    %2082 = vmatprep.subr.mxu0 %v234
    %2083 = vmatpush1.msra.mxu0 %v233
    %2084 = vmatprep.subr.mxu0 %v236
    %2085 = vmatpush1.msra.mxu0 %v235
    %2086 = vmatprep.subr.mxu0 %v238
    %2087 = vmatpush1.msra.mxu0 %v237
    %2088 = vmatprep.subr.mxu0 %v240
    %2089 = vmatpush1.msra.mxu0 %v239
    %2090 = vmatprep.subr.mxu0 %v242
    %2091 = vmatpush1.msra.mxu0 %v241
    %2092 = vmatprep.subr.mxu0 %v244
    %2093 = vmatpush1.msra.mxu0 %v243
    %2094 = vmatprep.subr.mxu0 %v246
    %2095 = vmatpush1.msra.mxu0 %v245
    %2096 = vmatprep.subr.mxu0 %v248
    %2097 = vmatpush1.msra.mxu0 %v247
    %2098 = vmatprep.subr.mxu0 %v250
    %2099 = vmatpush1.msra.mxu0 %v249
    %2100 = vmatprep.subr.mxu0 0.0
    %2101 = vmatpush1.msra.mxu0 0.0
    %2102 = vmatprep.subr.mxu0 0.0
    %2103 = vmatpush1.msra.mxu0 0.0
    %2104 = vmatprep.subr.mxu0 0.0
    %2105 = vmatpush1.msra.mxu0 0.0
    %2106 = vmatprep.subr.mxu0 0.0
    %2107 = vmatpush1.msra.mxu0 0.0
    %2108 = vmatprep.subr.mxu0 0.0
    %2109 = vmatpush1.msra.mxu0 0.0
    %2110 = vmatprep.subr.mxu0 0.0
    %2111 = vmatpush1.msra.mxu0 0.0
    %2112 = vmatprep.subr.mxu0 0.0
    %2113 = vmatpush1.msra.mxu0 0.0
    %2114 = vmatprep.subr.mxu0 0.0
    %2115 = vmatpush1.msra.mxu0 0.0
    %2116 = vmatprep.subr.mxu0 0.0
    %2117 = vmatpush1.msra.mxu0 0.0
    %2118 = vmatprep.subr.mxu0 0.0
    %2119 = vmatpush1.msra.mxu0 0.0
    %2120 = vmatprep.subr.mxu0 0.0
    %2121 = vmatpush1.msra.mxu0 0.0
    %2122 = vmatprep.subr.mxu0 0.0
    %2123 = vmatpush1.msra.mxu0 0.0
    %2124 = vmatprep.subr.mxu0 0.0
    %2125 = vmatpush1.msra.mxu0 0.0
    %2126 = vmatprep.subr.mxu0 0.0
    %2127 = vmatpush1.msra.mxu0 0.0
    %2128 = vmatprep.subr.mxu0 0.0
    %2129 = vmatpush1.msra.mxu0 0.0
    %2130 = vmatprep.subr.mxu0 0.0
    %2131 = vmatpush1.msra.mxu0 0.0
    %2132 = vmatprep.mubr.f32.mxu0 0.0
    %2133 = vmatmul.mubr.f32.gmra.mrb[0].mxu0 %v2067
    %v2134 = vpop.f32.mrb[0].mxu0
    %v2135 = vadd.f32 %v520, %v2134
    %v2136 = vpop.f32.mrb[0].mxu0
    %v2137 = vadd.f32 %v524, %v2136
    %2138 = vdwg.mxu0
    %v2139 = vxor.u32 %v2135, 2147483648
    %v2140 = vxor.u32 %v2137, 2147483648
    %v2141 = vmul.f32 %v2139, 1.442695
    %v2142 = vpow.pop %v2141
    %v2143 = vmul.f32 %v2140, 1.442695
    %v2144 = vpow.pop %v2143
    %v2145 = vadd.f32 %v2142, 1.0
    %v2146 = vadd.f32 %v2144, 1.0
    %v2147 = vrcp.pop %v2145
    %v2148 = vmul.f32 1.0, %v2147
    %v2149 = vrcp.pop %v2146
    %v2150 = vmul.f32 1.0, %v2149
    %v2151 = vtanh.pop %v2137
    %v2152 = vmul.f32 %v2148, %v1834
    %2154 = vrot.lane.b32.xlu0 %v2151, 64
    %v2155 = vpop.permute.xlu0 %2154
    %v2157 = vmul.f32 %v2148, %v2155
    %2159 = vrot.lane.b32.xlu0 %v2157, 64
    %v2160 = vpop.permute.xlu0 %2159
    %v2162 = vadd.f32 %v2152, %v2160
    %v2163 = vtanh.pop %v2162
    %2165 = vrot.lane.b32.xlu0 %v2163, 64
    %v2166 = vpop.permute.xlu0 %2165
    %v2168 = vmul.f32 %v2150, %v2166
    %2170 = vrot.lane.b32.xlu0 %v1946, 64
    %v2171 = vpop.permute.xlu0 %2170
    %v2173 = vsel %vm294, %v1840, %v2171
    %2174 = vmatprep.subr.mxu0 %v252
    %2175 = vmatpush1.msra.mxu0 %v251
    %2176 = vmatprep.subr.mxu0 %v254
    %2177 = vmatpush1.msra.mxu0 %v253
    %2178 = vmatprep.subr.mxu0 %v256
    %2179 = vmatpush1.msra.mxu0 %v255
    %2180 = vmatprep.subr.mxu0 %v258
    %2181 = vmatpush1.msra.mxu0 %v257
    %2182 = vmatprep.subr.mxu0 %v260
    %2183 = vmatpush1.msra.mxu0 %v259
    %2184 = vmatprep.subr.mxu0 %v262
    %2185 = vmatpush1.msra.mxu0 %v261
    %2186 = vmatprep.subr.mxu0 %v264
    %2187 = vmatpush1.msra.mxu0 %v263
    %2188 = vmatprep.subr.mxu0 %v266
    %2189 = vmatpush1.msra.mxu0 %v265
    %2190 = vmatprep.subr.mxu0 %v268
    %2191 = vmatpush1.msra.mxu0 %v267
    %2192 = vmatprep.subr.mxu0 %v270
    %2193 = vmatpush1.msra.mxu0 %v269
    %2194 = vmatprep.subr.mxu0 %v272
    %2195 = vmatpush1.msra.mxu0 %v271
    %2196 = vmatprep.subr.mxu0 %v274
    %2197 = vmatpush1.msra.mxu0 %v273
    %2198 = vmatprep.subr.mxu0 %v276
    %2199 = vmatpush1.msra.mxu0 %v275
    %2200 = vmatprep.subr.mxu0 %v278
    %2201 = vmatpush1.msra.mxu0 %v277
    %2202 = vmatprep.subr.mxu0 %v280
    %2203 = vmatpush1.msra.mxu0 %v279
    %2204 = vmatprep.subr.mxu0 %v282
    %2205 = vmatpush1.msra.mxu0 %v281
    %2206 = vmatprep.subr.mxu0 0.0
    %2207 = vmatpush1.msra.mxu0 0.0
    %2208 = vmatprep.subr.mxu0 0.0
    %2209 = vmatpush1.msra.mxu0 0.0
    %2210 = vmatprep.subr.mxu0 0.0
    %2211 = vmatpush1.msra.mxu0 0.0
    %2212 = vmatprep.subr.mxu0 0.0
    %2213 = vmatpush1.msra.mxu0 0.0
    %2214 = vmatprep.subr.mxu0 0.0
    %2215 = vmatpush1.msra.mxu0 0.0
    %2216 = vmatprep.subr.mxu0 0.0
    %2217 = vmatpush1.msra.mxu0 0.0
    %2218 = vmatprep.subr.mxu0 0.0
    %2219 = vmatpush1.msra.mxu0 0.0
    %2220 = vmatprep.subr.mxu0 0.0
    %2221 = vmatpush1.msra.mxu0 0.0
    %2222 = vmatprep.subr.mxu0 0.0
    %2223 = vmatpush1.msra.mxu0 0.0
    %2224 = vmatprep.subr.mxu0 0.0
    %2225 = vmatpush1.msra.mxu0 0.0
    %2226 = vmatprep.subr.mxu0 0.0
    %2227 = vmatpush1.msra.mxu0 0.0
    %2228 = vmatprep.subr.mxu0 0.0
    %2229 = vmatpush1.msra.mxu0 0.0
    %2230 = vmatprep.subr.mxu0 0.0
    %2231 = vmatpush1.msra.mxu0 0.0
    %2232 = vmatprep.subr.mxu0 0.0
    %2233 = vmatpush1.msra.mxu0 0.0
    %2234 = vmatprep.subr.mxu0 0.0
    %2235 = vmatpush1.msra.mxu0 0.0
    %2236 = vmatprep.subr.mxu0 0.0
    %2237 = vmatpush1.msra.mxu0 0.0
    %2238 = vmatprep.mubr.f32.mxu0 0.0
    %2239 = vmatmul.mubr.f32.gmra.mrb[0].mxu0 %v2173
    %v2240 = vpop.f32.mrb[0].mxu0
    %v2241 = vadd.f32 %v855, %v2240
    %v2242 = vpop.f32.mrb[0].mxu0
    %v2243 = vadd.f32 %v859, %v2242
    %2244 = vdwg.mxu0
    %v2245 = vxor.u32 %v2241, 2147483648
    %v2246 = vxor.u32 %v2243, 2147483648
    %v2247 = vmul.f32 %v2245, 1.442695
    %v2248 = vpow.pop %v2247
    %v2249 = vmul.f32 %v2246, 1.442695
    %v2250 = vpow.pop %v2249
    %v2251 = vadd.f32 %v2248, 1.0
    %v2252 = vadd.f32 %v2250, 1.0
    %v2253 = vrcp.pop %v2251
    %v2254 = vmul.f32 1.0, %v2253
    %v2255 = vrcp.pop %v2252
    %v2256 = vmul.f32 1.0, %v2255
    %v2257 = vtanh.pop %v2243
    %v2258 = vmul.f32 %v2254, %v1940
    %2260 = vrot.lane.b32.xlu0 %v2257, 64
    %v2261 = vpop.permute.xlu0 %2260
    %v2263 = vmul.f32 %v2254, %v2261
    %2265 = vrot.lane.b32.xlu0 %v2263, 64
    %v2266 = vpop.permute.xlu0 %2265
    %v2268 = vadd.f32 %v2258, %v2266
    %v2269 = vtanh.pop %v2268
    %2271 = vrot.lane.b32.xlu0 %v2269, 64
    %v2272 = vpop.permute.xlu0 %2271
    %v2274 = vmul.f32 %v2256, %v2272
    %v2275 = vrot.slane %v193, 7
    %v2276 = vrot.slane %v195, 7
    %v2279 = vrot.slane %v199, 6
    %v2280 = vrot.slane %v201, 6
    %v2283 = vsel %vm291, %v2275, %v2279
    %v2284 = vsel %vm291, %v2276, %v2280
    %v2286 = vsel %vm294, %v2062, 0
    %2288 = vmatprep.subr.mxu0 %v204
    %2289 = vmatpush1.msra.mxu0 %v203
    %2290 = vmatprep.subr.mxu0 %v206
    %2291 = vmatpush1.msra.mxu0 %v205
    %2292 = vmatprep.subr.mxu0 %v208
    %2293 = vmatpush1.msra.mxu0 %v207
    %2294 = vmatprep.subr.mxu0 %v210
    %2295 = vmatpush1.msra.mxu0 %v209
    %2296 = vmatprep.subr.mxu0 %v212
    %2297 = vmatpush1.msra.mxu0 %v211
    %2298 = vmatprep.subr.mxu0 %v214
    %2299 = vmatpush1.msra.mxu0 %v213
    %2300 = vmatprep.subr.mxu0 %v216
    %2301 = vmatpush1.msra.mxu0 %v215
    %2302 = vmatprep.subr.mxu0 %v218
    %2303 = vmatpush1.msra.mxu0 %v217
    %2304 = vmatprep.subr.mxu0 0.0
    %2305 = vmatpush1.msra.mxu0 0.0
    %2306 = vmatprep.subr.mxu0 0.0
    %2307 = vmatpush1.msra.mxu0 0.0
    %2308 = vmatprep.subr.mxu0 0.0
    %2309 = vmatpush1.msra.mxu0 0.0
    %2310 = vmatprep.subr.mxu0 0.0
    %2311 = vmatpush1.msra.mxu0 0.0
    %2312 = vmatprep.subr.mxu0 0.0
    %2313 = vmatpush1.msra.mxu0 0.0
    %2314 = vmatprep.subr.mxu0 0.0
    %2315 = vmatpush1.msra.mxu0 0.0
    %2316 = vmatprep.subr.mxu0 0.0
    %2317 = vmatpush1.msra.mxu0 0.0
    %2318 = vmatprep.subr.mxu0 0.0
    %2319 = vmatpush1.msra.mxu0 0.0
    %2320 = vmatprep.subr.mxu0 0.0
    %2321 = vmatpush1.msra.mxu0 0.0
    %2322 = vmatprep.subr.mxu0 0.0
    %2323 = vmatpush1.msra.mxu0 0.0
    %2324 = vmatprep.subr.mxu0 0.0
    %2325 = vmatpush1.msra.mxu0 0.0
    %2326 = vmatprep.subr.mxu0 0.0
    %2327 = vmatpush1.msra.mxu0 0.0
    %2328 = vmatprep.subr.mxu0 0.0
    %2329 = vmatpush1.msra.mxu0 0.0
    %2330 = vmatprep.subr.mxu0 0.0
    %2331 = vmatpush1.msra.mxu0 0.0
    %2332 = vmatprep.subr.mxu0 0.0
    %2333 = vmatpush1.msra.mxu0 0.0
    %2334 = vmatprep.subr.mxu0 0.0
    %2335 = vmatpush1.msra.mxu0 0.0
    %2336 = vmatprep.subr.mxu0 0.0
    %2337 = vmatpush1.msra.mxu0 0.0
    %2338 = vmatprep.subr.mxu0 0.0
    %2339 = vmatpush1.msra.mxu0 0.0
    %2340 = vmatprep.subr.mxu0 0.0
    %2341 = vmatpush1.msra.mxu0 0.0
    %2342 = vmatprep.subr.mxu0 0.0
    %2343 = vmatpush1.msra.mxu0 0.0
    %2344 = vmatprep.subr.mxu0 0.0
    %2345 = vmatpush1.msra.mxu0 0.0
    %2346 = vmatprep.subr.mxu0 0.0
    %2347 = vmatpush1.msra.mxu0 0.0
    %2348 = vmatprep.subr.mxu0 0.0
    %2349 = vmatpush1.msra.mxu0 0.0
    %2350 = vmatprep.subr.mxu0 0.0
    %2351 = vmatpush1.msra.mxu0 0.0
    %2352 = vmatprep.mubr.f32.mxu0 0.0
    %2353 = vmatmul.mubr.f32.gmra.mrb[0].mxu0 %v2286
    %v2354 = vpop.f32.mrb[0].mxu0
    %v2355 = vadd.f32 0.0, %v2354
    %v2356 = vpop.f32.mrb[0].mxu0
    %v2357 = vadd.f32 0.0, %v2356
    %2358 = vdwg.mxu0
    %v2359 = vadd.f32 %v2283, %v2355
    %v2360 = vadd.f32 %v2284, %v2357
    %v2361 = vxor.u32 %v2359, 2147483648
    %v2362 = vxor.u32 %v2360, 2147483648
    %v2363 = vmul.f32 %v2361, 1.442695
    %v2364 = vpow.pop %v2363
    %v2365 = vmul.f32 %v2362, 1.442695
    %v2366 = vpow.pop %v2365
    %v2367 = vadd.f32 %v2364, 1.0
    %v2368 = vadd.f32 %v2366, 1.0
    %v2369 = vrcp.pop %v2367
    %v2370 = vmul.f32 1.0, %v2369
    %v2371 = vrcp.pop %v2368
    %v2372 = vmul.f32 1.0, %v2371
    %v2373 = vtanh.pop %v2360
    %v2374 = vmul.f32 %v2370, %v2056
    %2376 = vrot.lane.b32.xlu0 %v2373, 64
    %v2377 = vpop.permute.xlu0 %2376
    %v2379 = vmul.f32 %v2370, %v2377
    %2381 = vrot.lane.b32.xlu0 %v2379, 64
    %v2382 = vpop.permute.xlu0 %2381
    %v2384 = vadd.f32 %v2374, %v2382
    %v2385 = vtanh.pop %v2384
    %2387 = vrot.lane.b32.xlu0 %v2385, 64
    %v2388 = vpop.permute.xlu0 %2387
    %v2390 = vmul.f32 %v2372, %v2388
    %2392 = vrot.lane.b32.xlu0 %v2168, 64
    %v2393 = vpop.permute.xlu0 %2392
    %v2395 = vsel %vm294, %v2062, %v2393
    %2396 = vmatprep.subr.mxu0 %v220
    %2397 = vmatpush1.msra.mxu0 %v219
    %2398 = vmatprep.subr.mxu0 %v222
    %2399 = vmatpush1.msra.mxu0 %v221
    %2400 = vmatprep.subr.mxu0 %v224
    %2401 = vmatpush1.msra.mxu0 %v223
    %2402 = vmatprep.subr.mxu0 %v226
    %2403 = vmatpush1.msra.mxu0 %v225
    %2404 = vmatprep.subr.mxu0 %v228
    %2405 = vmatpush1.msra.mxu0 %v227
    %2406 = vmatprep.subr.mxu0 %v230
    %2407 = vmatpush1.msra.mxu0 %v229
    %2408 = vmatprep.subr.mxu0 %v232
    %2409 = vmatpush1.msra.mxu0 %v231
    %2410 = vmatprep.subr.mxu0 %v234
    %2411 = vmatpush1.msra.mxu0 %v233
    %2412 = vmatprep.subr.mxu0 %v236
    %2413 = vmatpush1.msra.mxu0 %v235
    %2414 = vmatprep.subr.mxu0 %v238
    %2415 = vmatpush1.msra.mxu0 %v237
    %2416 = vmatprep.subr.mxu0 %v240
    %2417 = vmatpush1.msra.mxu0 %v239
    %2418 = vmatprep.subr.mxu0 %v242
    %2419 = vmatpush1.msra.mxu0 %v241
    %2420 = vmatprep.subr.mxu0 %v244
    %2421 = vmatpush1.msra.mxu0 %v243
    %2422 = vmatprep.subr.mxu0 %v246
    %2423 = vmatpush1.msra.mxu0 %v245
    %2424 = vmatprep.subr.mxu0 %v248
    %2425 = vmatpush1.msra.mxu0 %v247
    %2426 = vmatprep.subr.mxu0 %v250
    %2427 = vmatpush1.msra.mxu0 %v249
    %2428 = vmatprep.subr.mxu0 0.0
    %2429 = vmatpush1.msra.mxu0 0.0
    %2430 = vmatprep.subr.mxu0 0.0
    %2431 = vmatpush1.msra.mxu0 0.0
    %2432 = vmatprep.subr.mxu0 0.0
    %2433 = vmatpush1.msra.mxu0 0.0
    %2434 = vmatprep.subr.mxu0 0.0
    %2435 = vmatpush1.msra.mxu0 0.0
    %2436 = vmatprep.subr.mxu0 0.0
    %2437 = vmatpush1.msra.mxu0 0.0
    %2438 = vmatprep.subr.mxu0 0.0
    %2439 = vmatpush1.msra.mxu0 0.0
    %2440 = vmatprep.subr.mxu0 0.0
    %2441 = vmatpush1.msra.mxu0 0.0
    %2442 = vmatprep.subr.mxu0 0.0
    %2443 = vmatpush1.msra.mxu0 0.0
    %2444 = vmatprep.subr.mxu0 0.0
    %2445 = vmatpush1.msra.mxu0 0.0
    %2446 = vmatprep.subr.mxu0 0.0
    %2447 = vmatpush1.msra.mxu0 0.0
    %2448 = vmatprep.subr.mxu0 0.0
    %2449 = vmatpush1.msra.mxu0 0.0
    %2450 = vmatprep.subr.mxu0 0.0
    %2451 = vmatpush1.msra.mxu0 0.0
    %2452 = vmatprep.subr.mxu0 0.0
    %2453 = vmatpush1.msra.mxu0 0.0
    %2454 = vmatprep.subr.mxu0 0.0
    %2455 = vmatpush1.msra.mxu0 0.0
    %2456 = vmatprep.subr.mxu0 0.0
    %2457 = vmatpush1.msra.mxu0 0.0
    %2458 = vmatprep.subr.mxu0 0.0
    %2459 = vmatpush1.msra.mxu0 0.0
    %2460 = vmatprep.mubr.f32.mxu0 0.0
    %2461 = vmatmul.mubr.f32.gmra.mrb[0].mxu0 %v2395
    %v2462 = vpop.f32.mrb[0].mxu0
    %v2463 = vadd.f32 %v520, %v2462
    %v2464 = vpop.f32.mrb[0].mxu0
    %v2465 = vadd.f32 %v524, %v2464
    %2466 = vdwg.mxu0
    %v2467 = vxor.u32 %v2463, 2147483648
    %v2468 = vxor.u32 %v2465, 2147483648
    %v2469 = vmul.f32 %v2467, 1.442695
    %v2470 = vpow.pop %v2469
    %v2471 = vmul.f32 %v2468, 1.442695
    %v2472 = vpow.pop %v2471
    %v2473 = vadd.f32 %v2470, 1.0
    %v2474 = vadd.f32 %v2472, 1.0
    %v2475 = vrcp.pop %v2473
    %v2476 = vmul.f32 1.0, %v2475
    %v2477 = vrcp.pop %v2474
    %v2478 = vmul.f32 1.0, %v2477
    %v2479 = vtanh.pop %v2465
    %v2480 = vmul.f32 %v2476, %v2162
    %2482 = vrot.lane.b32.xlu0 %v2479, 64
    %v2483 = vpop.permute.xlu0 %2482
    %v2485 = vmul.f32 %v2476, %v2483
    %2487 = vrot.lane.b32.xlu0 %v2485, 64
    %v2488 = vpop.permute.xlu0 %2487
    %v2490 = vadd.f32 %v2480, %v2488
    %v2491 = vtanh.pop %v2490
    %2493 = vrot.lane.b32.xlu0 %v2491, 64
    %v2494 = vpop.permute.xlu0 %2493
    %v2496 = vmul.f32 %v2478, %v2494
    %2498 = vrot.lane.b32.xlu0 %v2274, 64
    %v2499 = vpop.permute.xlu0 %2498
    %v2501 = vsel %vm294, %v2168, %v2499
    %2502 = vmatprep.subr.mxu0 %v252
    %2503 = vmatpush1.msra.mxu0 %v251
    %2504 = vmatprep.subr.mxu0 %v254
    %2505 = vmatpush1.msra.mxu0 %v253
    %2506 = vmatprep.subr.mxu0 %v256
    %2507 = vmatpush1.msra.mxu0 %v255
    %2508 = vmatprep.subr.mxu0 %v258
    %2509 = vmatpush1.msra.mxu0 %v257
    %2510 = vmatprep.subr.mxu0 %v260
    %2511 = vmatpush1.msra.mxu0 %v259
    %2512 = vmatprep.subr.mxu0 %v262
    %2513 = vmatpush1.msra.mxu0 %v261
    %2514 = vmatprep.subr.mxu0 %v264
    %2515 = vmatpush1.msra.mxu0 %v263
    %2516 = vmatprep.subr.mxu0 %v266
    %2517 = vmatpush1.msra.mxu0 %v265
    %2518 = vmatprep.subr.mxu0 %v268
    %2519 = vmatpush1.msra.mxu0 %v267
    %2520 = vmatprep.subr.mxu0 %v270
    %2521 = vmatpush1.msra.mxu0 %v269
    %2522 = vmatprep.subr.mxu0 %v272
    %2523 = vmatpush1.msra.mxu0 %v271
    %2524 = vmatprep.subr.mxu0 %v274
    %2525 = vmatpush1.msra.mxu0 %v273
    %2526 = vmatprep.subr.mxu0 %v276
    %2527 = vmatpush1.msra.mxu0 %v275
    %2528 = vmatprep.subr.mxu0 %v278
    %2529 = vmatpush1.msra.mxu0 %v277
    %2530 = vmatprep.subr.mxu0 %v280
    %2531 = vmatpush1.msra.mxu0 %v279
    %2532 = vmatprep.subr.mxu0 %v282
    %2533 = vmatpush1.msra.mxu0 %v281
    %2534 = vmatprep.subr.mxu0 0.0
    %2535 = vmatpush1.msra.mxu0 0.0
    %2536 = vmatprep.subr.mxu0 0.0
    %2537 = vmatpush1.msra.mxu0 0.0
    %2538 = vmatprep.subr.mxu0 0.0
    %2539 = vmatpush1.msra.mxu0 0.0
    %2540 = vmatprep.subr.mxu0 0.0
    %2541 = vmatpush1.msra.mxu0 0.0
    %2542 = vmatprep.subr.mxu0 0.0
    %2543 = vmatpush1.msra.mxu0 0.0
    %2544 = vmatprep.subr.mxu0 0.0
    %2545 = vmatpush1.msra.mxu0 0.0
    %2546 = vmatprep.subr.mxu0 0.0
    %2547 = vmatpush1.msra.mxu0 0.0
    %2548 = vmatprep.subr.mxu0 0.0
    %2549 = vmatpush1.msra.mxu0 0.0
    %2550 = vmatprep.subr.mxu0 0.0
    %2551 = vmatpush1.msra.mxu0 0.0
    %2552 = vmatprep.subr.mxu0 0.0
    %2553 = vmatpush1.msra.mxu0 0.0
    %2554 = vmatprep.subr.mxu0 0.0
    %2555 = vmatpush1.msra.mxu0 0.0
    %2556 = vmatprep.subr.mxu0 0.0
    %2557 = vmatpush1.msra.mxu0 0.0
    %2558 = vmatprep.subr.mxu0 0.0
    %2559 = vmatpush1.msra.mxu0 0.0
    %2560 = vmatprep.subr.mxu0 0.0
    %2561 = vmatpush1.msra.mxu0 0.0
    %2562 = vmatprep.subr.mxu0 0.0
    %2563 = vmatpush1.msra.mxu0 0.0
    %2564 = vmatprep.subr.mxu0 0.0
    %2565 = vmatpush1.msra.mxu0 0.0
    %2566 = vmatprep.mubr.f32.mxu0 0.0
    %2567 = vmatmul.mubr.f32.gmra.mrb[0].mxu0 %v2501
    %v2568 = vpop.f32.mrb[0].mxu0
    %v2569 = vadd.f32 %v855, %v2568
    %v2570 = vpop.f32.mrb[0].mxu0
    %v2571 = vadd.f32 %v859, %v2570
    %2572 = vdwg.mxu0
    %v2573 = vxor.u32 %v2569, 2147483648
    %v2574 = vxor.u32 %v2571, 2147483648
    %v2575 = vmul.f32 %v2573, 1.442695
    %v2576 = vpow.pop %v2575
    %v2577 = vmul.f32 %v2574, 1.442695
    %v2578 = vpow.pop %v2577
    %v2579 = vadd.f32 %v2576, 1.0
    %v2580 = vadd.f32 %v2578, 1.0
    %v2581 = vrcp.pop %v2579
    %v2582 = vmul.f32 1.0, %v2581
    %v2583 = vrcp.pop %v2580
    %v2584 = vmul.f32 1.0, %v2583
    %v2585 = vtanh.pop %v2571
    %v2586 = vmul.f32 %v2582, %v2268
    %2588 = vrot.lane.b32.xlu0 %v2585, 64
    %v2589 = vpop.permute.xlu0 %2588
    %v2591 = vmul.f32 %v2582, %v2589
    %2593 = vrot.lane.b32.xlu0 %v2591, 64
    %v2594 = vpop.permute.xlu0 %2593
    %v2596 = vadd.f32 %v2586, %v2594
    %v2597 = vtanh.pop %v2596
    %2599 = vrot.lane.b32.xlu0 %v2597, 64
    %v2600 = vpop.permute.xlu0 %2599
    %v2602 = vmul.f32 %v2584, %v2600
    %2604 = vrot.lane.b32.xlu0 %v2496, 64
    %v2605 = vpop.permute.xlu0 %2604
    %v2607 = vsel %vm294, %v2390, %v2605
    %2608 = vmatprep.subr.mxu0 %v220
    %2609 = vmatpush1.msra.mxu0 %v219
    %2610 = vmatprep.subr.mxu0 %v222
    %2611 = vmatpush1.msra.mxu0 %v221
    %2612 = vmatprep.subr.mxu0 %v224
    %2613 = vmatpush1.msra.mxu0 %v223
    %2614 = vmatprep.subr.mxu0 %v226
    %2615 = vmatpush1.msra.mxu0 %v225
    %2616 = vmatprep.subr.mxu0 %v228
    %2617 = vmatpush1.msra.mxu0 %v227
    %2618 = vmatprep.subr.mxu0 %v230
    %2619 = vmatpush1.msra.mxu0 %v229
    %2620 = vmatprep.subr.mxu0 %v232
    %2621 = vmatpush1.msra.mxu0 %v231
    %2622 = vmatprep.subr.mxu0 %v234
    %2623 = vmatpush1.msra.mxu0 %v233
    %2624 = vmatprep.subr.mxu0 %v236
    %2625 = vmatpush1.msra.mxu0 %v235
    %2626 = vmatprep.subr.mxu0 %v238
    %2627 = vmatpush1.msra.mxu0 %v237
    %2628 = vmatprep.subr.mxu0 %v240
    %2629 = vmatpush1.msra.mxu0 %v239
    %2630 = vmatprep.subr.mxu0 %v242
    %2631 = vmatpush1.msra.mxu0 %v241
    %2632 = vmatprep.subr.mxu0 %v244
    %2633 = vmatpush1.msra.mxu0 %v243
    %2634 = vmatprep.subr.mxu0 %v246
    %2635 = vmatpush1.msra.mxu0 %v245
    %2636 = vmatprep.subr.mxu0 %v248
    %2637 = vmatpush1.msra.mxu0 %v247
    %2638 = vmatprep.subr.mxu0 %v250
    %2639 = vmatpush1.msra.mxu0 %v249
    %2640 = vmatprep.subr.mxu0 0.0
    %2641 = vmatpush1.msra.mxu0 0.0
    %2642 = vmatprep.subr.mxu0 0.0
    %2643 = vmatpush1.msra.mxu0 0.0
    %2644 = vmatprep.subr.mxu0 0.0
    %2645 = vmatpush1.msra.mxu0 0.0
    %2646 = vmatprep.subr.mxu0 0.0
    %2647 = vmatpush1.msra.mxu0 0.0
    %2648 = vmatprep.subr.mxu0 0.0
    %2649 = vmatpush1.msra.mxu0 0.0
    %2650 = vmatprep.subr.mxu0 0.0
    %2651 = vmatpush1.msra.mxu0 0.0
    %2652 = vmatprep.subr.mxu0 0.0
    %2653 = vmatpush1.msra.mxu0 0.0
    %2654 = vmatprep.subr.mxu0 0.0
    %2655 = vmatpush1.msra.mxu0 0.0
    %2656 = vmatprep.subr.mxu0 0.0
    %2657 = vmatpush1.msra.mxu0 0.0
    %2658 = vmatprep.subr.mxu0 0.0
    %2659 = vmatpush1.msra.mxu0 0.0
    %2660 = vmatprep.subr.mxu0 0.0
    %2661 = vmatpush1.msra.mxu0 0.0
    %2662 = vmatprep.subr.mxu0 0.0
    %2663 = vmatpush1.msra.mxu0 0.0
    %2664 = vmatprep.subr.mxu0 0.0
    %2665 = vmatpush1.msra.mxu0 0.0
    %2666 = vmatprep.subr.mxu0 0.0
    %2667 = vmatpush1.msra.mxu0 0.0
    %2668 = vmatprep.subr.mxu0 0.0
    %2669 = vmatpush1.msra.mxu0 0.0
    %2670 = vmatprep.subr.mxu0 0.0
    %2671 = vmatpush1.msra.mxu0 0.0
    %2672 = vmatprep.mubr.f32.mxu0 0.0
    %2673 = vmatmul.mubr.f32.gmra.mrb[0].mxu0 %v2607
    %v2674 = vpop.f32.mrb[0].mxu0
    %v2675 = vadd.f32 %v520, %v2674
    %v2676 = vpop.f32.mrb[0].mxu0
    %v2677 = vadd.f32 %v524, %v2676
    %2678 = vdwg.mxu0
    %v2679 = vxor.u32 %v2675, 2147483648
    %v2680 = vxor.u32 %v2677, 2147483648
    %v2681 = vmul.f32 %v2679, 1.442695
    %v2682 = vpow.pop %v2681
    %v2683 = vmul.f32 %v2680, 1.442695
    %v2684 = vpow.pop %v2683
    %v2685 = vadd.f32 %v2682, 1.0
    %v2686 = vadd.f32 %v2684, 1.0
    %v2687 = vrcp.pop %v2685
    %v2688 = vmul.f32 1.0, %v2687
    %v2689 = vrcp.pop %v2686
    %v2690 = vmul.f32 1.0, %v2689
    %v2691 = vtanh.pop %v2677
    %v2692 = vmul.f32 %v2688, %v2490
    %2694 = vrot.lane.b32.xlu0 %v2691, 64
    %v2695 = vpop.permute.xlu0 %2694
    %v2697 = vmul.f32 %v2688, %v2695
    %2699 = vrot.lane.b32.xlu0 %v2697, 64
    %v2700 = vpop.permute.xlu0 %2699
    %v2702 = vadd.f32 %v2692, %v2700
    %v2703 = vtanh.pop %v2702
    %2705 = vrot.lane.b32.xlu0 %v2703, 64
    %v2706 = vpop.permute.xlu0 %2705
    %v2708 = vmul.f32 %v2690, %v2706
    %2710 = vrot.lane.b32.xlu0 %v2602, 64
    %v2711 = vpop.permute.xlu0 %2710
    %v2713 = vsel %vm294, %v2496, %v2711
    %2714 = vmatprep.subr.mxu0 %v252
    %2715 = vmatpush1.msra.mxu0 %v251
    %2716 = vmatprep.subr.mxu0 %v254
    %2717 = vmatpush1.msra.mxu0 %v253
    %2718 = vmatprep.subr.mxu0 %v256
    %2719 = vmatpush1.msra.mxu0 %v255
    %2720 = vmatprep.subr.mxu0 %v258
    %2721 = vmatpush1.msra.mxu0 %v257
    %2722 = vmatprep.subr.mxu0 %v260
    %2723 = vmatpush1.msra.mxu0 %v259
    %2724 = vmatprep.subr.mxu0 %v262
    %2725 = vmatpush1.msra.mxu0 %v261
    %2726 = vmatprep.subr.mxu0 %v264
    %2727 = vmatpush1.msra.mxu0 %v263
    %2728 = vmatprep.subr.mxu0 %v266
    %2729 = vmatpush1.msra.mxu0 %v265
    %2730 = vmatprep.subr.mxu0 %v268
    %2731 = vmatpush1.msra.mxu0 %v267
    %2732 = vmatprep.subr.mxu0 %v270
    %2733 = vmatpush1.msra.mxu0 %v269
    %2734 = vmatprep.subr.mxu0 %v272
    %2735 = vmatpush1.msra.mxu0 %v271
    %2736 = vmatprep.subr.mxu0 %v274
    %2737 = vmatpush1.msra.mxu0 %v273
    %2738 = vmatprep.subr.mxu0 %v276
    %2739 = vmatpush1.msra.mxu0 %v275
    %2740 = vmatprep.subr.mxu0 %v278
    %2741 = vmatpush1.msra.mxu0 %v277
    %2742 = vmatprep.subr.mxu0 %v280
    %2743 = vmatpush1.msra.mxu0 %v279
    %2744 = vmatprep.subr.mxu0 %v282
    %2745 = vmatpush1.msra.mxu0 %v281
    %2746 = vmatprep.subr.mxu0 0.0
    %2747 = vmatpush1.msra.mxu0 0.0
    %2748 = vmatprep.subr.mxu0 0.0
    %2749 = vmatpush1.msra.mxu0 0.0
    %2750 = vmatprep.subr.mxu0 0.0
    %2751 = vmatpush1.msra.mxu0 0.0
    %2752 = vmatprep.subr.mxu0 0.0
    %2753 = vmatpush1.msra.mxu0 0.0
    %2754 = vmatprep.subr.mxu0 0.0
    %2755 = vmatpush1.msra.mxu0 0.0
    %2756 = vmatprep.subr.mxu0 0.0
    %2757 = vmatpush1.msra.mxu0 0.0
    %2758 = vmatprep.subr.mxu0 0.0
    %2759 = vmatpush1.msra.mxu0 0.0
    %2760 = vmatprep.subr.mxu0 0.0
    %2761 = vmatpush1.msra.mxu0 0.0
    %2762 = vmatprep.subr.mxu0 0.0
    %2763 = vmatpush1.msra.mxu0 0.0
    %2764 = vmatprep.subr.mxu0 0.0
    %2765 = vmatpush1.msra.mxu0 0.0
    %2766 = vmatprep.subr.mxu0 0.0
    %2767 = vmatpush1.msra.mxu0 0.0
    %2768 = vmatprep.subr.mxu0 0.0
    %2769 = vmatpush1.msra.mxu0 0.0
    %2770 = vmatprep.subr.mxu0 0.0
    %2771 = vmatpush1.msra.mxu0 0.0
    %2772 = vmatprep.subr.mxu0 0.0
    %2773 = vmatpush1.msra.mxu0 0.0
    %2774 = vmatprep.subr.mxu0 0.0
    %2775 = vmatpush1.msra.mxu0 0.0
    %2776 = vmatprep.subr.mxu0 0.0
    %2777 = vmatpush1.msra.mxu0 0.0
    %2778 = vmatprep.mubr.f32.mxu0 0.0
    %2779 = vmatmul.mubr.f32.gmra.mrb[0].mxu0 %v2713
    %v2780 = vpop.f32.mrb[0].mxu0
    %v2781 = vadd.f32 %v855, %v2780
    %v2782 = vpop.f32.mrb[0].mxu0
    %v2783 = vadd.f32 %v859, %v2782
    %2784 = vdwg.mxu0
    %v2785 = vxor.u32 %v2781, 2147483648
    %v2786 = vxor.u32 %v2783, 2147483648
    %v2787 = vmul.f32 %v2785, 1.442695
    %v2788 = vpow.pop %v2787
    %v2789 = vmul.f32 %v2786, 1.442695
    %v2790 = vpow.pop %v2789
    %v2791 = vadd.f32 %v2788, 1.0
    %v2792 = vadd.f32 %v2790, 1.0
    %v2793 = vrcp.pop %v2791
    %v2794 = vmul.f32 1.0, %v2793
    %v2795 = vrcp.pop %v2792
    %v2796 = vmul.f32 1.0, %v2795
    %v2797 = vtanh.pop %v2783
    %v2798 = vmul.f32 %v2794, %v2596
    %2800 = vrot.lane.b32.xlu0 %v2797, 64
    %v2801 = vpop.permute.xlu0 %2800
    %v2803 = vmul.f32 %v2794, %v2801
    %2805 = vrot.lane.b32.xlu0 %v2803, 64
    %v2806 = vpop.permute.xlu0 %2805
    %v2808 = vadd.f32 %v2798, %v2806
    %v2809 = vtanh.pop %v2808
    %2811 = vrot.lane.b32.xlu0 %v2809, 64
    %v2812 = vpop.permute.xlu0 %2811
    %v2814 = vmul.f32 %v2796, %v2812
    %2816 = vrot.lane.b32.xlu0 %v2814, 64
    %v2817 = vpop.permute.xlu0 %2816
    %v2819 = vsel %vm294, %v2708, %v2817
    %2820 = vmatprep.subr.mxu0 %v252
    %2821 = vmatpush1.msra.mxu0 %v251
    %2822 = vmatprep.subr.mxu0 %v254
    %2823 = vmatpush1.msra.mxu0 %v253
    %2824 = vmatprep.subr.mxu0 %v256
    %2825 = vmatpush1.msra.mxu0 %v255
    %2826 = vmatprep.subr.mxu0 %v258
    %2827 = vmatpush1.msra.mxu0 %v257
    %2828 = vmatprep.subr.mxu0 %v260
    %2829 = vmatpush1.msra.mxu0 %v259
    %2830 = vmatprep.subr.mxu0 %v262
    %2831 = vmatpush1.msra.mxu0 %v261
    %2832 = vmatprep.subr.mxu0 %v264
    %2833 = vmatpush1.msra.mxu0 %v263
    %2834 = vmatprep.subr.mxu0 %v266
    %2835 = vmatpush1.msra.mxu0 %v265
    %2836 = vmatprep.subr.mxu0 %v268
    %2837 = vmatpush1.msra.mxu0 %v267
    %2838 = vmatprep.subr.mxu0 %v270
    %2839 = vmatpush1.msra.mxu0 %v269
    %2840 = vmatprep.subr.mxu0 %v272
    %2841 = vmatpush1.msra.mxu0 %v271
    %2842 = vmatprep.subr.mxu0 %v274
    %2843 = vmatpush1.msra.mxu0 %v273
    %2844 = vmatprep.subr.mxu0 %v276
    %2845 = vmatpush1.msra.mxu0 %v275
    %2846 = vmatprep.subr.mxu0 %v278
    %2847 = vmatpush1.msra.mxu0 %v277
    %2848 = vmatprep.subr.mxu0 %v280
    %2849 = vmatpush1.msra.mxu0 %v279
    %2850 = vmatprep.subr.mxu0 %v282
    %2851 = vmatpush1.msra.mxu0 %v281
    %2852 = vmatprep.subr.mxu0 0.0
    %2853 = vmatpush1.msra.mxu0 0.0
    %2854 = vmatprep.subr.mxu0 0.0
    %2855 = vmatpush1.msra.mxu0 0.0
    %2856 = vmatprep.subr.mxu0 0.0
    %2857 = vmatpush1.msra.mxu0 0.0
    %2858 = vmatprep.subr.mxu0 0.0
    %2859 = vmatpush1.msra.mxu0 0.0
    %2860 = vmatprep.subr.mxu0 0.0
    %2861 = vmatpush1.msra.mxu0 0.0
    %2862 = vmatprep.subr.mxu0 0.0
    %2863 = vmatpush1.msra.mxu0 0.0
    %2864 = vmatprep.subr.mxu0 0.0
    %2865 = vmatpush1.msra.mxu0 0.0
    %2866 = vmatprep.subr.mxu0 0.0
    %2867 = vmatpush1.msra.mxu0 0.0
    %2868 = vmatprep.subr.mxu0 0.0
    %2869 = vmatpush1.msra.mxu0 0.0
    %2870 = vmatprep.subr.mxu0 0.0
    %2871 = vmatpush1.msra.mxu0 0.0
    %2872 = vmatprep.subr.mxu0 0.0
    %2873 = vmatpush1.msra.mxu0 0.0
    %2874 = vmatprep.subr.mxu0 0.0
    %2875 = vmatpush1.msra.mxu0 0.0
    %2876 = vmatprep.subr.mxu0 0.0
    %2877 = vmatpush1.msra.mxu0 0.0
    %2878 = vmatprep.subr.mxu0 0.0
    %2879 = vmatpush1.msra.mxu0 0.0
    %2880 = vmatprep.subr.mxu0 0.0
    %2881 = vmatpush1.msra.mxu0 0.0
    %2882 = vmatprep.subr.mxu0 0.0
    %2883 = vmatpush1.msra.mxu0 0.0
    %2884 = vmatprep.mubr.f32.mxu0 0.0
    %2885 = vmatmul.mubr.f32.gmra.mrb[0].mxu0 %v2819
    %v2886 = vpop.f32.mrb[0].mxu0
    %v2887 = vadd.f32 %v855, %v2886
    %v2888 = vpop.f32.mrb[0].mxu0
    %v2889 = vadd.f32 %v859, %v2888
    %2890 = vdwg.mxu0
    %v2891 = vxor.u32 %v2887, 2147483648
    %v2892 = vxor.u32 %v2889, 2147483648
    %v2893 = vmul.f32 %v2891, 1.442695
    %v2894 = vpow.pop %v2893
    %v2895 = vmul.f32 %v2892, 1.442695
    %v2896 = vpow.pop %v2895
    %v2897 = vadd.f32 %v2894, 1.0
    %v2898 = vadd.f32 %v2896, 1.0
    %v2899 = vrcp.pop %v2897
    %v2900 = vmul.f32 1.0, %v2899
    %v2901 = vrcp.pop %v2898
    %v2902 = vmul.f32 1.0, %v2901
    %v2903 = vtanh.pop %v2889
    %v2904 = vmul.f32 %v2900, %v2808
    %2906 = vrot.lane.b32.xlu0 %v2903, 64
    %v2907 = vpop.permute.xlu0 %2906
    %v2909 = vmul.f32 %v2900, %v2907
    %2911 = vrot.lane.b32.xlu0 %v2909, 64
    %v2912 = vpop.permute.xlu0 %2911
    %v2914 = vadd.f32 %v2904, %v2912
    %v2915 = vtanh.pop %v2914
    %2917 = vrot.lane.b32.xlu0 %v2915, 64
    %v2918 = vpop.permute.xlu0 %2917
    %v2920 = vmul.f32 %v2902, %v2918
    %v2921 = vrot.slane %v1290, 7
    %v2923 = vrot.slane %v1618, 6
    %v2925 = vrot.slane %v1946, 5
    %v2927 = vrot.slane %v2274, 4
    %v2929 = vrot.slane %v2602, 3
    %v2931 = vrot.slane %v2814, 2
    %v2934 = vrot.slane %v2920, 1
    %v2936 = vrot.slane %v962, 1
    %v2938 = vrot.slane %v1618, 7
    %v2940 = vrot.slane %v1946, 6
    %v2942 = vrot.slane %v2274, 5
    %v2944 = vrot.slane %v2602, 4
    %v2946 = vrot.slane %v2814, 3
    %v2948 = vrot.slane %v2920, 2
    %v2950 = vsel %vm291, %v962, %v2921
    %v2951 = vsel %vm119, %v2950, %v2923
    %vm2952 = vcmask 1042432
    %v2953 = vsel %vm2952, %v2951, %v2925
    %vm2954 = vcmask 1043456
    %v2955 = vsel %vm2954, %v2953, %v2927
    %vm2956 = vcmask 1044480
    %v2957 = vsel %vm2956, %v2955, %v2929
    %vm2958 = vcmask 1045504
    %v2959 = vsel %vm2958, %v2957, %v2931
    %vm2960 = vcmask 1046528
    %v2961 = vsel %vm2960, %v2959, %v2934
    %v2962 = vsel %vm291, %v2936, %v1290
    %v2963 = vsel %vm119, %v2962, %v2938
    %v2964 = vsel %vm2952, %v2963, %v2940
    %v2965 = vsel %vm2954, %v2964, %v2942
    %v2966 = vsel %vm2956, %v2965, %v2944
    %v2967 = vsel %vm2958, %v2966, %v2946
    %v2968 = vsel %vm2960, %v2967, %v2948
    %v2969 = vld [vmem:[%s8] sm:$0x1]
    %v2971 = vlaneseq
    %v2972 = vshrl.u32 %v2971, 7
    %v2973 = vsub.s32 0, %v2972
    %v2974 = vrot.slane %v2969, %v2973
    %v2976 = vmul.f32 %v2961, %v2974
    %v2977 = vmul.f32 %v2968, %v2974
    %v2978 = vsel %vm294, %v2976, 0.0
    %2979 = vadd.xlane.f32.xlu0 %v2978
    %v2980 = vpop.xlane.xlu0 %2979
    %v2981 = vsel %vm294, %v2977, 0.0
    %2982 = vadd.xlane.f32.xlu0 %v2981
    %v2983 = vpop.xlane.xlu0 %2982
    %v2984 = vld [vmem:[#allocation2] sm:$0x1]
    %v2986 = vlaneseq
    %v2987 = vshrl.u32 %v2986, 7
    %v2988 = vsub.s32 0, %v2987
    %v2989 = vrot.slane %v2984, %v2988
    %v2991 = vadd.f32 %v2980, %v2989
    %v2992 = vadd.f32 %v2983, %v2989
    %vm2993 = vcmask 7168
    %2994 = vst.msk [vmem:[%s10] sm:$0xff] %vm2993, %v2991
    %2995 = vst.msk [vmem:[%s10 + $0x8] sm:$0xff] %vm2993, %v2992
    // Predicated region
    $region58: #{_forward_impl.1} parent=1 // pred_check
      _
    $region59: #{_forward_impl.1} parent=1 // pred_check_branch
      %2997 = sbr.rel (0) target = $region61
    $region60: #{_forward_impl.1} parent=1 // pred_region
      _
    $region61: #{_forward_impl.1} parent=1 // pred_fallthru
      _
    // Predicated region
    $region62: #{_forward_impl.1} parent=1 // pred_check
      _
    $region63: #{_forward_impl.1} parent=1 // pred_check_branch
      %2999 = sbr.rel (0) target = $region65
    $region64: #{_forward_impl.1} parent=1 // pred_region
      _
    $region65: #{_forward_impl.1} parent=1 // pred_fallthru
      _
    %3000 = vsyncpa [#allocation4], 1
    %3001 = vsyncpa [#allocation6], 1
    %3002 = vsyncpa [#allocation9], 1

</llo_original>
